<compile_context>
chip_gen: v7x
topology: tpu7x:2x2x1
jax: 0.10.0
libtpu: 0.0.40
codegen_flags: <defaults>
</compile_context>

<pallas_src>
import jax
import jax.numpy as jnp
from jax.experimental import pallas as pl
from jax.experimental.pallas import tpu as pltpu

# ----------------------------- small synthetic config -----------------------------
IMG = 32            # 224 in the real model
PATCH = 16
IN_CHANS = 3
EMBED_DIM = 128     # 768 in the real model (kept lane-dense: multiple of 128)
DEPTH = 2           # 12 in the real model
NUM_HEADS = 2       # 12 in the real model (head_dim = 64 matches the real model)
MLP_RATIO = 4.0
RANK = 4            # LoRA rank (64 real) -- folded into qkv weight
NUM_TASKS = 2
NUM_CLASSES = 10
LN_EPS = 1e-6

HEAD_DIM = EMBED_DIM // NUM_HEADS
HIDDEN = int(EMBED_DIM * MLP_RATIO)

_PAR1 = pltpu.CompilerParams(dimension_semantics=("parallel",))
_PAR2 = pltpu.CompilerParams(dimension_semantics=("parallel", "parallel"))


# ----------------------------------- kernels --------------------------------------
def _ln_f32(x, g, b):
    """Row-wise LayerNorm in f32 (stats in f32 on every chip generation)."""
    mu = jnp.mean(x, axis=-1, keepdims=True)
    var = jnp.mean(jnp.square(x - mu), axis=-1, keepdims=True)
    return (x - mu) * jax.lax.rsqrt(var + LN_EPS) * g + b


def _patch_linear_kernel(x_ref, w_ref, b_ref, o_ref):
    # x_ref: (1, nP, C*P*P) f32 ; w_ref: (C*P*P, D) bf16 ; b_ref: (1, D) f32
    y = jnp.dot(x_ref[0].astype(jnp.bfloat16), w_ref[...],
                preferred_element_type=jnp.float32)
    o_ref[0] = (y + b_ref[...]).astype(o_ref.dtype)


def _ln_qkv_split_kernel(x_ref, g_ref, b_ref, w_ref, bias_ref, q_ref, k_ref, v_ref):
    # Fused LN1 + qkv (LoRA already folded into w_ref) + per-head q/k/v split.
    # x_ref: (1, S, D) f32 ; w_ref: (D, 3D) bf16 ; bias_ref: (1, 3D) f32
    x = x_ref[0].astype(jnp.float32)
    h = _ln_f32(x, g_ref[...], b_ref[...])
    y = jnp.dot(h.astype(jnp.bfloat16), w_ref[...],
                preferred_element_type=jnp.float32)
    y = y + bias_ref[...]                                    # (S, 3D) f32
    D, Dh = EMBED_DIM, HEAD_DIM
    for hh in range(NUM_HEADS):                              # static python loop
        q_ref[0, hh] = y[:, hh * Dh:(hh + 1) * Dh].astype(q_ref.dtype)
        k_ref[0, hh] = y[:, D + hh * Dh:D + (hh + 1) * Dh].astype(k_ref.dtype)
        v_ref[0, hh] = y[:, 2 * D + hh * Dh:2 * D + (hh + 1) * Dh].astype(v_ref.dtype)


def _attn_kernel(q_ref, k_ref, v_ref, o_ref):
    # One (batch, head) tile per grid step: (S, Dh) blocks, softmax in f32.
    q = q_ref[0, 0]                                          # (S, Dh) bf16
    k = k_ref[0, 0]
    v = v_ref[0, 0]
    scale = HEAD_DIM ** -0.5
    s = jax.lax.dot_general(q, k, (((1,), (1,)), ((), ())),
                            preferred_element_type=jnp.float32) * scale
    s = s - jnp.max(s, axis=-1, keepdims=True)
    p = jnp.exp(s)
    p = p * pl.reciprocal(jnp.sum(p, axis=-1, keepdims=True), approx=True)
    o = jnp.dot(p.astype(v.dtype), v, preferred_element_type=jnp.float32)
    o_ref[0, 0] = o.astype(o_ref.dtype)


def _proj_residual_kernel(a_ref, w_ref, bias_ref, res_ref, o_ref):
    # Fused head-merge (VMEM concat) + attention output projection + residual add.
    # a_ref: (1, H, S, Dh) bf16 ; w_ref: (D, D) bf16 ; res_ref: (1, S, D) f32
    merged = jnp.concatenate([a_ref[0, hh] for hh in range(NUM_HEADS)], axis=-1)
    y = jnp.dot(merged, w_ref[...], preferred_element_type=jnp.float32)
    o_ref[0] = (y + bias_ref[...] + res_ref[0]).astype(o_ref.dtype)


def _ln_fc1_gelu_kernel(x_ref, g_ref, b_ref, w_ref, bias_ref, o_ref):
    # Fused LN2 + fc1 + GELU.
    x = x_ref[0].astype(jnp.float32)
    h = _ln_f32(x, g_ref[...], b_ref[...])
    y = jnp.dot(h.astype(jnp.bfloat16), w_ref[...],
                preferred_element_type=jnp.float32)
    y = y + bias_ref[...]
    o_ref[0] = jax.nn.gelu(y, approximate=True).astype(o_ref.dtype)


def _fc2_residual_kernel(h_ref, w_ref, bias_ref, res_ref, o_ref):
    # Fused fc2 + residual add.
    y = jnp.dot(h_ref[0], w_ref[...], preferred_element_type=jnp.float32)
    o_ref[0] = (y + bias_ref[...] + res_ref[0]).astype(o_ref.dtype)


def _ln_head_kernel(x_ref, g_ref, b_ref, w_ref, bias_ref, feat_ref, logit_ref):
    # Fused final LayerNorm (cls token only) + per-task classifier; also emits
    # the normalized features (model returns them).
    x = x_ref[...].astype(jnp.float32)                        # (B, D)
    h = _ln_f32(x, g_ref[...], b_ref[...])
    feat_ref[...] = h.astype(feat_ref.dtype)
    y = jnp.dot(h.astype(jnp.bfloat16), w_ref[...],
                preferred_element_type=jnp.float32)
    logit_ref[...] = (y + bias_ref[...]).astype(logit_ref.dtype)


# ------------------------------- pallas wrappers -----------------------------------
def patch_embed(patches, w, b):
    """patches: (B, nP, C*P*P) -> (B, nP, D); grid over batch."""
    B, nP, K = patches.shape
    N = w.shape[1]
    return pl.pallas_call(
        _patch_linear_kernel,
        out_shape=jax.ShapeDtypeStruct((B, nP, N), jnp.float32),
        grid=(B,),
        in_specs=[pl.BlockSpec((1, nP, K), lambda bb: (bb, 0, 0)),
                  pl.BlockSpec((K, N), lambda bb: (0, 0)),
                  pl.BlockSpec((1, N), lambda bb: (0, 0))],
        out_specs=pl.BlockSpec((1, nP, N), lambda bb: (bb, 0, 0)),
        compiler_params=_PAR1,
    )(patches, w, b.reshape(1, N))


def ln_qkv(x, g, b, w_eff, bias):
    """x: (B, S, D) -> q, k, v each (B, H, S, Dh) bf16."""
    B, S, D = x.shape
    H, Dh = NUM_HEADS, HEAD_DIM
    qkv_struct = jax.ShapeDtypeStruct((B, H, S, Dh), jnp.bfloat16)
    out_spec = pl.BlockSpec((1, H, S, Dh), lambda bb: (bb, 0, 0, 0))
    return pl.pallas_call(
        _ln_qkv_split_kernel,
        out_shape=(qkv_struct, qkv_struct, qkv_struct),
        grid=(B,),
        in_specs=[pl.BlockSpec((1, S, D), lambda bb: (bb, 0, 0)),
                  pl.BlockSpec((1, D), lambda bb: (0, 0)),
                  pl.BlockSpec((1, D), lambda bb: (0, 0)),
                  pl.BlockSpec((D, 3 * D), lambda bb: (0, 0)),
                  pl.BlockSpec((1, 3 * D), lambda bb: (0, 0))],
        out_specs=(out_spec, out_spec, out_spec),
        compiler_params=_PAR1,
    )(x, g.reshape(1, D), b.reshape(1, D), w_eff, bias.reshape(1, 3 * D))


def attention(q, k, v):
    """q, k, v: (B, H, S, Dh) -> (B, H, S, Dh); grid over (batch, head)."""
    B, H, S, Dh = q.shape
    spec = pl.BlockSpec((1, 1, S, Dh), lambda bb, hh: (bb, hh, 0, 0))
    return pl.pallas_call(
        _attn_kernel,
        out_shape=jax.ShapeDtypeStruct((B, H, S, Dh), jnp.bfloat16),
        grid=(B, H),
        in_specs=[spec, spec, spec],
        out_specs=spec,
        compiler_params=_PAR2,
    )(q, k, v)


def proj_residual(attn, w, b, res):
    """attn: (B, H, S, Dh), res: (B, S, D) -> (B, S, D)."""
    B, H, S, Dh = attn.shape
    D = H * Dh
    return pl.pallas_call(
        _proj_residual_kernel,
        out_shape=jax.ShapeDtypeStruct((B, S, D), jnp.float32),
        grid=(B,),
        in_specs=[pl.BlockSpec((1, H, S, Dh), lambda bb: (bb, 0, 0, 0)),
                  pl.BlockSpec((D, D), lambda bb: (0, 0)),
                  pl.BlockSpec((1, D), lambda bb: (0, 0)),
                  pl.BlockSpec((1, S, D), lambda bb: (bb, 0, 0))],
        out_specs=pl.BlockSpec((1, S, D), lambda bb: (bb, 0, 0)),
        compiler_params=_PAR1,
    )(attn, w, b.reshape(1, D), res)


def ln_fc1_gelu(x, g, b, w, bias):
    """x: (B, S, D) -> (B, S, hidden) bf16 (fused LN + fc1 + GELU)."""
    B, S, D = x.shape
    N = w.shape[1]
    return pl.pallas_call(
        _ln_fc1_gelu_kernel,
        out_shape=jax.ShapeDtypeStruct((B, S, N), jnp.bfloat16),
        grid=(B,),
        in_specs=[pl.BlockSpec((1, S, D), lambda bb: (bb, 0, 0)),
                  pl.BlockSpec((1, D), lambda bb: (0, 0)),
                  pl.BlockSpec((1, D), lambda bb: (0, 0)),
                  pl.BlockSpec((D, N), lambda bb: (0, 0)),
                  pl.BlockSpec((1, N), lambda bb: (0, 0))],
        out_specs=pl.BlockSpec((1, S, N), lambda bb: (bb, 0, 0)),
        compiler_params=_PAR1,
    )(x, g.reshape(1, D), b.reshape(1, D), w, bias.reshape(1, N))


def fc2_residual(h, w, bias, res):
    """h: (B, S, hidden) bf16, res: (B, S, D) -> (B, S, D) (fused fc2 + residual)."""
    B, S, K = h.shape
    N = w.shape[1]
    return pl.pallas_call(
        _fc2_residual_kernel,
        out_shape=jax.ShapeDtypeStruct((B, S, N), jnp.float32),
        grid=(B,),
        in_specs=[pl.BlockSpec((1, S, K), lambda bb: (bb, 0, 0)),
                  pl.BlockSpec((K, N), lambda bb: (0, 0)),
                  pl.BlockSpec((1, N), lambda bb: (0, 0)),
                  pl.BlockSpec((1, S, N), lambda bb: (bb, 0, 0))],
        out_specs=pl.BlockSpec((1, S, N), lambda bb: (bb, 0, 0)),
        compiler_params=_PAR1,
    )(h, w, bias.reshape(1, N), res)


def ln_head(x_cls, g, b, w, bias):
    """x_cls: (B, D) -> (features (B, D), logits (B, C)); tiny, whole-array VMEM."""
    B, D = x_cls.shape
    C = w.shape[1]
    vmem = pl.BlockSpec(memory_space=pltpu.MemorySpace.VMEM)
    return pl.pallas_call(
        _ln_head_kernel,
        out_shape=(jax.ShapeDtypeStruct((B, D), jnp.float32),
                   jax.ShapeDtypeStruct((B, C), jnp.float32)),
        in_specs=[vmem, vmem, vmem, vmem, vmem],
        out_specs=(vmem, vmem),
    )(x_cls, g.reshape(1, D), b.reshape(1, D), w, bias.reshape(1, C))


# ----------------------------------- model -----------------------------------------
def block_forward(p, x, task_id):
    """One ViT block with per-task LoRA on qkv (folded into the weight)."""
    # Fold LoRA: W_eff = W_qkv + A_t @ B_t  -- tiny (D,r)@(r,3D) matmul in plain JAX,
    # amortized over every token; done once per block per forward.
    w_eff = (p["qkv_w"] + p["lora_a"][task_id] @ p["lora_b"][task_id]).astype(jnp.bfloat16)

    q, k, v = ln_qkv(x, p["ln1_g"], p["ln1_b"], w_eff, p["qkv_b"])     # fused LN1+qkv
    a = attention(q, k, v)                                             # per-(b,h) tiles
    x = proj_residual(a, p["proj_w"], p["proj_b"], x)                  # fused merge+proj+res

    h = ln_fc1_gelu(x, p["ln2_g"], p["ln2_b"], p["fc1_w"], p["fc1_b"])  # fused LN2+fc1+GELU
    x = fc2_residual(h, p["fc2_w"], p["fc2_b"], x)                      # fused fc2+res
    return x


def sinet_forward(params, image, task_id):
    """SiNet.forward(image, task_id) -> {'logits', 'features', 'prompt_loss'}."""
    B, C, Himg, Wimg = image.shape
    P = PATCH
    nH, nW = Himg // P, Wimg // P
    D = EMBED_DIM

    # patch_embed: 16x16 stride-16 conv == per-patch linear on flattened (C, P, P)
    patches = (image.reshape(B, C, nH, P, nW, P)
               .transpose(0, 2, 4, 1, 3, 5)
               .reshape(B, nH * nW, C * P * P))
    x = patch_embed(patches, params["patch_w"], params["patch_b"])     # (B, nP, D)

    # prepend cls token, add positional embedding (pos_drop is a no-op at drop=0)
    cls = jnp.broadcast_to(params["cls_token"], (B, 1, D)).astype(x.dtype)
    x = jnp.concatenate([cls, x], axis=1)
    S = x.shape[1]
    x = x + params["pos_embed"][:, :S, :]

    prompt_loss = jnp.zeros((1,), jnp.float32)

    for blk in params["blocks"]:
        x = block_forward(blk, x, task_id)

    # final LN on the cls token (== full-sequence LN then cls select) + task classifier
    head = params["classifier_pool"][task_id]
    feats, logits = ln_head(x[:, 0, :], params["norm_g"], params["norm_b"],
                            head["w"], head["b"])
    return {"logits": logits, "features": feats, "prompt_loss": prompt_loss}


# ------------------------------ parameter init --------------------------------------
def init_params(key):
    D = EMBED_DIM
    hidden = HIDDEN
    keys = iter(jax.random.split(key, 64))

    def nrm(shape, dtype=jnp.float32):
        return (jax.random.normal(next(keys), shape, jnp.float32) * 0.02).astype(dtype)

    params = {
        # matmul weights stored pre-cast to bf16 once (f32 accumulation in-kernel)
        "patch_w": nrm((IN_CHANS * PATCH * PATCH, D), jnp.bfloat16),
        "patch_b": jnp.zeros((D,), jnp.float32),
        "cls_token": nrm((1, 1, D)),
        "pos_embed": nrm((1, 1 + (IMG // PATCH) ** 2, D)),
        "norm_g": jnp.ones((D,), jnp.float32),
        "norm_b": jnp.zeros((D,), jnp.float32),
        "blocks": [],
        "classifier_pool": [],
    }
    for _ in range(DEPTH):
        params["blocks"].append({
            "ln1_g": jnp.ones((D,), jnp.float32),
            "ln1_b": jnp.zeros((D,), jnp.float32),
            "qkv_w": nrm((D, 3 * D)),                         # f32: LoRA folded per forward
            "qkv_b": jnp.zeros((3 * D,), jnp.float32),
            "lora_a": nrm((NUM_TASKS, D, RANK)),
            "lora_b": jnp.zeros((NUM_TASKS, RANK, 3 * D), jnp.float32),  # standard B=0 init
            "proj_w": nrm((D, D), jnp.bfloat16),
            "proj_b": jnp.zeros((D,), jnp.float32),
            "ln2_g": jnp.ones((D,), jnp.float32),
            "ln2_b": jnp.zeros((D,), jnp.float32),
            "fc1_w": nrm((D, hidden), jnp.bfloat16),
            "fc1_b": jnp.zeros((hidden,), jnp.float32),
            "fc2_w": nrm((hidden, D), jnp.bfloat16),
            "fc2_b": jnp.zeros((D,), jnp.float32),
        })
    for _ in range(NUM_TASKS):
        params["classifier_pool"].append({
            "w": nrm((D, NUM_CLASSES), jnp.bfloat16),
            "b": jnp.zeros((NUM_CLASSES,), jnp.float32),
        })
    return params


# ------------------------------------- main ------------------------------------------
if __name__ == "__main__":
    key = jax.random.PRNGKey(0)
    pkey, xkey = jax.random.split(key)
    params = init_params(pkey)

    image = jax.random.normal(xkey, (2, IN_CHANS, IMG, IMG), jnp.float32)
    task_id = 0

    fwd = jax.jit(sinet_forward, static_argnums=2)
    out = fwd(params, image, task_id)
    out = jax.block_until_ready(out)

    assert out["logits"].shape == (2, NUM_CLASSES)
    assert out["features"].shape == (2, EMBED_DIM)
    assert out["prompt_loss"].shape == (1,)
    assert bool(jnp.all(jnp.isfinite(out["logits"])))
    assert bool(jnp.all(jnp.isfinite(out["features"])))
    print("KERNEL_OK")
</pallas_src>

<mosaic_0001>
module attributes {stable_mosaic.version = 11 : i64} {
  func.func @_patch_linear_kernel(%arg0: i32, %arg1: memref<1x4x768xf32, #tpu.memory_space<vmem>>, %arg2: memref<768x128xbf16, #tpu.memory_space<vmem>>, %arg3: memref<1x128xf32, #tpu.memory_space<vmem>>, %arg4: memref<1x4x128xf32, #tpu.memory_space<vmem>>) attributes {dimension_semantics = [#tpu.dimension_semantics<parallel>], iteration_bounds = array<i64: 2>, scalar_prefetch = 0 : i64, scratch_operands = 0 : i64, tpu.core_type = #tpu.core_type<tc>, window_params = [{transform_indices = @transform_0, window_bounds = array<i64: 1, 4, 768>}, {pipeline_mode = #tpu.pipeline_mode<synchronous>, transform_indices = @transform_1, window_bounds = array<i64: 768, 128>}, {pipeline_mode = #tpu.pipeline_mode<synchronous>, transform_indices = @transform_2, window_bounds = array<i64: 1, 128>}, {transform_indices = @transform_3, window_bounds = array<i64: 1, 4, 128>}]} {
    %c0 = arith.constant 0 : index
    %c0_0 = arith.constant 0 : index
    %c0_1 = arith.constant 0 : index
    %0 = vector.load %arg1[%c0, %c0_0, %c0_1] : memref<1x4x768xf32, #tpu.memory_space<vmem>>, vector<1x4x768xf32>
    %1 = vector.shape_cast %0 : vector<1x4x768xf32> to vector<4x768xf32>
    %2 = arith.truncf %1 : vector<4x768xf32> to vector<4x768xbf16>
    %c0_2 = arith.constant 0 : index
    %c0_3 = arith.constant 0 : index
    %3 = vector.load %arg2[%c0_2, %c0_3] : memref<768x128xbf16, #tpu.memory_space<vmem>>, vector<768x128xbf16>
    %cst = arith.constant dense<0.000000e+00> : vector<4x128xf32>
    %4 = tpu.matmul %2, %3, %cst {dimension_numbers = #tpu.dot_dimension_numbers<[1], [0], [0], [1], [0, 0, 1, 1], [], []>} : vector<4x768xbf16>, vector<768x128xbf16>, vector<4x128xf32> -> vector<4x128xf32>
    %c0_4 = arith.constant 0 : index
    %c0_5 = arith.constant 0 : index
    %5 = vector.load %arg3[%c0_4, %c0_5] : memref<1x128xf32, #tpu.memory_space<vmem>>, vector<1x128xf32>
    %6 = vector.broadcast %5 : vector<1x128xf32> to vector<4x128xf32>
    %7 = arith.addf %4, %6 : vector<4x128xf32>
    %c0_6 = arith.constant 0 : index
    %c0_7 = arith.constant 0 : index
    %c0_8 = arith.constant 0 : index
    %8 = vector.load %arg4[%c0_6, %c0_7, %c0_8] : memref<1x4x128xf32, #tpu.memory_space<vmem>>, vector<1x4x128xf32>
    %9 = vector.shape_cast %8 : vector<1x4x128xf32> to vector<4x128xf32>
    %10 = vector.shape_cast %7 : vector<4x128xf32> to vector<1x4x128xf32>
    tpu.vector_store %arg4[%c0_6, %c0_7, %c0_8], %10 {strides = array<i32>} : memref<1x4x128xf32, #tpu.memory_space<vmem>>, vector<1x4x128xf32>,
    return
  }
  func.func @transform_0(%arg0: i32) -> (i32, i32, i32) {
    %c0_i32 = arith.constant 0 : i32
    %c0_i32_0 = arith.constant 0 : i32
    %c0_i32_1 = arith.constant 0 : i32
    return %arg0, %c0_i32, %c0_i32_0 : i32, i32, i32
  }
  func.func @transform_1(%arg0: i32) -> (i32, i32) {
    %c0_i32 = arith.constant 0 : i32
    %c0_i32_0 = arith.constant 0 : i32
    %c0_i32_1 = arith.constant 0 : i32
    return %c0_i32, %c0_i32_0 : i32, i32
  }
  func.func @transform_2(%arg0: i32) -> (i32, i32) {
    %c0_i32 = arith.constant 0 : i32
    %c0_i32_0 = arith.constant 0 : i32
    %c0_i32_1 = arith.constant 0 : i32
    return %c0_i32, %c0_i32_0 : i32, i32
  }
  func.func @transform_3(%arg0: i32) -> (i32, i32, i32) {
    %c0_i32 = arith.constant 0 : i32
    %c0_i32_0 = arith.constant 0 : i32
    %c0_i32_1 = arith.constant 0 : i32
    return %arg0, %c0_i32, %c0_i32_0 : i32, i32, i32
  }
}

module attributes {stable_mosaic.version = 11 : i64} {
  func.func @_ln_qkv_split_kernel(%arg0: i32, %arg1: memref<1x5x128xf32, #tpu.memory_space<vmem>>, %arg2: memref<1x128xf32, #tpu.memory_space<vmem>>, %arg3: memref<1x128xf32, #tpu.memory_space<vmem>>, %arg4: memref<128x384xbf16, #tpu.memory_space<vmem>>, %arg5: memref<1x384xf32, #tpu.memory_space<vmem>>, %arg6: memref<1x2x5x64xbf16, #tpu.memory_space<vmem>>, %arg7: memref<1x2x5x64xbf16, #tpu.memory_space<vmem>>, %arg8: memref<1x2x5x64xbf16, #tpu.memory_space<vmem>>) attributes {dimension_semantics = [#tpu.dimension_semantics<parallel>], iteration_bounds = array<i64: 2>, scalar_prefetch = 0 : i64, scratch_operands = 0 : i64, tpu.core_type = #tpu.core_type<tc>, window_params = [{transform_indices = @transform_0, window_bounds = array<i64: 1, 5, 128>}, {pipeline_mode = #tpu.pipeline_mode<synchronous>, transform_indices = @transform_1, window_bounds = array<i64: 1, 128>}, {pipeline_mode = #tpu.pipeline_mode<synchronous>, transform_indices = @transform_2, window_bounds = array<i64: 1, 128>}, {pipeline_mode = #tpu.pipeline_mode<synchronous>, transform_indices = @transform_3, window_bounds = array<i64: 128, 384>}, {pipeline_mode = #tpu.pipeline_mode<synchronous>, transform_indices = @transform_4, window_bounds = array<i64: 1, 384>}, {transform_indices = @transform_5, window_bounds = array<i64: 1, 2, 5, 64>}, {transform_indices = @transform_6, window_bounds = array<i64: 1, 2, 5, 64>}, {transform_indices = @transform_7, window_bounds = array<i64: 1, 2, 5, 64>}]} {
    %c0 = arith.constant 0 : index
    %c0_0 = arith.constant 0 : index
    %c0_1 = arith.constant 0 : index
    %0 = vector.load %arg1[%c0, %c0_0, %c0_1] : memref<1x5x128xf32, #tpu.memory_space<vmem>>, vector<1x5x128xf32>
    %1 = vector.shape_cast %0 : vector<1x5x128xf32> to vector<5x128xf32>
    %c0_2 = arith.constant 0 : index
    %c0_3 = arith.constant 0 : index
    %2 = vector.load %arg2[%c0_2, %c0_3] : memref<1x128xf32, #tpu.memory_space<vmem>>, vector<1x128xf32>
    %c0_4 = arith.constant 0 : index
    %c0_5 = arith.constant 0 : index
    %3 = vector.load %arg3[%c0_4, %c0_5] : memref<1x128xf32, #tpu.memory_space<vmem>>, vector<1x128xf32>
    %cst = arith.constant dense<0.000000e+00> : vector<5xf32>
    %4 = vector.multi_reduction <add>, %1, %cst [1] : vector<5x128xf32> to vector<5xf32>
    %5 = vector.shape_cast %4 : vector<5xf32> to vector<5x1xf32>
    %cst_6 = arith.constant 1.280000e+02 : f32
    %6 = vector.broadcast %cst_6 : f32 to vector<5x1xf32>
    %7 = arith.divf %5, %6 : vector<5x1xf32>
    %8 = vector.broadcast %7 : vector<5x1xf32> to vector<5x128xf32>
    %9 = arith.subf %1, %8 : vector<5x128xf32>
    %10 = arith.mulf %9, %9 : vector<5x128xf32>
    %cst_7 = arith.constant dense<0.000000e+00> : vector<5xf32>
    %11 = vector.multi_reduction <add>, %10, %cst_7 [1] : vector<5x128xf32> to vector<5xf32>
    %12 = vector.shape_cast %11 : vector<5xf32> to vector<5x1xf32>
    %cst_8 = arith.constant 1.280000e+02 : f32
    %13 = vector.broadcast %cst_8 : f32 to vector<5x1xf32>
    %14 = arith.divf %12, %13 : vector<5x1xf32>
    %15 = vector.broadcast %7 : vector<5x1xf32> to vector<5x128xf32>
    %16 = arith.subf %1, %15 : vector<5x128xf32>
    %cst_9 = arith.constant 9.99999997E-7 : f32
    %17 = vector.broadcast %cst_9 : f32 to vector<5x1xf32>
    %18 = arith.addf %14, %17 : vector<5x1xf32>
    %19 = math.rsqrt %18 : vector<5x1xf32>
    %20 = vector.broadcast %19 : vector<5x1xf32> to vector<5x128xf32>
    %21 = arith.mulf %16, %20 : vector<5x128xf32>
    %22 = vector.broadcast %2 : vector<1x128xf32> to vector<5x128xf32>
    %23 = arith.mulf %21, %22 : vector<5x128xf32>
    %24 = vector.broadcast %3 : vector<1x128xf32> to vector<5x128xf32>
    %25 = arith.addf %23, %24 : vector<5x128xf32>
    %26 = arith.truncf %25 : vector<5x128xf32> to vector<5x128xbf16>
    %c0_10 = arith.constant 0 : index
    %c0_11 = arith.constant 0 : index
    %27 = vector.load %arg4[%c0_10, %c0_11] : memref<128x384xbf16, #tpu.memory_space<vmem>>, vector<128x384xbf16>
    %cst_12 = arith.constant dense<0.000000e+00> : vector<5x384xf32>
    %28 = tpu.matmul %26, %27, %cst_12 {dimension_numbers = #tpu.dot_dimension_numbers<[1], [0], [0], [1], [0, 0, 1, 1], [], []>} : vector<5x128xbf16>, vector<128x384xbf16>, vector<5x384xf32> -> vector<5x384xf32>
    %c0_13 = arith.constant 0 : index
    %c0_14 = arith.constant 0 : index
    %29 = vector.load %arg5[%c0_13, %c0_14] : memref<1x384xf32, #tpu.memory_space<vmem>>, vector<1x384xf32>
    %30 = vector.broadcast %29 : vector<1x384xf32> to vector<5x384xf32>
    %31 = arith.addf %28, %30 : vector<5x384xf32>
    %32 = vector.extract_strided_slice %31 {offsets = [0, 0], sizes = [5, 64], strides = [1, 1]} : vector<5x384xf32> to vector<5x64xf32>
    %33 = arith.truncf %32 : vector<5x64xf32> to vector<5x64xbf16>
    %c0_15 = arith.constant 0 : index
    %c0_16 = arith.constant 0 : index
    %c0_17 = arith.constant 0 : index
    %c0_18 = arith.constant 0 : index
    %34 = vector.load %arg6[%c0_15, %c0_16, %c0_17, %c0_18] : memref<1x2x5x64xbf16, #tpu.memory_space<vmem>>, vector<1x1x5x64xbf16>
    %35 = vector.shape_cast %34 : vector<1x1x5x64xbf16> to vector<5x64xbf16>
    %36 = vector.shape_cast %33 : vector<5x64xbf16> to vector<1x1x5x64xbf16>
    tpu.vector_store %arg6[%c0_15, %c0_16, %c0_17, %c0_18], %36 {strides = array<i32>} : memref<1x2x5x64xbf16, #tpu.memory_space<vmem>>, vector<1x1x5x64xbf16>,
    %37 = vector.extract_strided_slice %31 {offsets = [0, 128], sizes = [5, 64], strides = [1, 1]} : vector<5x384xf32> to vector<5x64xf32>
    %38 = arith.truncf %37 : vector<5x64xf32> to vector<5x64xbf16>
    %c0_19 = arith.constant 0 : index
    %c0_20 = arith.constant 0 : index
    %c0_21 = arith.constant 0 : index
    %c0_22 = arith.constant 0 : index
    %39 = vector.load %arg7[%c0_19, %c0_20, %c0_21, %c0_22] : memref<1x2x5x64xbf16, #tpu.memory_space<vmem>>, vector<1x1x5x64xbf16>
    %40 = vector.shape_cast %39 : vector<1x1x5x64xbf16> to vector<5x64xbf16>
    %41 = vector.shape_cast %38 : vector<5x64xbf16> to vector<1x1x5x64xbf16>
    tpu.vector_store %arg7[%c0_19, %c0_20, %c0_21, %c0_22], %41 {strides = array<i32>} : memref<1x2x5x64xbf16, #tpu.memory_space<vmem>>, vector<1x1x5x64xbf16>,
    %42 = vector.extract_strided_slice %31 {offsets = [0, 256], sizes = [5, 64], strides = [1, 1]} : vector<5x384xf32> to vector<5x64xf32>
    %43 = arith.truncf %42 : vector<5x64xf32> to vector<5x64xbf16>
    %c0_23 = arith.constant 0 : index
    %c0_24 = arith.constant 0 : index
    %c0_25 = arith.constant 0 : index
    %c0_26 = arith.constant 0 : index
    %44 = vector.load %arg8[%c0_23, %c0_24, %c0_25, %c0_26] : memref<1x2x5x64xbf16, #tpu.memory_space<vmem>>, vector<1x1x5x64xbf16>
    %45 = vector.shape_cast %44 : vector<1x1x5x64xbf16> to vector<5x64xbf16>
    %46 = vector.shape_cast %43 : vector<5x64xbf16> to vector<1x1x5x64xbf16>
    tpu.vector_store %arg8[%c0_23, %c0_24, %c0_25, %c0_26], %46 {strides = array<i32>} : memref<1x2x5x64xbf16, #tpu.memory_space<vmem>>, vector<1x1x5x64xbf16>,
    %47 = vector.extract_strided_slice %31 {offsets = [0, 64], sizes = [5, 64], strides = [1, 1]} : vector<5x384xf32> to vector<5x64xf32>
    %48 = arith.truncf %47 : vector<5x64xf32> to vector<5x64xbf16>
    %c0_27 = arith.constant 0 : index
    %c1 = arith.constant 1 : index
    %c0_28 = arith.constant 0 : index
    %c0_29 = arith.constant 0 : index
    %49 = vector.load %arg6[%c0_27, %c1, %c0_28, %c0_29] : memref<1x2x5x64xbf16, #tpu.memory_space<vmem>>, vector<1x1x5x64xbf16>
    %50 = vector.shape_cast %49 : vector<1x1x5x64xbf16> to vector<5x64xbf16>
    %51 = vector.shape_cast %48 : vector<5x64xbf16> to vector<1x1x5x64xbf16>
    tpu.vector_store %arg6[%c0_27, %c1, %c0_28, %c0_29], %51 {strides = array<i32>} : memref<1x2x5x64xbf16, #tpu.memory_space<vmem>>, vector<1x1x5x64xbf16>,
    %52 = vector.extract_strided_slice %31 {offsets = [0, 192], sizes = [5, 64], strides = [1, 1]} : vector<5x384xf32> to vector<5x64xf32>
    %53 = arith.truncf %52 : vector<5x64xf32> to vector<5x64xbf16>
    %c0_30 = arith.constant 0 : index
    %c1_31 = arith.constant 1 : index
    %c0_32 = arith.constant 0 : index
    %c0_33 = arith.constant 0 : index
    %54 = vector.load %arg7[%c0_30, %c1_31, %c0_32, %c0_33] : memref<1x2x5x64xbf16, #tpu.memory_space<vmem>>, vector<1x1x5x64xbf16>
    %55 = vector.shape_cast %54 : vector<1x1x5x64xbf16> to vector<5x64xbf16>
    %56 = vector.shape_cast %53 : vector<5x64xbf16> to vector<1x1x5x64xbf16>
    tpu.vector_store %arg7[%c0_30, %c1_31, %c0_32, %c0_33], %56 {strides = array<i32>} : memref<1x2x5x64xbf16, #tpu.memory_space<vmem>>, vector<1x1x5x64xbf16>,
    %57 = vector.extract_strided_slice %31 {offsets = [0, 320], sizes = [5, 64], strides = [1, 1]} : vector<5x384xf32> to vector<5x64xf32>
    %58 = arith.truncf %57 : vector<5x64xf32> to vector<5x64xbf16>
    %c0_34 = arith.constant 0 : index
    %c1_35 = arith.constant 1 : index
    %c0_36 = arith.constant 0 : index
    %c0_37 = arith.constant 0 : index
    %59 = vector.load %arg8[%c0_34, %c1_35, %c0_36, %c0_37] : memref<1x2x5x64xbf16, #tpu.memory_space<vmem>>, vector<1x1x5x64xbf16>
    %60 = vector.shape_cast %59 : vector<1x1x5x64xbf16> to vector<5x64xbf16>
    %61 = vector.shape_cast %58 : vector<5x64xbf16> to vector<1x1x5x64xbf16>
    tpu.vector_store %arg8[%c0_34, %c1_35, %c0_36, %c0_37], %61 {strides = array<i32>} : memref<1x2x5x64xbf16, #tpu.memory_space<vmem>>, vector<1x1x5x64xbf16>,
    return
  }
  func.func @transform_0(%arg0: i32) -> (i32, i32, i32) {
    %c0_i32 = arith.constant 0 : i32
    %c0_i32_0 = arith.constant 0 : i32
    %c0_i32_1 = arith.constant 0 : i32
    return %arg0, %c0_i32, %c0_i32_0 : i32, i32, i32
  }
  func.func @transform_1(%arg0: i32) -> (i32, i32) {
    %c0_i32 = arith.constant 0 : i32
    %c0_i32_0 = arith.constant 0 : i32
    %c0_i32_1 = arith.constant 0 : i32
    return %c0_i32, %c0_i32_0 : i32, i32
  }
  func.func @transform_2(%arg0: i32) -> (i32, i32) {
    %c0_i32 = arith.constant 0 : i32
    %c0_i32_0 = arith.constant 0 : i32
    %c0_i32_1 = arith.constant 0 : i32
    return %c0_i32, %c0_i32_0 : i32, i32
  }
  func.func @transform_3(%arg0: i32) -> (i32, i32) {
    %c0_i32 = arith.constant 0 : i32
    %c0_i32_0 = arith.constant 0 : i32
    %c0_i32_1 = arith.constant 0 : i32
    return %c0_i32, %c0_i32_0 : i32, i32
  }
  func.func @transform_4(%arg0: i32) -> (i32, i32) {
    %c0_i32 = arith.constant 0 : i32
    %c0_i32_0 = arith.constant 0 : i32
    %c0_i32_1 = arith.constant 0 : i32
    return %c0_i32, %c0_i32_0 : i32, i32
  }
  func.func @transform_5(%arg0: i32) -> (i32, i32, i32, i32) {
    %c0_i32 = arith.constant 0 : i32
    %c0_i32_0 = arith.constant 0 : i32
    %c0_i32_1 = arith.constant 0 : i32
    %c0_i32_2 = arith.constant 0 : i32
    return %arg0, %c0_i32, %c0_i32_0, %c0_i32_1 : i32, i32, i32, i32
  }
  func.func @transform_6(%arg0: i32) -> (i32, i32, i32, i32) {
    %c0_i32 = arith.constant 0 : i32
    %c0_i32_0 = arith.constant 0 : i32
    %c0_i32_1 = arith.constant 0 : i32
    %c0_i32_2 = arith.constant 0 : i32
    return %arg0, %c0_i32, %c0_i32_0, %c0_i32_1 : i32, i32, i32, i32
  }
  func.func @transform_7(%arg0: i32) -> (i32, i32, i32, i32) {
    %c0_i32 = arith.constant 0 : i32
    %c0_i32_0 = arith.constant 0 : i32
    %c0_i32_1 = arith.constant 0 : i32
    %c0_i32_2 = arith.constant 0 : i32
    return %arg0, %c0_i32, %c0_i32_0, %c0_i32_1 : i32, i32, i32, i32
  }
}

module attributes {stable_mosaic.version = 11 : i64} {
  func.func @_attn_kernel(%arg0: i32, %arg1: i32, %arg2: memref<1x1x5x64xbf16, #tpu.memory_space<vmem>>, %arg3: memref<1x1x5x64xbf16, #tpu.memory_space<vmem>>, %arg4: memref<1x1x5x64xbf16, #tpu.memory_space<vmem>>, %arg5: memref<1x1x5x64xbf16, #tpu.memory_space<vmem>>) attributes {dimension_semantics = [#tpu.dimension_semantics<parallel>, #tpu.dimension_semantics<parallel>], iteration_bounds = array<i64: 2, 2>, scalar_prefetch = 0 : i64, scratch_operands = 0 : i64, tpu.core_type = #tpu.core_type<tc>, window_params = [{transform_indices = @transform_0, window_bounds = array<i64: 1, 1, 5, 64>}, {transform_indices = @transform_1, window_bounds = array<i64: 1, 1, 5, 64>}, {transform_indices = @transform_2, window_bounds = array<i64: 1, 1, 5, 64>}, {transform_indices = @transform_3, window_bounds = array<i64: 1, 1, 5, 64>}]} {
    %c0 = arith.constant 0 : index
    %c0_0 = arith.constant 0 : index
    %c0_1 = arith.constant 0 : index
    %c0_2 = arith.constant 0 : index
    %0 = vector.load %arg2[%c0, %c0_0, %c0_1, %c0_2] : memref<1x1x5x64xbf16, #tpu.memory_space<vmem>>, vector<1x1x5x64xbf16>
    %1 = vector.shape_cast %0 : vector<1x1x5x64xbf16> to vector<5x64xbf16>
    %c0_3 = arith.constant 0 : index
    %c0_4 = arith.constant 0 : index
    %c0_5 = arith.constant 0 : index
    %c0_6 = arith.constant 0 : index
    %2 = vector.load %arg3[%c0_3, %c0_4, %c0_5, %c0_6] : memref<1x1x5x64xbf16, #tpu.memory_space<vmem>>, vector<1x1x5x64xbf16>
    %3 = vector.shape_cast %2 : vector<1x1x5x64xbf16> to vector<5x64xbf16>
    %c0_7 = arith.constant 0 : index
    %c0_8 = arith.constant 0 : index
    %c0_9 = arith.constant 0 : index
    %c0_10 = arith.constant 0 : index
    %4 = vector.load %arg4[%c0_7, %c0_8, %c0_9, %c0_10] : memref<1x1x5x64xbf16, #tpu.memory_space<vmem>>, vector<1x1x5x64xbf16>
    %5 = vector.shape_cast %4 : vector<1x1x5x64xbf16> to vector<5x64xbf16>
    %cst = arith.constant dense<0.000000e+00> : vector<5x5xf32>
    %6 = tpu.matmul %1, %3, %cst {dimension_numbers = #tpu.dot_dimension_numbers<[1], [1], [0], [0], [0, 0, 1, 0], [], []>} : vector<5x64xbf16>, vector<5x64xbf16>, vector<5x5xf32> -> vector<5x5xf32>
    %cst_11 = arith.constant 1.250000e-01 : f32
    %7 = vector.broadcast %cst_11 : f32 to vector<5x5xf32>
    %8 = arith.mulf %6, %7 : vector<5x5xf32>
    %cst_12 = arith.constant dense<0xFF800000> : vector<5xf32>
    %9 = vector.multi_reduction <maximumf>, %8, %cst_12 [1] : vector<5x5xf32> to vector<5xf32>
    %10 = vector.shape_cast %9 : vector<5xf32> to vector<5x1xf32>
    %11 = vector.broadcast %10 : vector<5x1xf32> to vector<5x5xf32>
    %12 = arith.subf %8, %11 : vector<5x5xf32>
    %13 = math.exp %12 : vector<5x5xf32>
    %cst_13 = arith.constant dense<0.000000e+00> : vector<5xf32>
    %14 = vector.multi_reduction <add>, %13, %cst_13 [1] : vector<5x5xf32> to vector<5xf32>
    %15 = vector.shape_cast %14 : vector<5xf32> to vector<5x1xf32>
    %16 = tpu.reciprocal %15 {approx = true} : vector<5x1xf32> -> vector<5x1xf32>
    %17 = vector.broadcast %16 : vector<5x1xf32> to vector<5x5xf32>
    %18 = arith.mulf %13, %17 : vector<5x5xf32>
    %19 = arith.truncf %18 : vector<5x5xf32> to vector<5x5xbf16>
    %cst_14 = arith.constant dense<0.000000e+00> : vector<5x64xf32>
    %20 = tpu.matmul %19, %5, %cst_14 {dimension_numbers = #tpu.dot_dimension_numbers<[1], [0], [0], [1], [0, 0, 1, 1], [], []>} : vector<5x5xbf16>, vector<5x64xbf16>, vector<5x64xf32> -> vector<5x64xf32>
    %21 = arith.truncf %20 : vector<5x64xf32> to vector<5x64xbf16>
    %c0_15 = arith.constant 0 : index
    %c0_16 = arith.constant 0 : index
    %c0_17 = arith.constant 0 : index
    %c0_18 = arith.constant 0 : index
    %22 = vector.load %arg5[%c0_15, %c0_16, %c0_17, %c0_18] : memref<1x1x5x64xbf16, #tpu.memory_space<vmem>>, vector<1x1x5x64xbf16>
    %23 = vector.shape_cast %22 : vector<1x1x5x64xbf16> to vector<5x64xbf16>
    %24 = vector.shape_cast %21 : vector<5x64xbf16> to vector<1x1x5x64xbf16>
    tpu.vector_store %arg5[%c0_15, %c0_16, %c0_17, %c0_18], %24 {strides = array<i32>} : memref<1x1x5x64xbf16, #tpu.memory_space<vmem>>, vector<1x1x5x64xbf16>,
    return
  }
  func.func @transform_0(%arg0: i32, %arg1: i32) -> (i32, i32, i32, i32) {
    %c0_i32 = arith.constant 0 : i32
    %c0_i32_0 = arith.constant 0 : i32
    %c0_i32_1 = arith.constant 0 : i32
    return %arg0, %arg1, %c0_i32, %c0_i32_0 : i32, i32, i32, i32
  }
  func.func @transform_1(%arg0: i32, %arg1: i32) -> (i32, i32, i32, i32) {
    %c0_i32 = arith.constant 0 : i32
    %c0_i32_0 = arith.constant 0 : i32
    %c0_i32_1 = arith.constant 0 : i32
    return %arg0, %arg1, %c0_i32, %c0_i32_0 : i32, i32, i32, i32
  }
  func.func @transform_2(%arg0: i32, %arg1: i32) -> (i32, i32, i32, i32) {
    %c0_i32 = arith.constant 0 : i32
    %c0_i32_0 = arith.constant 0 : i32
    %c0_i32_1 = arith.constant 0 : i32
    return %arg0, %arg1, %c0_i32, %c0_i32_0 : i32, i32, i32, i32
  }
  func.func @transform_3(%arg0: i32, %arg1: i32) -> (i32, i32, i32, i32) {
    %c0_i32 = arith.constant 0 : i32
    %c0_i32_0 = arith.constant 0 : i32
    %c0_i32_1 = arith.constant 0 : i32
    return %arg0, %arg1, %c0_i32, %c0_i32_0 : i32, i32, i32, i32
  }
}

module attributes {stable_mosaic.version = 11 : i64} {
  func.func @_proj_residual_kernel(%arg0: i32, %arg1: memref<1x2x5x64xbf16, #tpu.memory_space<vmem>>, %arg2: memref<128x128xbf16, #tpu.memory_space<vmem>>, %arg3: memref<1x128xf32, #tpu.memory_space<vmem>>, %arg4: memref<1x5x128xf32, #tpu.memory_space<vmem>>, %arg5: memref<1x5x128xf32, #tpu.memory_space<vmem>>) attributes {dimension_semantics = [#tpu.dimension_semantics<parallel>], iteration_bounds = array<i64: 2>, scalar_prefetch = 0 : i64, scratch_operands = 0 : i64, tpu.core_type = #tpu.core_type<tc>, window_params = [{transform_indices = @transform_0, window_bounds = array<i64: 1, 2, 5, 64>}, {pipeline_mode = #tpu.pipeline_mode<synchronous>, transform_indices = @transform_1, window_bounds = array<i64: 128, 128>}, {pipeline_mode = #tpu.pipeline_mode<synchronous>, transform_indices = @transform_2, window_bounds = array<i64: 1, 128>}, {transform_indices = @transform_3, window_bounds = array<i64: 1, 5, 128>}, {transform_indices = @transform_4, window_bounds = array<i64: 1, 5, 128>}]} {
    %c0 = arith.constant 0 : index
    %c0_0 = arith.constant 0 : index
    %c0_1 = arith.constant 0 : index
    %c0_2 = arith.constant 0 : index
    %0 = vector.load %arg1[%c0, %c0_0, %c0_1, %c0_2] : memref<1x2x5x64xbf16, #tpu.memory_space<vmem>>, vector<1x1x5x64xbf16>
    %1 = vector.shape_cast %0 : vector<1x1x5x64xbf16> to vector<5x64xbf16>
    %c0_3 = arith.constant 0 : index
    %c1 = arith.constant 1 : index
    %c0_4 = arith.constant 0 : index
    %c0_5 = arith.constant 0 : index
    %2 = vector.load %arg1[%c0_3, %c1, %c0_4, %c0_5] : memref<1x2x5x64xbf16, #tpu.memory_space<vmem>>, vector<1x1x5x64xbf16>
    %3 = vector.shape_cast %2 : vector<1x1x5x64xbf16> to vector<5x64xbf16>
    %4 = tpu.concatenate %1, %3 in 1 : vector<5x64xbf16>, vector<5x64xbf16> -> vector<5x128xbf16>
    %c0_6 = arith.constant 0 : index
    %c0_7 = arith.constant 0 : index
    %5 = vector.load %arg2[%c0_6, %c0_7] : memref<128x128xbf16, #tpu.memory_space<vmem>>, vector<128x128xbf16>
    %cst = arith.constant dense<0.000000e+00> : vector<5x128xf32>
    %6 = tpu.matmul %4, %5, %cst {dimension_numbers = #tpu.dot_dimension_numbers<[1], [0], [0], [1], [0, 0, 1, 1], [], []>} : vector<5x128xbf16>, vector<128x128xbf16>, vector<5x128xf32> -> vector<5x128xf32>
    %c0_8 = arith.constant 0 : index
    %c0_9 = arith.constant 0 : index
    %7 = vector.load %arg3[%c0_8, %c0_9] : memref<1x128xf32, #tpu.memory_space<vmem>>, vector<1x128xf32>
    %8 = vector.broadcast %7 : vector<1x128xf32> to vector<5x128xf32>
    %9 = arith.addf %6, %8 : vector<5x128xf32>
    %c0_10 = arith.constant 0 : index
    %c0_11 = arith.constant 0 : index
    %c0_12 = arith.constant 0 : index
    %10 = vector.load %arg4[%c0_10, %c0_11, %c0_12] : memref<1x5x128xf32, #tpu.memory_space<vmem>>, vector<1x5x128xf32>
    %11 = vector.shape_cast %10 : vector<1x5x128xf32> to vector<5x128xf32>
    %12 = arith.addf %9, %11 : vector<5x128xf32>
    %c0_13 = arith.constant 0 : index
    %c0_14 = arith.constant 0 : index
    %c0_15 = arith.constant 0 : index
    %13 = vector.load %arg5[%c0_13, %c0_14, %c0_15] : memref<1x5x128xf32, #tpu.memory_space<vmem>>, vector<1x5x128xf32>
    %14 = vector.shape_cast %13 : vector<1x5x128xf32> to vector<5x128xf32>
    %15 = vector.shape_cast %12 : vector<5x128xf32> to vector<1x5x128xf32>
    tpu.vector_store %arg5[%c0_13, %c0_14, %c0_15], %15 {strides = array<i32>} : memref<1x5x128xf32, #tpu.memory_space<vmem>>, vector<1x5x128xf32>,
    return
  }
  func.func @transform_0(%arg0: i32) -> (i32, i32, i32, i32) {
    %c0_i32 = arith.constant 0 : i32
    %c0_i32_0 = arith.constant 0 : i32
    %c0_i32_1 = arith.constant 0 : i32
    %c0_i32_2 = arith.constant 0 : i32
    return %arg0, %c0_i32, %c0_i32_0, %c0_i32_1 : i32, i32, i32, i32
  }
  func.func @transform_1(%arg0: i32) -> (i32, i32) {
    %c0_i32 = arith.constant 0 : i32
    %c0_i32_0 = arith.constant 0 : i32
    %c0_i32_1 = arith.constant 0 : i32
    return %c0_i32, %c0_i32_0 : i32, i32
  }
  func.func @transform_2(%arg0: i32) -> (i32, i32) {
    %c0_i32 = arith.constant 0 : i32
    %c0_i32_0 = arith.constant 0 : i32
    %c0_i32_1 = arith.constant 0 : i32
    return %c0_i32, %c0_i32_0 : i32, i32
  }
  func.func @transform_3(%arg0: i32) -> (i32, i32, i32) {
    %c0_i32 = arith.constant 0 : i32
    %c0_i32_0 = arith.constant 0 : i32
    %c0_i32_1 = arith.constant 0 : i32
    return %arg0, %c0_i32, %c0_i32_0 : i32, i32, i32
  }
  func.func @transform_4(%arg0: i32) -> (i32, i32, i32) {
    %c0_i32 = arith.constant 0 : i32
    %c0_i32_0 = arith.constant 0 : i32
    %c0_i32_1 = arith.constant 0 : i32
    return %arg0, %c0_i32, %c0_i32_0 : i32, i32, i32
  }
}

module attributes {stable_mosaic.version = 11 : i64} {
  func.func @_ln_fc1_gelu_kernel(%arg0: i32, %arg1: memref<1x5x128xf32, #tpu.memory_space<vmem>>, %arg2: memref<1x128xf32, #tpu.memory_space<vmem>>, %arg3: memref<1x128xf32, #tpu.memory_space<vmem>>, %arg4: memref<128x512xbf16, #tpu.memory_space<vmem>>, %arg5: memref<1x512xf32, #tpu.memory_space<vmem>>, %arg6: memref<1x5x512xbf16, #tpu.memory_space<vmem>>) attributes {dimension_semantics = [#tpu.dimension_semantics<parallel>], iteration_bounds = array<i64: 2>, scalar_prefetch = 0 : i64, scratch_operands = 0 : i64, tpu.core_type = #tpu.core_type<tc>, window_params = [{transform_indices = @transform_0, window_bounds = array<i64: 1, 5, 128>}, {pipeline_mode = #tpu.pipeline_mode<synchronous>, transform_indices = @transform_1, window_bounds = array<i64: 1, 128>}, {pipeline_mode = #tpu.pipeline_mode<synchronous>, transform_indices = @transform_2, window_bounds = array<i64: 1, 128>}, {pipeline_mode = #tpu.pipeline_mode<synchronous>, transform_indices = @transform_3, window_bounds = array<i64: 128, 512>}, {pipeline_mode = #tpu.pipeline_mode<synchronous>, transform_indices = @transform_4, window_bounds = array<i64: 1, 512>}, {transform_indices = @transform_5, window_bounds = array<i64: 1, 5, 512>}]} {
    %c0 = arith.constant 0 : index
    %c0_0 = arith.constant 0 : index
    %c0_1 = arith.constant 0 : index
    %0 = vector.load %arg1[%c0, %c0_0, %c0_1] : memref<1x5x128xf32, #tpu.memory_space<vmem>>, vector<1x5x128xf32>
    %1 = vector.shape_cast %0 : vector<1x5x128xf32> to vector<5x128xf32>
    %c0_2 = arith.constant 0 : index
    %c0_3 = arith.constant 0 : index
    %2 = vector.load %arg2[%c0_2, %c0_3] : memref<1x128xf32, #tpu.memory_space<vmem>>, vector<1x128xf32>
    %c0_4 = arith.constant 0 : index
    %c0_5 = arith.constant 0 : index
    %3 = vector.load %arg3[%c0_4, %c0_5] : memref<1x128xf32, #tpu.memory_space<vmem>>, vector<1x128xf32>
    %cst = arith.constant dense<0.000000e+00> : vector<5xf32>
    %4 = vector.multi_reduction <add>, %1, %cst [1] : vector<5x128xf32> to vector<5xf32>
    %5 = vector.shape_cast %4 : vector<5xf32> to vector<5x1xf32>
    %cst_6 = arith.constant 1.280000e+02 : f32
    %6 = vector.broadcast %cst_6 : f32 to vector<5x1xf32>
    %7 = arith.divf %5, %6 : vector<5x1xf32>
    %8 = vector.broadcast %7 : vector<5x1xf32> to vector<5x128xf32>
    %9 = arith.subf %1, %8 : vector<5x128xf32>
    %10 = arith.mulf %9, %9 : vector<5x128xf32>
    %cst_7 = arith.constant dense<0.000000e+00> : vector<5xf32>
    %11 = vector.multi_reduction <add>, %10, %cst_7 [1] : vector<5x128xf32> to vector<5xf32>
    %12 = vector.shape_cast %11 : vector<5xf32> to vector<5x1xf32>
    %cst_8 = arith.constant 1.280000e+02 : f32
    %13 = vector.broadcast %cst_8 : f32 to vector<5x1xf32>
    %14 = arith.divf %12, %13 : vector<5x1xf32>
    %15 = vector.broadcast %7 : vector<5x1xf32> to vector<5x128xf32>
    %16 = arith.subf %1, %15 : vector<5x128xf32>
    %cst_9 = arith.constant 9.99999997E-7 : f32
    %17 = vector.broadcast %cst_9 : f32 to vector<5x1xf32>
    %18 = arith.addf %14, %17 : vector<5x1xf32>
    %19 = math.rsqrt %18 : vector<5x1xf32>
    %20 = vector.broadcast %19 : vector<5x1xf32> to vector<5x128xf32>
    %21 = arith.mulf %16, %20 : vector<5x128xf32>
    %22 = vector.broadcast %2 : vector<1x128xf32> to vector<5x128xf32>
    %23 = arith.mulf %21, %22 : vector<5x128xf32>
    %24 = vector.broadcast %3 : vector<1x128xf32> to vector<5x128xf32>
    %25 = arith.addf %23, %24 : vector<5x128xf32>
    %26 = arith.truncf %25 : vector<5x128xf32> to vector<5x128xbf16>
    %c0_10 = arith.constant 0 : index
    %c0_11 = arith.constant 0 : index
    %27 = vector.load %arg4[%c0_10, %c0_11] : memref<128x512xbf16, #tpu.memory_space<vmem>>, vector<128x512xbf16>
    %cst_12 = arith.constant dense<0.000000e+00> : vector<5x512xf32>
    %28 = tpu.matmul %26, %27, %cst_12 {dimension_numbers = #tpu.dot_dimension_numbers<[1], [0], [0], [1], [0, 0, 1, 1], [], []>} : vector<5x128xbf16>, vector<128x512xbf16>, vector<5x512xf32> -> vector<5x512xf32>
    %c0_13 = arith.constant 0 : index
    %c0_14 = arith.constant 0 : index
    %29 = vector.load %arg5[%c0_13, %c0_14] : memref<1x512xf32, #tpu.memory_space<vmem>>, vector<1x512xf32>
    %30 = vector.broadcast %29 : vector<1x512xf32> to vector<5x512xf32>
    %31 = arith.addf %28, %30 : vector<5x512xf32>
    %32 = arith.mulf %31, %31 : vector<5x512xf32>
    %33 = arith.mulf %31, %32 : vector<5x512xf32>
    %cst_15 = arith.constant 4.471500e-02 : f32
    %34 = vector.broadcast %cst_15 : f32 to vector<5x512xf32>
    %35 = arith.mulf %34, %33 : vector<5x512xf32>
    %36 = arith.addf %31, %35 : vector<5x512xf32>
    %cst_16 = arith.constant 0.797884583 : f32
    %37 = vector.broadcast %cst_16 : f32 to vector<5x512xf32>
    %38 = arith.mulf %37, %36 : vector<5x512xf32>
    %39 = math.tanh %38 : vector<5x512xf32>
    %cst_17 = arith.constant 1.000000e+00 : f32
    %40 = vector.broadcast %cst_17 : f32 to vector<5x512xf32>
    %41 = arith.addf %40, %39 : vector<5x512xf32>
    %cst_18 = arith.constant 5.000000e-01 : f32
    %42 = vector.broadcast %cst_18 : f32 to vector<5x512xf32>
    %43 = arith.mulf %42, %41 : vector<5x512xf32>
    %44 = arith.mulf %31, %43 : vector<5x512xf32>
    %45 = arith.truncf %44 : vector<5x512xf32> to vector<5x512xbf16>
    %c0_19 = arith.constant 0 : index
    %c0_20 = arith.constant 0 : index
    %c0_21 = arith.constant 0 : index
    %46 = vector.load %arg6[%c0_19, %c0_20, %c0_21] : memref<1x5x512xbf16, #tpu.memory_space<vmem>>, vector<1x5x512xbf16>
    %47 = vector.shape_cast %46 : vector<1x5x512xbf16> to vector<5x512xbf16>
    %48 = vector.shape_cast %45 : vector<5x512xbf16> to vector<1x5x512xbf16>
    tpu.vector_store %arg6[%c0_19, %c0_20, %c0_21], %48 {strides = array<i32>} : memref<1x5x512xbf16, #tpu.memory_space<vmem>>, vector<1x5x512xbf16>,
    return
  }
  func.func @transform_0(%arg0: i32) -> (i32, i32, i32) {
    %c0_i32 = arith.constant 0 : i32
    %c0_i32_0 = arith.constant 0 : i32
    %c0_i32_1 = arith.constant 0 : i32
    return %arg0, %c0_i32, %c0_i32_0 : i32, i32, i32
  }
  func.func @transform_1(%arg0: i32) -> (i32, i32) {
    %c0_i32 = arith.constant 0 : i32
    %c0_i32_0 = arith.constant 0 : i32
    %c0_i32_1 = arith.constant 0 : i32
    return %c0_i32, %c0_i32_0 : i32, i32
  }
  func.func @transform_2(%arg0: i32) -> (i32, i32) {
    %c0_i32 = arith.constant 0 : i32
    %c0_i32_0 = arith.constant 0 : i32
    %c0_i32_1 = arith.constant 0 : i32
    return %c0_i32, %c0_i32_0 : i32, i32
  }
  func.func @transform_3(%arg0: i32) -> (i32, i32) {
    %c0_i32 = arith.constant 0 : i32
    %c0_i32_0 = arith.constant 0 : i32
    %c0_i32_1 = arith.constant 0 : i32
    return %c0_i32, %c0_i32_0 : i32, i32
  }
  func.func @transform_4(%arg0: i32) -> (i32, i32) {
    %c0_i32 = arith.constant 0 : i32
    %c0_i32_0 = arith.constant 0 : i32
    %c0_i32_1 = arith.constant 0 : i32
    return %c0_i32, %c0_i32_0 : i32, i32
  }
  func.func @transform_5(%arg0: i32) -> (i32, i32, i32) {
    %c0_i32 = arith.constant 0 : i32
    %c0_i32_0 = arith.constant 0 : i32
    %c0_i32_1 = arith.constant 0 : i32
    return %arg0, %c0_i32, %c0_i32_0 : i32, i32, i32
  }
}

module attributes {stable_mosaic.version = 11 : i64} {
  func.func @_fc2_residual_kernel(%arg0: i32, %arg1: memref<1x5x512xbf16, #tpu.memory_space<vmem>>, %arg2: memref<512x128xbf16, #tpu.memory_space<vmem>>, %arg3: memref<1x128xf32, #tpu.memory_space<vmem>>, %arg4: memref<1x5x128xf32, #tpu.memory_space<vmem>>, %arg5: memref<1x5x128xf32, #tpu.memory_space<vmem>>) attributes {dimension_semantics = [#tpu.dimension_semantics<parallel>], iteration_bounds = array<i64: 2>, scalar_prefetch = 0 : i64, scratch_operands = 0 : i64, tpu.core_type = #tpu.core_type<tc>, window_params = [{transform_indices = @transform_0, window_bounds = array<i64: 1, 5, 512>}, {pipeline_mode = #tpu.pipeline_mode<synchronous>, transform_indices = @transform_1, window_bounds = array<i64: 512, 128>}, {pipeline_mode = #tpu.pipeline_mode<synchronous>, transform_indices = @transform_2, window_bounds = array<i64: 1, 128>}, {transform_indices = @transform_3, window_bounds = array<i64: 1, 5, 128>}, {transform_indices = @transform_4, window_bounds = array<i64: 1, 5, 128>}]} {
    %c0 = arith.constant 0 : index
    %c0_0 = arith.constant 0 : index
    %c0_1 = arith.constant 0 : index
    %0 = vector.load %arg1[%c0, %c0_0, %c0_1] : memref<1x5x512xbf16, #tpu.memory_space<vmem>>, vector<1x5x512xbf16>
    %1 = vector.shape_cast %0 : vector<1x5x512xbf16> to vector<5x512xbf16>
    %c0_2 = arith.constant 0 : index
    %c0_3 = arith.constant 0 : index
    %2 = vector.load %arg2[%c0_2, %c0_3] : memref<512x128xbf16, #tpu.memory_space<vmem>>, vector<512x128xbf16>
    %cst = arith.constant dense<0.000000e+00> : vector<5x128xf32>
    %3 = tpu.matmul %1, %2, %cst {dimension_numbers = #tpu.dot_dimension_numbers<[1], [0], [0], [1], [0, 0, 1, 1], [], []>} : vector<5x512xbf16>, vector<512x128xbf16>, vector<5x128xf32> -> vector<5x128xf32>
    %c0_4 = arith.constant 0 : index
    %c0_5 = arith.constant 0 : index
    %4 = vector.load %arg3[%c0_4, %c0_5] : memref<1x128xf32, #tpu.memory_space<vmem>>, vector<1x128xf32>
    %5 = vector.broadcast %4 : vector<1x128xf32> to vector<5x128xf32>
    %6 = arith.addf %3, %5 : vector<5x128xf32>
    %c0_6 = arith.constant 0 : index
    %c0_7 = arith.constant 0 : index
    %c0_8 = arith.constant 0 : index
    %7 = vector.load %arg4[%c0_6, %c0_7, %c0_8] : memref<1x5x128xf32, #tpu.memory_space<vmem>>, vector<1x5x128xf32>
    %8 = vector.shape_cast %7 : vector<1x5x128xf32> to vector<5x128xf32>
    %9 = arith.addf %6, %8 : vector<5x128xf32>
    %c0_9 = arith.constant 0 : index
    %c0_10 = arith.constant 0 : index
    %c0_11 = arith.constant 0 : index
    %10 = vector.load %arg5[%c0_9, %c0_10, %c0_11] : memref<1x5x128xf32, #tpu.memory_space<vmem>>, vector<1x5x128xf32>
    %11 = vector.shape_cast %10 : vector<1x5x128xf32> to vector<5x128xf32>
    %12 = vector.shape_cast %9 : vector<5x128xf32> to vector<1x5x128xf32>
    tpu.vector_store %arg5[%c0_9, %c0_10, %c0_11], %12 {strides = array<i32>} : memref<1x5x128xf32, #tpu.memory_space<vmem>>, vector<1x5x128xf32>,
    return
  }
  func.func @transform_0(%arg0: i32) -> (i32, i32, i32) {
    %c0_i32 = arith.constant 0 : i32
    %c0_i32_0 = arith.constant 0 : i32
    %c0_i32_1 = arith.constant 0 : i32
    return %arg0, %c0_i32, %c0_i32_0 : i32, i32, i32
  }
  func.func @transform_1(%arg0: i32) -> (i32, i32) {
    %c0_i32 = arith.constant 0 : i32
    %c0_i32_0 = arith.constant 0 : i32
    %c0_i32_1 = arith.constant 0 : i32
    return %c0_i32, %c0_i32_0 : i32, i32
  }
  func.func @transform_2(%arg0: i32) -> (i32, i32) {
    %c0_i32 = arith.constant 0 : i32
    %c0_i32_0 = arith.constant 0 : i32
    %c0_i32_1 = arith.constant 0 : i32
    return %c0_i32, %c0_i32_0 : i32, i32
  }
  func.func @transform_3(%arg0: i32) -> (i32, i32, i32) {
    %c0_i32 = arith.constant 0 : i32
    %c0_i32_0 = arith.constant 0 : i32
    %c0_i32_1 = arith.constant 0 : i32
    return %arg0, %c0_i32, %c0_i32_0 : i32, i32, i32
  }
  func.func @transform_4(%arg0: i32) -> (i32, i32, i32) {
    %c0_i32 = arith.constant 0 : i32
    %c0_i32_0 = arith.constant 0 : i32
    %c0_i32_1 = arith.constant 0 : i32
    return %arg0, %c0_i32, %c0_i32_0 : i32, i32, i32
  }
}

module attributes {stable_mosaic.version = 11 : i64} {
  func.func @_ln_head_kernel(%arg0: memref<2x128xf32, #tpu.memory_space<vmem>>, %arg1: memref<1x128xf32, #tpu.memory_space<vmem>>, %arg2: memref<1x128xf32, #tpu.memory_space<vmem>>, %arg3: memref<128x10xbf16, #tpu.memory_space<vmem>>, %arg4: memref<1x10xf32, #tpu.memory_space<vmem>>, %arg5: memref<2x128xf32, #tpu.memory_space<vmem>>, %arg6: memref<2x10xf32, #tpu.memory_space<vmem>>) attributes {dimension_semantics = [], scalar_prefetch = 0 : i64, scratch_operands = 0 : i64, tpu.core_type = #tpu.core_type<tc>} {
    %c0 = arith.constant 0 : index
    %c0_0 = arith.constant 0 : index
    %0 = vector.load %arg0[%c0, %c0_0] : memref<2x128xf32, #tpu.memory_space<vmem>>, vector<2x128xf32>
    %c0_1 = arith.constant 0 : index
    %c0_2 = arith.constant 0 : index
    %1 = vector.load %arg1[%c0_1, %c0_2] : memref<1x128xf32, #tpu.memory_space<vmem>>, vector<1x128xf32>
    %c0_3 = arith.constant 0 : index
    %c0_4 = arith.constant 0 : index
    %2 = vector.load %arg2[%c0_3, %c0_4] : memref<1x128xf32, #tpu.memory_space<vmem>>, vector<1x128xf32>
    %cst = arith.constant dense<0.000000e+00> : vector<2xf32>
    %3 = vector.multi_reduction <add>, %0, %cst [1] : vector<2x128xf32> to vector<2xf32>
    %4 = vector.shape_cast %3 : vector<2xf32> to vector<2x1xf32>
    %cst_5 = arith.constant 1.280000e+02 : f32
    %5 = vector.broadcast %cst_5 : f32 to vector<2x1xf32>
    %6 = arith.divf %4, %5 : vector<2x1xf32>
    %7 = vector.broadcast %6 : vector<2x1xf32> to vector<2x128xf32>
    %8 = arith.subf %0, %7 : vector<2x128xf32>
    %9 = arith.mulf %8, %8 : vector<2x128xf32>
    %cst_6 = arith.constant dense<0.000000e+00> : vector<2xf32>
    %10 = vector.multi_reduction <add>, %9, %cst_6 [1] : vector<2x128xf32> to vector<2xf32>
    %11 = vector.shape_cast %10 : vector<2xf32> to vector<2x1xf32>
    %cst_7 = arith.constant 1.280000e+02 : f32
    %12 = vector.broadcast %cst_7 : f32 to vector<2x1xf32>
    %13 = arith.divf %11, %12 : vector<2x1xf32>
    %14 = vector.broadcast %6 : vector<2x1xf32> to vector<2x128xf32>
    %15 = arith.subf %0, %14 : vector<2x128xf32>
    %cst_8 = arith.constant 9.99999997E-7 : f32
    %16 = vector.broadcast %cst_8 : f32 to vector<2x1xf32>
    %17 = arith.addf %13, %16 : vector<2x1xf32>
    %18 = math.rsqrt %17 : vector<2x1xf32>
    %19 = vector.broadcast %18 : vector<2x1xf32> to vector<2x128xf32>
    %20 = arith.mulf %15, %19 : vector<2x128xf32>
    %21 = vector.broadcast %1 : vector<1x128xf32> to vector<2x128xf32>
    %22 = arith.mulf %20, %21 : vector<2x128xf32>
    %23 = vector.broadcast %2 : vector<1x128xf32> to vector<2x128xf32>
    %24 = arith.addf %22, %23 : vector<2x128xf32>
    %c0_9 = arith.constant 0 : index
    %c0_10 = arith.constant 0 : index
    %25 = vector.load %arg5[%c0_9, %c0_10] : memref<2x128xf32, #tpu.memory_space<vmem>>, vector<2x128xf32>
    tpu.vector_store %arg5[%c0_9, %c0_10], %24 {strides = array<i32>} : memref<2x128xf32, #tpu.memory_space<vmem>>, vector<2x128xf32>,
    %26 = arith.truncf %24 : vector<2x128xf32> to vector<2x128xbf16>
    %c0_11 = arith.constant 0 : index
    %c0_12 = arith.constant 0 : index
    %27 = vector.load %arg3[%c0_11, %c0_12] : memref<128x10xbf16, #tpu.memory_space<vmem>>, vector<128x10xbf16>
    %cst_13 = arith.constant dense<0.000000e+00> : vector<2x10xf32>
    %28 = tpu.matmul %26, %27, %cst_13 {dimension_numbers = #tpu.dot_dimension_numbers<[1], [0], [0], [1], [0, 0, 1, 1], [], []>} : vector<2x128xbf16>, vector<128x10xbf16>, vector<2x10xf32> -> vector<2x10xf32>
    %c0_14 = arith.constant 0 : index
    %c0_15 = arith.constant 0 : index
    %29 = vector.load %arg4[%c0_14, %c0_15] : memref<1x10xf32, #tpu.memory_space<vmem>>, vector<1x10xf32>
    %30 = vector.broadcast %29 : vector<1x10xf32> to vector<2x10xf32>
    %31 = arith.addf %28, %30 : vector<2x10xf32>
    %c0_16 = arith.constant 0 : index
    %c0_17 = arith.constant 0 : index
    %32 = vector.load %arg6[%c0_16, %c0_17] : memref<2x10xf32, #tpu.memory_space<vmem>>, vector<2x10xf32>
    tpu.vector_store %arg6[%c0_16, %c0_17], %31 {strides = array<i32>} : memref<2x10xf32, #tpu.memory_space<vmem>>, vector<2x10xf32>,
    return
  }
}

</mosaic_0001>

<llo_original>
// kernel: sinet_forward.12
$region0: #{sinet_forward.12}
  #allocation0 [shape = 'u32[]', space=smem, size = 0x4, offset = 0x4, fixed_abs, tag = 'smem constant byte address 0x4 - core index']
  #allocation1 [shape = 'u32[144,128]{1,0:T(1,128)}', space=vmem, size = 0x12000, scoped, tag = 'internal scratch']
  %s0 = inlined_call_operand.vmem [shape: f32[2,4,768], index: 0, kind: input, shape index: {}]
  %s1 = inlined_call_operand.vmem [shape: bf16[768,128], index: 1, kind: input, shape index: {}]
  %s2 = inlined_call_operand.vmem [shape: f32[1,128], index: 2, kind: input, shape index: {}]
  %s3 = inlined_call_operand.vmem [shape: f32[2,4,128], index: 3, kind: output, shape index: {}]
  %s4 = sld [smem:[#allocation0]]
  $region45: #{sinet_forward.12} parent=0
    _
  %s6 = ssub.s32 1, %s4
  %s7 = scalar_select 0, %s6, %s4
  loop: start=0, step=1, limit=4
  $region2: #{sinet_forward.12} parent=0 // loop_pre_header
    _
  $region3: #{sinet_forward.12} parent=0 // loop_header
    %s9 = sphi 0, %s13
    %p10 = scmp.ge.s32.totalorder %s9, 4
    %s19 = sphi 0, %s21
    %s22 = sphi 0, %s19
    %s23 = sphi 0, %s22
    %s39 = sphi 0, %s23
    %s43 = sphi 0, %s43
    %s45 = sphi 0, %s43
    %s46 = sphi 0, %s45
    %s60 = sphi 0, %s46
    %s64 = sphi 0, %s64
    %s66 = sphi 0, %s64
    %s67 = sphi 0, %s66
    %s81 = sphi 0, %s67
    %s87 = sphi 0, %s89
    %s90 = sphi 0, %s87
    %s91 = sphi 0, %s90
    %s107 = sphi 0, %s91
  $region4: #{sinet_forward.12} parent=0 // loop_header_branch
    %12 = sbr.rel (%p10) target = $region8
  $region5: #{sinet_forward.12} parent=0 // loop_body
    %s14 = ssub.s32 %s9, 1
    %s15 = ssub.s32 %s9, 2
    %s16 = sadd.s32 %s9, 1
    %s17 = ssub.s32 %s9, %s16
    %p18 = scmp.eq.s32.totalorder %s17, 0
    %s20 = sadd.s32 %s19, 1
    %s21 = scalar_select %p18, %s19, %s20
    %p24 = pneg %p18
    %p25 = scmp.eq.s32.totalorder %s9, 1
    %p26 = por %p24, %p25
    %p27 = scmp.ne.s32.totalorder %s19, %s22
    %p28 = scmp.eq.s32.totalorder %s9, 0
    %p29 = por %p27, %p28
    %p30 = scmp.ne.s32.totalorder %s19, %s22
    %p31 = scmp.eq.s32.totalorder %s14, 1
    %p32 = por %p30, %p31
    %p33 = scmp.ne.s32.totalorder %s22, %s23
    %p34 = scmp.eq.s32.totalorder %s14, 0
    %p35 = por %p33, %p34
    %p36 = scmp.ne.s32.totalorder %s22, %s23
    %p37 = scmp.eq.s32.totalorder %s15, 1
    %p38 = por %p36, %p37
    %p40 = scmp.ne.s32.totalorder %s23, %s39
    %p41 = scmp.eq.s32.totalorder %s15, 0
    %p42 = por %p40, %p41
    %s44 = sadd.s32 %s43, 1
    %p47 = scmp.eq.s32.totalorder %s9, 1
    %p48 = scmp.ne.s32.totalorder %s43, %s45
    %p49 = scmp.eq.s32.totalorder %s9, 0
    %p50 = por %p48, %p49
    %p51 = scmp.ne.s32.totalorder %s43, %s45
    %p52 = scmp.eq.s32.totalorder %s14, 1
    %p53 = por %p51, %p52
    %p54 = scmp.ne.s32.totalorder %s45, %s46
    %p55 = scmp.eq.s32.totalorder %s14, 0
    %p56 = por %p54, %p55
    %p57 = scmp.ne.s32.totalorder %s45, %s46
    %p58 = scmp.eq.s32.totalorder %s15, 1
    %p59 = por %p57, %p58
    %p61 = scmp.ne.s32.totalorder %s46, %s60
    %p62 = scmp.eq.s32.totalorder %s15, 0
    %p63 = por %p61, %p62
    %s65 = sadd.s32 %s64, 1
    %p68 = scmp.eq.s32.totalorder %s9, 1
    %p69 = scmp.ne.s32.totalorder %s64, %s66
    %p70 = scmp.eq.s32.totalorder %s9, 0
    %p71 = por %p69, %p70
    %p72 = scmp.ne.s32.totalorder %s64, %s66
    %p73 = scmp.eq.s32.totalorder %s14, 1
    %p74 = por %p72, %p73
    %p75 = scmp.ne.s32.totalorder %s66, %s67
    %p76 = scmp.eq.s32.totalorder %s14, 0
    %p77 = por %p75, %p76
    %p78 = scmp.ne.s32.totalorder %s66, %s67
    %p79 = scmp.eq.s32.totalorder %s15, 1
    %p80 = por %p78, %p79
    %p82 = scmp.ne.s32.totalorder %s67, %s81
    %p83 = scmp.eq.s32.totalorder %s15, 0
    %p84 = por %p82, %p83
    %s85 = ssub.s32 %s9, %s16
    %p86 = scmp.eq.s32.totalorder %s85, 0
    %s88 = sadd.s32 %s87, 1
    %s89 = scalar_select %p86, %s87, %s88
    %p92 = pneg %p86
    %p93 = scmp.eq.s32.totalorder %s9, 1
    %p94 = por %p92, %p93
    %p95 = scmp.ne.s32.totalorder %s87, %s90
    %p96 = scmp.eq.s32.totalorder %s9, 0
    %p97 = por %p95, %p96
    %p98 = scmp.ne.s32.totalorder %s87, %s90
    %p99 = scmp.eq.s32.totalorder %s14, 1
    %p100 = por %p98, %p99
    %p101 = scmp.ne.s32.totalorder %s90, %s91
    %p102 = scmp.eq.s32.totalorder %s14, 0
    %p103 = por %p101, %p102
    %p104 = scmp.ne.s32.totalorder %s90, %s91
    %p105 = scmp.eq.s32.totalorder %s15, 1
    %p106 = por %p104, %p105
    %p108 = scmp.ne.s32.totalorder %s91, %s107
    %p109 = scmp.eq.s32.totalorder %s15, 0
    %p110 = por %p108, %p109
    %p111 = scmp.le.s32.totalorder 1, %s9
    %p112 = scmp.lt.s32.totalorder %s9, 3
    %p113 = pnand %p111, %p112
    %p114 = pneg %p113
    // Predicated region
    $region9: #{sinet_forward.12} parent=5 // pred_check
      _
    $region10: #{sinet_forward.12} parent=5 // pred_check_branch
      %116 = sbr.rel (%p113) target = $region12
    $region11: #{sinet_forward.12} parent=5 // pred_region
      %s117 = ssub.s32 %s9, 1
      // Predicated region
      $region13: #{sinet_forward.12} parent=11 // pred_check
        %p118 = pneg %p56
      $region14: #{sinet_forward.12} parent=11 // pred_check_branch
        %120 = sbr.rel (%p118) target = $region16
      $region15: #{sinet_forward.12} parent=11 // pred_region
        _
      $region16: #{sinet_forward.12} parent=11 // pred_fallthru
        _
      // Predicated region
      $region17: #{sinet_forward.12} parent=11 // pred_check
        %p121 = pneg %p77
      $region18: #{sinet_forward.12} parent=11 // pred_check_branch
        %123 = sbr.rel (%p121) target = $region20
      $region19: #{sinet_forward.12} parent=11 // pred_region
        _
      $region20: #{sinet_forward.12} parent=11 // pred_fallthru
        _
    $region12: #{sinet_forward.12} parent=5 // pred_fallthru
      _
    %p124 = scmp.lt.s32.totalorder %s9, 2
    // Predicated region
    $region21: #{sinet_forward.12} parent=5 // pred_check
      %p125 = pneg %p124
    $region22: #{sinet_forward.12} parent=5 // pred_check_branch
      %127 = sbr.rel (%p125) target = $region24
    $region23: #{sinet_forward.12} parent=5 // pred_region
      // Predicated region
      $region25: #{sinet_forward.12} parent=23 // pred_check
        %p128 = pneg %p29
      $region26: #{sinet_forward.12} parent=23 // pred_check_branch
        %130 = sbr.rel (%p128) target = $region28
      $region27: #{sinet_forward.12} parent=23 // pred_region
        %p131 = scmp.lt.s32.totalorder %s9, 1
        %s132 = scalar_select %p131, %s9, 1
        %s133 = smul.addr %s132, 6
        %s134 = smul.addr %s133, 4
        %s135 = scalar_lea.vmem %s0, %s134
      $region28: #{sinet_forward.12} parent=23 // pred_fallthru
        _
    $region24: #{sinet_forward.12} parent=5 // pred_fallthru
      _
    %p136 = scmp.le.s32.totalorder 1, %s9
    %p137 = scmp.lt.s32.totalorder %s9, 3
    %p138 = pnand %p136, %p137
    %p139 = pneg %p138
    // Predicated region
    $region29: #{sinet_forward.12} parent=5 // pred_check
      _
    $region30: #{sinet_forward.12} parent=5 // pred_check_branch
      %141 = sbr.rel (%p138) target = $region32
    $region31: #{sinet_forward.12} parent=5 // pred_region
      %s142 = ssub.s32 %s9, 1
      %p143 = scmp.lt.s32.totalorder %s14, 1
      %s144 = scalar_select %p143, %s14, 1
      %s145 = smul.addr %s144, 6
      %s146 = smul.addr %s145, 4
      %s147 = scalar_lea.vmem %s0, %s146
      %p148 = pneg %p35
      %p149 = pneg %p32
      %p150 = pneg %p56
      %p151 = pneg %p53
      %p152 = pneg %p77
      %p153 = pneg %p74
      %p154 = pneg %p103
      %p155 = pneg %p100
      %p156 = scmp.lt.s32.totalorder %s14, 1
      %s157 = scalar_select %p156, %s14, 1
      %s158 = smul.addr %s157, 4
      %s159 = scalar_lea.vmem %s3, %s158
      %p160 = scmp.lt.s32.totalorder %s14, 1
      %s161 = scalar_select %p160, %s14, 1
      %s162 = smul.addr %s161, 6
      %s163 = smul.addr %s162, 4
      %s164 = scalar_lea.vmem %s0, %s163
      %p165 = scmp.lt.s32.totalorder %s14, 1
      %s166 = scalar_select %p165, %s14, 1
      %s167 = smul.addr %s166, 4
      %s168 = scalar_lea.vmem %s3, %s167
      %v170 = vld [vmem:[%s164] sm:$0xff]
      %v171 = vld [vmem:[%s164 + $0x8] sm:$0xff]
      %v172 = vld [vmem:[%s164 + $0x10] sm:$0xff]
      %v176 = vcombine.high %v170, %v170
      %v177 = vcombine.high %v171, %v171
      %v178 = vcombine.high %v172, %v172
      %v182 = vpack.c.bf16 %v170, %v170
      %v183 = vpack.c.bf16 %v176, %v176
      %v184 = vpack.c.bf16 %v171, %v171
      %v185 = vpack.c.bf16 %v177, %v177
      %v186 = vpack.c.bf16 %v172, %v172
      %v187 = vpack.c.bf16 %v178, %v178
      %v188 = vld [vmem:[%s1] sm:$0xf]
      %v189 = vld [vmem:[%s1 + $0x4] sm:$0xf]
      %v190 = vld [vmem:[%s1 + $0x8] sm:$0xf]
      %v191 = vld [vmem:[%s1 + $0xc] sm:$0xf]
      %v192 = vld [vmem:[%s1 + $0x10] sm:$0xf]
      %v193 = vld [vmem:[%s1 + $0x14] sm:$0xf]
      %v194 = vld [vmem:[%s1 + $0x18] sm:$0xf]
      %v195 = vld [vmem:[%s1 + $0x1c] sm:$0xf]
      %v196 = vld [vmem:[%s1 + $0x20] sm:$0xf]
      %v197 = vld [vmem:[%s1 + $0x24] sm:$0xf]
      %v198 = vld [vmem:[%s1 + $0x28] sm:$0xf]
      %v199 = vld [vmem:[%s1 + $0x2c] sm:$0xf]
      %v200 = vld [vmem:[%s1 + $0x30] sm:$0xf]
      %v201 = vld [vmem:[%s1 + $0x34] sm:$0xf]
      %v202 = vld [vmem:[%s1 + $0x38] sm:$0xf]
      %v203 = vld [vmem:[%s1 + $0x3c] sm:$0xf]
      %v204 = vld [vmem:[%s1 + $0x40] sm:$0xf]
      %v205 = vld [vmem:[%s1 + $0x44] sm:$0xf]
      %v206 = vld [vmem:[%s1 + $0x48] sm:$0xf]
      %v207 = vld [vmem:[%s1 + $0x4c] sm:$0xf]
      %v208 = vld [vmem:[%s1 + $0x50] sm:$0xf]
      %v209 = vld [vmem:[%s1 + $0x54] sm:$0xf]
      %v210 = vld [vmem:[%s1 + $0x58] sm:$0xf]
      %v211 = vld [vmem:[%s1 + $0x5c] sm:$0xf]
      %v212 = vld [vmem:[%s1 + $0x60] sm:$0xf]
      %v213 = vld [vmem:[%s1 + $0x64] sm:$0xf]
      %v214 = vld [vmem:[%s1 + $0x68] sm:$0xf]
      %v215 = vld [vmem:[%s1 + $0x6c] sm:$0xf]
      %v216 = vld [vmem:[%s1 + $0x70] sm:$0xf]
      %v217 = vld [vmem:[%s1 + $0x74] sm:$0xf]
      %v218 = vld [vmem:[%s1 + $0x78] sm:$0xf]
      %v219 = vld [vmem:[%s1 + $0x7c] sm:$0xf]
      %v220 = vld [vmem:[%s1 + $0x80] sm:$0xf]
      %v221 = vld [vmem:[%s1 + $0x84] sm:$0xf]
      %v222 = vld [vmem:[%s1 + $0x88] sm:$0xf]
      %v223 = vld [vmem:[%s1 + $0x8c] sm:$0xf]
      %v224 = vld [vmem:[%s1 + $0x90] sm:$0xf]
      %v225 = vld [vmem:[%s1 + $0x94] sm:$0xf]
      %v226 = vld [vmem:[%s1 + $0x98] sm:$0xf]
      %v227 = vld [vmem:[%s1 + $0x9c] sm:$0xf]
      %v228 = vld [vmem:[%s1 + $0xa0] sm:$0xf]
      %v229 = vld [vmem:[%s1 + $0xa4] sm:$0xf]
      %v230 = vld [vmem:[%s1 + $0xa8] sm:$0xf]
      %v231 = vld [vmem:[%s1 + $0xac] sm:$0xf]
      %v232 = vld [vmem:[%s1 + $0xb0] sm:$0xf]
      %v233 = vld [vmem:[%s1 + $0xb4] sm:$0xf]
      %v234 = vld [vmem:[%s1 + $0xb8] sm:$0xf]
      %v235 = vld [vmem:[%s1 + $0xbc] sm:$0xf]
      %v236 = vld [vmem:[%s1 + $0xc0] sm:$0xf]
      %v237 = vld [vmem:[%s1 + $0xc4] sm:$0xf]
      %v238 = vld [vmem:[%s1 + $0xc8] sm:$0xf]
      %v239 = vld [vmem:[%s1 + $0xcc] sm:$0xf]
      %v240 = vld [vmem:[%s1 + $0xd0] sm:$0xf]
      %v241 = vld [vmem:[%s1 + $0xd4] sm:$0xf]
      %v242 = vld [vmem:[%s1 + $0xd8] sm:$0xf]
      %v243 = vld [vmem:[%s1 + $0xdc] sm:$0xf]
      %v244 = vld [vmem:[%s1 + $0xe0] sm:$0xf]
      %v245 = vld [vmem:[%s1 + $0xe4] sm:$0xf]
      %v246 = vld [vmem:[%s1 + $0xe8] sm:$0xf]
      %v247 = vld [vmem:[%s1 + $0xec] sm:$0xf]
      %v248 = vld [vmem:[%s1 + $0xf0] sm:$0xf]
      %v249 = vld [vmem:[%s1 + $0xf4] sm:$0xf]
      %v250 = vld [vmem:[%s1 + $0xf8] sm:$0xf]
      %v251 = vld [vmem:[%s1 + $0xfc] sm:$0xf]
      %v252 = vld [vmem:[%s1 + $0x100] sm:$0xf]
      %v253 = vld [vmem:[%s1 + $0x104] sm:$0xf]
      %v254 = vld [vmem:[%s1 + $0x108] sm:$0xf]
      %v255 = vld [vmem:[%s1 + $0x10c] sm:$0xf]
      %v256 = vld [vmem:[%s1 + $0x110] sm:$0xf]
      %v257 = vld [vmem:[%s1 + $0x114] sm:$0xf]
      %v258 = vld [vmem:[%s1 + $0x118] sm:$0xf]
      %v259 = vld [vmem:[%s1 + $0x11c] sm:$0xf]
      %v260 = vld [vmem:[%s1 + $0x120] sm:$0xf]
      %v261 = vld [vmem:[%s1 + $0x124] sm:$0xf]
      %v262 = vld [vmem:[%s1 + $0x128] sm:$0xf]
      %v263 = vld [vmem:[%s1 + $0x12c] sm:$0xf]
      %v264 = vld [vmem:[%s1 + $0x130] sm:$0xf]
      %v265 = vld [vmem:[%s1 + $0x134] sm:$0xf]
      %v266 = vld [vmem:[%s1 + $0x138] sm:$0xf]
      %v267 = vld [vmem:[%s1 + $0x13c] sm:$0xf]
      %v268 = vld [vmem:[%s1 + $0x140] sm:$0xf]
      %v269 = vld [vmem:[%s1 + $0x144] sm:$0xf]
      %v270 = vld [vmem:[%s1 + $0x148] sm:$0xf]
      %v271 = vld [vmem:[%s1 + $0x14c] sm:$0xf]
      %v272 = vld [vmem:[%s1 + $0x150] sm:$0xf]
      %v273 = vld [vmem:[%s1 + $0x154] sm:$0xf]
      %v274 = vld [vmem:[%s1 + $0x158] sm:$0xf]
      %v275 = vld [vmem:[%s1 + $0x15c] sm:$0xf]
      %v276 = vld [vmem:[%s1 + $0x160] sm:$0xf]
      %v277 = vld [vmem:[%s1 + $0x164] sm:$0xf]
      %v278 = vld [vmem:[%s1 + $0x168] sm:$0xf]
      %v279 = vld [vmem:[%s1 + $0x16c] sm:$0xf]
      %v280 = vld [vmem:[%s1 + $0x170] sm:$0xf]
      %v281 = vld [vmem:[%s1 + $0x174] sm:$0xf]
      %v282 = vld [vmem:[%s1 + $0x178] sm:$0xf]
      %v283 = vld [vmem:[%s1 + $0x17c] sm:$0xf]
      %v284 = vld [vmem:[%s2] sm:$0x1]
      %v286 = vlaneseq
      %v287 = vshrl.u32 %v286, 7
      %v288 = vsub.s32 0, %v287
      %v289 = vrot.slane %v284, %v288
      %v387 = vunpack.c.l.b16 %v188
      %v388 = vunpack.c.l.b16 %v189
      %v389 = vunpack.c.l.b16 %v190
      %v390 = vunpack.c.l.b16 %v191
      %v391 = vunpack.c.l.b16 %v192
      %v392 = vunpack.c.l.b16 %v193
      %v393 = vunpack.c.l.b16 %v194
      %v394 = vunpack.c.l.b16 %v195
      %v395 = vunpack.c.l.b16 %v196
      %v396 = vunpack.c.l.b16 %v197
      %v397 = vunpack.c.l.b16 %v198
      %v398 = vunpack.c.l.b16 %v199
      %v399 = vunpack.c.l.b16 %v200
      %v400 = vunpack.c.l.b16 %v201
      %v401 = vunpack.c.l.b16 %v202
      %v402 = vunpack.c.l.b16 %v203
      %v403 = vunpack.c.l.b16 %v204
      %v404 = vunpack.c.l.b16 %v205
      %v405 = vunpack.c.l.b16 %v206
      %v406 = vunpack.c.l.b16 %v207
      %v407 = vunpack.c.l.b16 %v208
      %v408 = vunpack.c.l.b16 %v209
      %v409 = vunpack.c.l.b16 %v210
      %v410 = vunpack.c.l.b16 %v211
      %v411 = vunpack.c.l.b16 %v212
      %v412 = vunpack.c.l.b16 %v213
      %v413 = vunpack.c.l.b16 %v214
      %v414 = vunpack.c.l.b16 %v215
      %v415 = vunpack.c.l.b16 %v216
      %v416 = vunpack.c.l.b16 %v217
      %v417 = vunpack.c.l.b16 %v218
      %v418 = vunpack.c.l.b16 %v219
      %v419 = vunpack.c.l.b16 %v220
      %v420 = vunpack.c.l.b16 %v221
      %v421 = vunpack.c.l.b16 %v222
      %v422 = vunpack.c.l.b16 %v223
      %v423 = vunpack.c.l.b16 %v224
      %v424 = vunpack.c.l.b16 %v225
      %v425 = vunpack.c.l.b16 %v226
      %v426 = vunpack.c.l.b16 %v227
      %v427 = vunpack.c.l.b16 %v228
      %v428 = vunpack.c.l.b16 %v229
      %v429 = vunpack.c.l.b16 %v230
      %v430 = vunpack.c.l.b16 %v231
      %v431 = vunpack.c.l.b16 %v232
      %v432 = vunpack.c.l.b16 %v233
      %v433 = vunpack.c.l.b16 %v234
      %v434 = vunpack.c.l.b16 %v235
      %v435 = vunpack.c.l.b16 %v236
      %v436 = vunpack.c.l.b16 %v237
      %v437 = vunpack.c.l.b16 %v238
      %v438 = vunpack.c.l.b16 %v239
      %v439 = vunpack.c.l.b16 %v240
      %v440 = vunpack.c.l.b16 %v241
      %v441 = vunpack.c.l.b16 %v242
      %v442 = vunpack.c.l.b16 %v243
      %v443 = vunpack.c.l.b16 %v244
      %v444 = vunpack.c.l.b16 %v245
      %v445 = vunpack.c.l.b16 %v246
      %v446 = vunpack.c.l.b16 %v247
      %v447 = vunpack.c.l.b16 %v248
      %v448 = vunpack.c.l.b16 %v249
      %v449 = vunpack.c.l.b16 %v250
      %v450 = vunpack.c.l.b16 %v251
      %v451 = vunpack.c.l.b16 %v252
      %v452 = vunpack.c.l.b16 %v253
      %v453 = vunpack.c.l.b16 %v254
      %v454 = vunpack.c.l.b16 %v255
      %v455 = vunpack.c.l.b16 %v256
      %v456 = vunpack.c.l.b16 %v257
      %v457 = vunpack.c.l.b16 %v258
      %v458 = vunpack.c.l.b16 %v259
      %v459 = vunpack.c.l.b16 %v260
      %v460 = vunpack.c.l.b16 %v261
      %v461 = vunpack.c.l.b16 %v262
      %v462 = vunpack.c.l.b16 %v263
      %v463 = vunpack.c.l.b16 %v264
      %v464 = vunpack.c.l.b16 %v265
      %v465 = vunpack.c.l.b16 %v266
      %v466 = vunpack.c.l.b16 %v267
      %v467 = vunpack.c.l.b16 %v268
      %v468 = vunpack.c.l.b16 %v269
      %v469 = vunpack.c.l.b16 %v270
      %v470 = vunpack.c.l.b16 %v271
      %v471 = vunpack.c.l.b16 %v272
      %v472 = vunpack.c.l.b16 %v273
      %v473 = vunpack.c.l.b16 %v274
      %v474 = vunpack.c.l.b16 %v275
      %v475 = vunpack.c.l.b16 %v276
      %v476 = vunpack.c.l.b16 %v277
      %v477 = vunpack.c.l.b16 %v278
      %v478 = vunpack.c.l.b16 %v279
      %v479 = vunpack.c.l.b16 %v280
      %v480 = vunpack.c.l.b16 %v281
      %v481 = vunpack.c.l.b16 %v282
      %v482 = vunpack.c.l.b16 %v283
      %v483 = vpack.c.b16 %v388, %v387
      %v484 = vpack.c.b16 %v390, %v389
      %v485 = vpack.c.b16 %v392, %v391
      %v486 = vpack.c.b16 %v394, %v393
      %v487 = vpack.c.b16 %v396, %v395
      %v488 = vpack.c.b16 %v398, %v397
      %v489 = vpack.c.b16 %v400, %v399
      %v490 = vpack.c.b16 %v402, %v401
      %v491 = vpack.c.b16 %v404, %v403
      %v492 = vpack.c.b16 %v406, %v405
      %v493 = vpack.c.b16 %v408, %v407
      %v494 = vpack.c.b16 %v410, %v409
      %v495 = vpack.c.b16 %v412, %v411
      %v496 = vpack.c.b16 %v414, %v413
      %v497 = vpack.c.b16 %v416, %v415
      %v498 = vpack.c.b16 %v418, %v417
      %v499 = vpack.c.b16 %v420, %v419
      %v500 = vpack.c.b16 %v422, %v421
      %v501 = vpack.c.b16 %v424, %v423
      %v502 = vpack.c.b16 %v426, %v425
      %v503 = vpack.c.b16 %v428, %v427
      %v504 = vpack.c.b16 %v430, %v429
      %v505 = vpack.c.b16 %v432, %v431
      %v506 = vpack.c.b16 %v434, %v433
      %v507 = vpack.c.b16 %v436, %v435
      %v508 = vpack.c.b16 %v438, %v437
      %v509 = vpack.c.b16 %v440, %v439
      %v510 = vpack.c.b16 %v442, %v441
      %v511 = vpack.c.b16 %v444, %v443
      %v512 = vpack.c.b16 %v446, %v445
      %v513 = vpack.c.b16 %v448, %v447
      %v514 = vpack.c.b16 %v450, %v449
      %v515 = vpack.c.b16 %v452, %v451
      %v516 = vpack.c.b16 %v454, %v453
      %v517 = vpack.c.b16 %v456, %v455
      %v518 = vpack.c.b16 %v458, %v457
      %v519 = vpack.c.b16 %v460, %v459
      %v520 = vpack.c.b16 %v462, %v461
      %v521 = vpack.c.b16 %v464, %v463
      %v522 = vpack.c.b16 %v466, %v465
      %v523 = vpack.c.b16 %v468, %v467
      %v524 = vpack.c.b16 %v470, %v469
      %v525 = vpack.c.b16 %v472, %v471
      %v526 = vpack.c.b16 %v474, %v473
      %v527 = vpack.c.b16 %v476, %v475
      %v528 = vpack.c.b16 %v478, %v477
      %v529 = vpack.c.b16 %v480, %v479
      %v530 = vpack.c.b16 %v482, %v481
      %579 = vmatprep.subr.bf16.mxu0 0
      %580 = vmatpush1.bf16.msra.mxu0 %v483
      %581 = vmatprep.subr.bf16.mxu0 0
      %582 = vmatpush1.bf16.msra.mxu0 %v484
      %583 = vmatprep.subr.bf16.mxu0 0
      %584 = vmatpush1.bf16.msra.mxu0 %v485
      %585 = vmatprep.subr.bf16.mxu0 0
      %586 = vmatpush1.bf16.msra.mxu0 %v486
      %587 = vmatprep.subr.bf16.mxu0 0
      %588 = vmatpush1.bf16.msra.mxu0 %v487
      %589 = vmatprep.subr.bf16.mxu0 0
      %590 = vmatpush1.bf16.msra.mxu0 %v488
      %591 = vmatprep.subr.bf16.mxu0 0
      %592 = vmatpush1.bf16.msra.mxu0 %v489
      %593 = vmatprep.subr.bf16.mxu0 0
      %594 = vmatpush1.bf16.msra.mxu0 %v490
      %595 = vmatprep.subr.bf16.mxu0 0
      %596 = vmatpush1.bf16.msra.mxu0 %v491
      %597 = vmatprep.subr.bf16.mxu0 0
      %598 = vmatpush1.bf16.msra.mxu0 %v492
      %599 = vmatprep.subr.bf16.mxu0 0
      %600 = vmatpush1.bf16.msra.mxu0 %v493
      %601 = vmatprep.subr.bf16.mxu0 0
      %602 = vmatpush1.bf16.msra.mxu0 %v494
      %603 = vmatprep.subr.bf16.mxu0 0
      %604 = vmatpush1.bf16.msra.mxu0 %v495
      %605 = vmatprep.subr.bf16.mxu0 0
      %606 = vmatpush1.bf16.msra.mxu0 %v496
      %607 = vmatprep.subr.bf16.mxu0 0
      %608 = vmatpush1.bf16.msra.mxu0 %v497
      %609 = vmatprep.subr.bf16.mxu0 0
      %610 = vmatpush1.bf16.msra.mxu0 %v498
      %611 = vmatprep.mubr.bf16.mxu0 %v183
      %612 = vmatmul.mubr.bf16.gmra.mrb[0].mxu0 %v182
      %v613 = vpop.f32.mrb[0].mxu0
      %v614 = vadd.f32 %v289, %v613
      %v615 = vpop.f32.mrb[0].mxu0
      %v616 = vpop.f32.mrb[0].mxu0
      %v617 = vpop.f32.mrb[0].mxu0
      %618 = vdwg.mxu0
      %619 = vmatprep.subr.bf16.mxu0 0
      %620 = vmatpush1.bf16.msra.mxu0 %v499
      %621 = vmatprep.subr.bf16.mxu0 0
      %622 = vmatpush1.bf16.msra.mxu0 %v500
      %623 = vmatprep.subr.bf16.mxu0 0
      %624 = vmatpush1.bf16.msra.mxu0 %v501
      %625 = vmatprep.subr.bf16.mxu0 0
      %626 = vmatpush1.bf16.msra.mxu0 %v502
      %627 = vmatprep.subr.bf16.mxu0 0
      %628 = vmatpush1.bf16.msra.mxu0 %v503
      %629 = vmatprep.subr.bf16.mxu0 0
      %630 = vmatpush1.bf16.msra.mxu0 %v504
      %631 = vmatprep.subr.bf16.mxu0 0
      %632 = vmatpush1.bf16.msra.mxu0 %v505
      %633 = vmatprep.subr.bf16.mxu0 0
      %634 = vmatpush1.bf16.msra.mxu0 %v506
      %635 = vmatprep.subr.bf16.mxu0 0
      %636 = vmatpush1.bf16.msra.mxu0 %v507
      %637 = vmatprep.subr.bf16.mxu0 0
      %638 = vmatpush1.bf16.msra.mxu0 %v508
      %639 = vmatprep.subr.bf16.mxu0 0
      %640 = vmatpush1.bf16.msra.mxu0 %v509
      %641 = vmatprep.subr.bf16.mxu0 0
      %642 = vmatpush1.bf16.msra.mxu0 %v510
      %643 = vmatprep.subr.bf16.mxu0 0
      %644 = vmatpush1.bf16.msra.mxu0 %v511
      %645 = vmatprep.subr.bf16.mxu0 0
      %646 = vmatpush1.bf16.msra.mxu0 %v512
      %647 = vmatprep.subr.bf16.mxu0 0
      %648 = vmatpush1.bf16.msra.mxu0 %v513
      %649 = vmatprep.subr.bf16.mxu0 0
      %650 = vmatpush1.bf16.msra.mxu0 %v514
      %651 = vmatprep.mubr.bf16.mxu0 %v185
      %652 = vmatmul.mubr.bf16.gmra.mrb[0].mxu0 %v184
      %v653 = vpop.f32.mrb[0].mxu0
      %v654 = vadd.f32 %v614, %v653
      %v655 = vpop.f32.mrb[0].mxu0
      %v656 = vpop.f32.mrb[0].mxu0
      %v657 = vpop.f32.mrb[0].mxu0
      %658 = vdwg.mxu0
      %659 = vmatprep.subr.bf16.mxu0 0
      %660 = vmatpush1.bf16.msra.mxu0 %v515
      %661 = vmatprep.subr.bf16.mxu0 0
      %662 = vmatpush1.bf16.msra.mxu0 %v516
      %663 = vmatprep.subr.bf16.mxu0 0
      %664 = vmatpush1.bf16.msra.mxu0 %v517
      %665 = vmatprep.subr.bf16.mxu0 0
      %666 = vmatpush1.bf16.msra.mxu0 %v518
      %667 = vmatprep.subr.bf16.mxu0 0
      %668 = vmatpush1.bf16.msra.mxu0 %v519
      %669 = vmatprep.subr.bf16.mxu0 0
      %670 = vmatpush1.bf16.msra.mxu0 %v520
      %671 = vmatprep.subr.bf16.mxu0 0
      %672 = vmatpush1.bf16.msra.mxu0 %v521
      %673 = vmatprep.subr.bf16.mxu0 0
      %674 = vmatpush1.bf16.msra.mxu0 %v522
      %675 = vmatprep.subr.bf16.mxu0 0
      %676 = vmatpush1.bf16.msra.mxu0 %v523
      %677 = vmatprep.subr.bf16.mxu0 0
      %678 = vmatpush1.bf16.msra.mxu0 %v524
      %679 = vmatprep.subr.bf16.mxu0 0
      %680 = vmatpush1.bf16.msra.mxu0 %v525
      %681 = vmatprep.subr.bf16.mxu0 0
      %682 = vmatpush1.bf16.msra.mxu0 %v526
      %683 = vmatprep.subr.bf16.mxu0 0
      %684 = vmatpush1.bf16.msra.mxu0 %v527
      %685 = vmatprep.subr.bf16.mxu0 0
      %686 = vmatpush1.bf16.msra.mxu0 %v528
      %687 = vmatprep.subr.bf16.mxu0 0
      %688 = vmatpush1.bf16.msra.mxu0 %v529
      %689 = vmatprep.subr.bf16.mxu0 0
      %690 = vmatpush1.bf16.msra.mxu0 %v530
      %691 = vmatprep.mubr.bf16.mxu0 %v187
      %692 = vmatmul.mubr.bf16.gmra.mrb[0].mxu0 %v186
      %v693 = vpop.f32.mrb[0].mxu0
      %v694 = vadd.f32 %v654, %v693
      %v695 = vpop.f32.mrb[0].mxu0
      %v696 = vpop.f32.mrb[0].mxu0
      %v697 = vpop.f32.mrb[0].mxu0
      %698 = vdwg.mxu0
      %699 = vst [vmem:[%s168] sm:$0xf] %v694
      %p700 = scmp.lt.s32.totalorder %s14, 1
      %s701 = scalar_select %p700, %s14, 1
      %s702 = smul.addr %s701, 4
      %s703 = scalar_lea.vmem %s3, %s702
      // Predicated region
      $region33: #{sinet_forward.12} parent=31 // pred_check
        %p704 = pneg %p100
      $region34: #{sinet_forward.12} parent=31 // pred_check_branch
        %706 = sbr.rel (%p704) target = $region36
      $region35: #{sinet_forward.12} parent=31 // pred_region
        _
      $region36: #{sinet_forward.12} parent=31 // pred_fallthru
        _
    $region32: #{sinet_forward.12} parent=5 // pred_fallthru
      _
    %p707 = scmp.le.s32.totalorder 2, %s9
    // Predicated region
    $region37: #{sinet_forward.12} parent=5 // pred_check
      %p708 = pneg %p707
    $region38: #{sinet_forward.12} parent=5 // pred_check_branch
      %710 = sbr.rel (%p708) target = $region40
    $region39: #{sinet_forward.12} parent=5 // pred_region
      %s711 = ssub.s32 %s9, 2
      // Predicated region
      $region41: #{sinet_forward.12} parent=39 // pred_check
        %p712 = pneg %p106
      $region42: #{sinet_forward.12} parent=39 // pred_check_branch
        %714 = sbr.rel (%p712) target = $region44
      $region43: #{sinet_forward.12} parent=39 // pred_region
        %p715 = scmp.lt.s32.totalorder %s15, 1
        %s716 = scalar_select %p715, %s15, 1
        %s717 = smul.addr %s716, 4
        %s718 = scalar_lea.vmem %s3, %s717
      $region44: #{sinet_forward.12} parent=39 // pred_fallthru
        _
    $region40: #{sinet_forward.12} parent=5 // pred_fallthru
      _
  $region6: #{sinet_forward.12} parent=0 // loop_footer
    %s13 = sadd.s32 1, %s9
  $region7: #{sinet_forward.12} parent=0 // loop_footer_branch
    %8 = sbr.rel target = $region3
  $region8: #{sinet_forward.12} parent=0 // loop_exit
    _

// kernel: sinet_forward.14
$region0: #{sinet_forward.14}
  #allocation0 [shape = 'u32[]', space=smem, size = 0x4, offset = 0x4, fixed_abs, tag = 'smem constant byte address 0x4 - core index']
  #allocation1 [shape = 'u32[144,128]{1,0:T(1,128)}', space=vmem, size = 0x12000, scoped, tag = 'internal scratch']
  %s0 = inlined_call_operand.vmem [shape: bf16[2,2,5,64], index: 0, kind: input, shape index: {}]
  %s1 = inlined_call_operand.vmem [shape: bf16[2,2,5,64], index: 1, kind: input, shape index: {}]
  %s2 = inlined_call_operand.vmem [shape: bf16[2,2,5,64], index: 2, kind: input, shape index: {}]
  %s3 = inlined_call_operand.vmem [shape: bf16[2,2,5,64], index: 3, kind: output, shape index: {}]
  %s4 = sld [smem:[#allocation0]]
  $region45: #{sinet_forward.14} parent=0
    _
  %s6 = ssub.s32 1, %s4
  %s7 = scalar_select 0, %s6, %s4
  loop: start=0, step=1, limit=6
  $region2: #{sinet_forward.14} parent=0 // loop_pre_header
    _
  $region3: #{sinet_forward.14} parent=0 // loop_header
    %s9 = sphi 0, %s13
    %p10 = scmp.ge.s32.totalorder %s9, 6
    %s16 = sphi 0, %s28
    %s17 = sphi 0, %s24
    %s18 = sphi 0, %s16
    %s19 = sphi 0, %s17
    %s20 = sphi 0, %s18
    %s21 = sphi 0, %s19
    %s33 = sphi 0, %s35
    %s36 = sphi 0, %s33
    %s37 = sphi 0, %s36
    %s53 = sphi 0, %s37
    %s61 = sphi 0, %s63
    %s64 = sphi 0, %s61
    %s65 = sphi 0, %s64
    %s81 = sphi 0, %s65
    %s89 = sphi 0, %s91
    %s92 = sphi 0, %s89
    %s93 = sphi 0, %s92
    %s109 = sphi 0, %s93
    %s117 = sphi 0, %s119
    %s120 = sphi 0, %s117
    %s121 = sphi 0, %s120
    %s137 = sphi 0, %s121
  $region4: #{sinet_forward.14} parent=0 // loop_header_branch
    %12 = sbr.rel (%p10) target = $region8
  $region5: #{sinet_forward.14} parent=0 // loop_body
    %s14 = ssub.s32 %s9, 1
    %s15 = ssub.s32 %s9, 2
    %s22 = sadd.s32 1, %s17
    %p23 = scmp.ge.s32.totalorder %s22, 2
    %s24 = scalar_select %p23, 0, %s22
    %s25 = sadd.s32 1, %s16
    %s26 = scalar_select %p23, %s25, %s16
    %p27 = scmp.ge.s32.totalorder %s26, 2
    %s28 = scalar_select %p27, 0, %s26
    %s29 = ssub.s32 %s16, %s28
    %s30 = ssub.s32 %s17, %s24
    %s31 = sor.u32 %s29, %s30
    %p32 = scmp.eq.s32.totalorder %s31, 0
    %s34 = sadd.s32 %s33, 1
    %s35 = scalar_select %p32, %s33, %s34
    %p38 = pneg %p32
    %p39 = scmp.eq.s32.totalorder %s9, 3
    %p40 = por %p38, %p39
    %p41 = scmp.ne.s32.totalorder %s33, %s36
    %p42 = scmp.eq.s32.totalorder %s9, 0
    %p43 = por %p41, %p42
    %p44 = scmp.ne.s32.totalorder %s33, %s36
    %p45 = scmp.eq.s32.totalorder %s14, 3
    %p46 = por %p44, %p45
    %p47 = scmp.ne.s32.totalorder %s36, %s37
    %p48 = scmp.eq.s32.totalorder %s14, 0
    %p49 = por %p47, %p48
    %p50 = scmp.ne.s32.totalorder %s36, %s37
    %p51 = scmp.eq.s32.totalorder %s15, 3
    %p52 = por %p50, %p51
    %p54 = scmp.ne.s32.totalorder %s37, %s53
    %p55 = scmp.eq.s32.totalorder %s15, 0
    %p56 = por %p54, %p55
    %s57 = ssub.s32 %s16, %s28
    %s58 = ssub.s32 %s17, %s24
    %s59 = sor.u32 %s57, %s58
    %p60 = scmp.eq.s32.totalorder %s59, 0
    %s62 = sadd.s32 %s61, 1
    %s63 = scalar_select %p60, %s61, %s62
    %p66 = pneg %p60
    %p67 = scmp.eq.s32.totalorder %s9, 3
    %p68 = por %p66, %p67
    %p69 = scmp.ne.s32.totalorder %s61, %s64
    %p70 = scmp.eq.s32.totalorder %s9, 0
    %p71 = por %p69, %p70
    %p72 = scmp.ne.s32.totalorder %s61, %s64
    %p73 = scmp.eq.s32.totalorder %s14, 3
    %p74 = por %p72, %p73
    %p75 = scmp.ne.s32.totalorder %s64, %s65
    %p76 = scmp.eq.s32.totalorder %s14, 0
    %p77 = por %p75, %p76
    %p78 = scmp.ne.s32.totalorder %s64, %s65
    %p79 = scmp.eq.s32.totalorder %s15, 3
    %p80 = por %p78, %p79
    %p82 = scmp.ne.s32.totalorder %s65, %s81
    %p83 = scmp.eq.s32.totalorder %s15, 0
    %p84 = por %p82, %p83
    %s85 = ssub.s32 %s16, %s28
    %s86 = ssub.s32 %s17, %s24
    %s87 = sor.u32 %s85, %s86
    %p88 = scmp.eq.s32.totalorder %s87, 0
    %s90 = sadd.s32 %s89, 1
    %s91 = scalar_select %p88, %s89, %s90
    %p94 = pneg %p88
    %p95 = scmp.eq.s32.totalorder %s9, 3
    %p96 = por %p94, %p95
    %p97 = scmp.ne.s32.totalorder %s89, %s92
    %p98 = scmp.eq.s32.totalorder %s9, 0
    %p99 = por %p97, %p98
    %p100 = scmp.ne.s32.totalorder %s89, %s92
    %p101 = scmp.eq.s32.totalorder %s14, 3
    %p102 = por %p100, %p101
    %p103 = scmp.ne.s32.totalorder %s92, %s93
    %p104 = scmp.eq.s32.totalorder %s14, 0
    %p105 = por %p103, %p104
    %p106 = scmp.ne.s32.totalorder %s92, %s93
    %p107 = scmp.eq.s32.totalorder %s15, 3
    %p108 = por %p106, %p107
    %p110 = scmp.ne.s32.totalorder %s93, %s109
    %p111 = scmp.eq.s32.totalorder %s15, 0
    %p112 = por %p110, %p111
    %s113 = ssub.s32 %s16, %s28
    %s114 = ssub.s32 %s17, %s24
    %s115 = sor.u32 %s113, %s114
    %p116 = scmp.eq.s32.totalorder %s115, 0
    %s118 = sadd.s32 %s117, 1
    %s119 = scalar_select %p116, %s117, %s118
    %p122 = pneg %p116
    %p123 = scmp.eq.s32.totalorder %s9, 3
    %p124 = por %p122, %p123
    %p125 = scmp.ne.s32.totalorder %s117, %s120
    %p126 = scmp.eq.s32.totalorder %s9, 0
    %p127 = por %p125, %p126
    %p128 = scmp.ne.s32.totalorder %s117, %s120
    %p129 = scmp.eq.s32.totalorder %s14, 3
    %p130 = por %p128, %p129
    %p131 = scmp.ne.s32.totalorder %s120, %s121
    %p132 = scmp.eq.s32.totalorder %s14, 0
    %p133 = por %p131, %p132
    %p134 = scmp.ne.s32.totalorder %s120, %s121
    %p135 = scmp.eq.s32.totalorder %s15, 3
    %p136 = por %p134, %p135
    %p138 = scmp.ne.s32.totalorder %s121, %s137
    %p139 = scmp.eq.s32.totalorder %s15, 0
    %p140 = por %p138, %p139
    %p141 = scmp.le.s32.totalorder 1, %s9
    %p142 = scmp.lt.s32.totalorder %s9, 5
    %p143 = pnand %p141, %p142
    %p144 = pneg %p143
    // Predicated region
    $region9: #{sinet_forward.14} parent=5 // pred_check
      _
    $region10: #{sinet_forward.14} parent=5 // pred_check_branch
      %146 = sbr.rel (%p143) target = $region12
    $region11: #{sinet_forward.14} parent=5 // pred_region
      %s147 = ssub.s32 %s9, 1
    $region12: #{sinet_forward.14} parent=5 // pred_fallthru
      _
    %p148 = scmp.lt.s32.totalorder %s9, 4
    // Predicated region
    $region13: #{sinet_forward.14} parent=5 // pred_check
      %p149 = pneg %p148
    $region14: #{sinet_forward.14} parent=5 // pred_check_branch
      %151 = sbr.rel (%p149) target = $region16
    $region15: #{sinet_forward.14} parent=5 // pred_region
      // Predicated region
      $region17: #{sinet_forward.14} parent=15 // pred_check
        %p152 = pneg %p43
      $region18: #{sinet_forward.14} parent=15 // pred_check_branch
        %154 = sbr.rel (%p152) target = $region20
      $region19: #{sinet_forward.14} parent=15 // pred_region
        %p155 = scmp.lt.s32.totalorder %s16, 1
        %s156 = scalar_select %p155, %s16, 1
        %p157 = scmp.lt.s32.totalorder %s17, 1
        %s158 = scalar_select %p157, %s17, 1
        %s159 = smul.addr %s156, 2
        %s160 = sadd.s32 %s158, %s159
        %s161 = smul.addr %s160, 4
        %s162 = scalar_lea.vmem %s0, %s161
      $region20: #{sinet_forward.14} parent=15 // pred_fallthru
        _
      // Predicated region
      $region21: #{sinet_forward.14} parent=15 // pred_check
        %p163 = pneg %p71
      $region22: #{sinet_forward.14} parent=15 // pred_check_branch
        %165 = sbr.rel (%p163) target = $region24
      $region23: #{sinet_forward.14} parent=15 // pred_region
        %p166 = scmp.lt.s32.totalorder %s16, 1
        %s167 = scalar_select %p166, %s16, 1
        %p168 = scmp.lt.s32.totalorder %s17, 1
        %s169 = scalar_select %p168, %s17, 1
        %s170 = smul.addr %s167, 2
        %s171 = sadd.s32 %s169, %s170
        %s172 = smul.addr %s171, 4
        %s173 = scalar_lea.vmem %s1, %s172
      $region24: #{sinet_forward.14} parent=15 // pred_fallthru
        _
      // Predicated region
      $region25: #{sinet_forward.14} parent=15 // pred_check
        %p174 = pneg %p99
      $region26: #{sinet_forward.14} parent=15 // pred_check_branch
        %176 = sbr.rel (%p174) target = $region28
      $region27: #{sinet_forward.14} parent=15 // pred_region
        %p177 = scmp.lt.s32.totalorder %s16, 1
        %s178 = scalar_select %p177, %s16, 1
        %p179 = scmp.lt.s32.totalorder %s17, 1
        %s180 = scalar_select %p179, %s17, 1
        %s181 = smul.addr %s178, 2
        %s182 = sadd.s32 %s180, %s181
        %s183 = smul.addr %s182, 4
        %s184 = scalar_lea.vmem %s2, %s183
      $region28: #{sinet_forward.14} parent=15 // pred_fallthru
        _
    $region16: #{sinet_forward.14} parent=5 // pred_fallthru
      _
    %p185 = scmp.le.s32.totalorder 1, %s9
    %p186 = scmp.lt.s32.totalorder %s9, 5
    %p187 = pnand %p185, %p186
    %p188 = pneg %p187
    // Predicated region
    $region29: #{sinet_forward.14} parent=5 // pred_check
      _
    $region30: #{sinet_forward.14} parent=5 // pred_check_branch
      %190 = sbr.rel (%p187) target = $region32
    $region31: #{sinet_forward.14} parent=5 // pred_region
      %s191 = ssub.s32 %s9, 1
      %p192 = scmp.lt.s32.totalorder %s18, 1
      %s193 = scalar_select %p192, %s18, 1
      %p194 = scmp.lt.s32.totalorder %s19, 1
      %s195 = scalar_select %p194, %s19, 1
      %s196 = smul.addr %s193, 2
      %s197 = sadd.s32 %s195, %s196
      %s198 = smul.addr %s197, 4
      %s199 = scalar_lea.vmem %s0, %s198
      %p200 = pneg %p49
      %p201 = pneg %p46
      %p202 = scmp.lt.s32.totalorder %s18, 1
      %s203 = scalar_select %p202, %s18, 1
      %p204 = scmp.lt.s32.totalorder %s19, 1
      %s205 = scalar_select %p204, %s19, 1
      %s206 = smul.addr %s203, 2
      %s207 = sadd.s32 %s205, %s206
      %s208 = smul.addr %s207, 4
      %s209 = scalar_lea.vmem %s1, %s208
      %p210 = pneg %p77
      %p211 = pneg %p74
      %p212 = scmp.lt.s32.totalorder %s18, 1
      %s213 = scalar_select %p212, %s18, 1
      %p214 = scmp.lt.s32.totalorder %s19, 1
      %s215 = scalar_select %p214, %s19, 1
      %s216 = smul.addr %s213, 2
      %s217 = sadd.s32 %s215, %s216
      %s218 = smul.addr %s217, 4
      %s219 = scalar_lea.vmem %s2, %s218
      %p220 = pneg %p105
      %p221 = pneg %p102
      %p222 = pneg %p133
      %p223 = pneg %p130
      %p224 = scmp.lt.s32.totalorder %s18, 1
      %s225 = scalar_select %p224, %s18, 1
      %p226 = scmp.lt.s32.totalorder %s19, 1
      %s227 = scalar_select %p226, %s19, 1
      %s228 = smul.addr %s225, 2
      %s229 = sadd.s32 %s227, %s228
      %s230 = smul.addr %s229, 4
      %s231 = scalar_lea.vmem %s3, %s230
      %p232 = scmp.lt.s32.totalorder %s18, 1
      %s233 = scalar_select %p232, %s18, 1
      %p234 = scmp.lt.s32.totalorder %s19, 1
      %s235 = scalar_select %p234, %s19, 1
      %s236 = smul.addr %s233, 2
      %s237 = sadd.s32 %s235, %s236
      %s238 = smul.addr %s237, 4
      %s239 = scalar_lea.vmem %s0, %s238
      %p240 = scmp.lt.s32.totalorder %s18, 1
      %s241 = scalar_select %p240, %s18, 1
      %p242 = scmp.lt.s32.totalorder %s19, 1
      %s243 = scalar_select %p242, %s19, 1
      %s244 = smul.addr %s241, 2
      %s245 = sadd.s32 %s243, %s244
      %s246 = smul.addr %s245, 4
      %s247 = scalar_lea.vmem %s1, %s246
      %p248 = scmp.lt.s32.totalorder %s18, 1
      %s249 = scalar_select %p248, %s18, 1
      %p250 = scmp.lt.s32.totalorder %s19, 1
      %s251 = scalar_select %p250, %s19, 1
      %s252 = smul.addr %s249, 2
      %s253 = sadd.s32 %s251, %s252
      %s254 = smul.addr %s253, 4
      %s255 = scalar_lea.vmem %s2, %s254
      %p256 = scmp.lt.s32.totalorder %s18, 1
      %s257 = scalar_select %p256, %s18, 1
      %p258 = scmp.lt.s32.totalorder %s19, 1
      %s259 = scalar_select %p258, %s19, 1
      %s260 = smul.addr %s257, 2
      %s261 = sadd.s32 %s259, %s260
      %s262 = smul.addr %s261, 4
      %s263 = scalar_lea.vmem %s3, %s262
      %v265 = vld [vmem:[%s239] sm:$0x7]
      %v266 = vld [vmem:[%s247] sm:$0x7]
      %v267 = vld [vmem:[%s255] sm:$0x7]
      %vm268 = vcmask 523264
      %v270 = vsel %vm268, %v265, 0
      %v273 = vsel %vm268, %v266, 0
      %275 = vmatprep.subr.bf16.mxu0 0
      %276 = vmatpush1.bf16.xpose.msra.mxu0 %v273
      %277 = vmatprep.subr.bf16.mxu0 0
      %278 = vmatpush1.bf16.xpose.msra.mxu0 0
      %279 = vmatprep.subr.bf16.mxu0 0
      %280 = vmatpush1.bf16.xpose.msra.mxu0 0
      %281 = vmatprep.subr.bf16.mxu0 0
      %282 = vmatpush1.bf16.xpose.msra.mxu0 0
      %283 = vmatprep.subr.bf16.mxu0 0
      %284 = vmatpush1.bf16.xpose.msra.mxu0 0
      %285 = vmatprep.subr.bf16.mxu0 0
      %286 = vmatpush1.bf16.xpose.msra.mxu0 0
      %287 = vmatprep.subr.bf16.mxu0 0
      %288 = vmatpush1.bf16.xpose.msra.mxu0 0
      %289 = vmatprep.subr.bf16.mxu0 0
      %290 = vmatpush1.bf16.xpose.msra.mxu0 0
      %291 = vmatprep.subr.bf16.mxu0 0
      %292 = vmatpush1.bf16.xpose.msra.mxu0 0
      %293 = vmatprep.subr.bf16.mxu0 0
      %294 = vmatpush1.bf16.xpose.msra.mxu0 0
      %295 = vmatprep.subr.bf16.mxu0 0
      %296 = vmatpush1.bf16.xpose.msra.mxu0 0
      %297 = vmatprep.subr.bf16.mxu0 0
      %298 = vmatpush1.bf16.xpose.msra.mxu0 0
      %299 = vmatprep.subr.bf16.mxu0 0
      %300 = vmatpush1.bf16.xpose.msra.mxu0 0
      %301 = vmatprep.subr.bf16.mxu0 0
      %302 = vmatpush1.bf16.xpose.msra.mxu0 0
      %303 = vmatprep.subr.bf16.mxu0 0
      %304 = vmatpush1.bf16.xpose.msra.mxu0 0
      %305 = vmatprep.subr.bf16.mxu0 0
      %306 = vmatpush1.bf16.xpose.msra.mxu0 0
      %307 = vmatprep.mubr.bf16.mxu0 0
      %308 = vmatmul.mubr.bf16.gmra.mrb[0].mxu0 %v270
      %v309 = vpop.f32.mrb[0].mxu0
      %v310 = vadd.f32 0.0, %v309
      %v311 = vpop.f32.mrb[0].mxu0
      %v312 = vpop.f32.mrb[0].mxu0
      %v313 = vpop.f32.mrb[0].mxu0
      %314 = vdwg.mxu0
      %v315 = vmul.f32 %v310, 0.125
      %vm316 = vcmask 36864
      %v317 = vsel %vm316, %v315, -inf
      %318 = vmax.xlane.f32.xlu0 %v317
      %v319 = vpop.xlane.xlu0 %318
      %v320 = vsub.f32 %v315, %v319
      %v321 = vmul.f32 %v320, 1.442695
      %v322 = vpow.pop %v321
      %v323 = vsel %vm316, %v322, 0.0
      %324 = vadd.xlane.f32.xlu0 %v323
      %v325 = vpop.xlane.xlu0 %324
      %v326 = vrcp.pop %v325
      %v327 = vmul.f32 %v322, %v326
      %v328 = vpack.c.bf16 %v327, %v327
      %vm329 = vcmask 39936
      %v331 = vsel %vm329, %v328, 0
      %vm333 = vcmask 1041408
      %vm334 = vcmask 1042432
      %v335 = vsel %vm333, 4294967295, 65535
      %v336 = vsel %vm334, %v335, 0
      %v338 = vand.u32 %v267, %v336
      %340 = vmatprep.subr.bf16.mxu0 0
      %341 = vmatpush1.bf16.msra.mxu0 %v338
      %342 = vmatprep.subr.bf16.mxu0 0
      %343 = vmatpush1.bf16.msra.mxu0 0
      %344 = vmatprep.subr.bf16.mxu0 0
      %345 = vmatpush1.bf16.msra.mxu0 0
      %346 = vmatprep.subr.bf16.mxu0 0
      %347 = vmatpush1.bf16.msra.mxu0 0
      %348 = vmatprep.subr.bf16.mxu0 0
      %349 = vmatpush1.bf16.msra.mxu0 0
      %350 = vmatprep.subr.bf16.mxu0 0
      %351 = vmatpush1.bf16.msra.mxu0 0
      %352 = vmatprep.subr.bf16.mxu0 0
      %353 = vmatpush1.bf16.msra.mxu0 0
      %354 = vmatprep.subr.bf16.mxu0 0
      %355 = vmatpush1.bf16.msra.mxu0 0
      %356 = vmatprep.subr.bf16.mxu0 0
      %357 = vmatpush1.bf16.msra.mxu0 0
      %358 = vmatprep.subr.bf16.mxu0 0
      %359 = vmatpush1.bf16.msra.mxu0 0
      %360 = vmatprep.subr.bf16.mxu0 0
      %361 = vmatpush1.bf16.msra.mxu0 0
      %362 = vmatprep.subr.bf16.mxu0 0
      %363 = vmatpush1.bf16.msra.mxu0 0
      %364 = vmatprep.subr.bf16.mxu0 0
      %365 = vmatpush1.bf16.msra.mxu0 0
      %366 = vmatprep.subr.bf16.mxu0 0
      %367 = vmatpush1.bf16.msra.mxu0 0
      %368 = vmatprep.subr.bf16.mxu0 0
      %369 = vmatpush1.bf16.msra.mxu0 0
      %370 = vmatprep.subr.bf16.mxu0 0
      %371 = vmatpush1.bf16.msra.mxu0 0
      %372 = vmatprep.mubr.bf16.mxu0 0
      %373 = vmatmul.mubr.bf16.gmra.mrb[0].mxu0 %v331
      %v374 = vpop.f32.mrb[0].mxu0
      %v375 = vadd.f32 0.0, %v374
      %v376 = vpop.f32.mrb[0].mxu0
      %v377 = vpop.f32.mrb[0].mxu0
      %v378 = vpop.f32.mrb[0].mxu0
      %379 = vdwg.mxu0
      %v380 = vpack.c.bf16 %v375, %v375
      %vm381 = vcmask 518144
      %vm382 = vsmask.f32 2304
      %vm383 = vmand %vm381, %vm382
      %v384 = vld [vmem:[%s263] sm:$0x7]
      %v385 = vsel %vm383, %v380, %v384
      %386 = vst [vmem:[%s263] sm:$0x7] %v385
      %p387 = scmp.lt.s32.totalorder %s18, 1
      %s388 = scalar_select %p387, %s18, 1
      %p389 = scmp.lt.s32.totalorder %s19, 1
      %s390 = scalar_select %p389, %s19, 1
      %s391 = smul.addr %s388, 2
      %s392 = sadd.s32 %s390, %s391
      %s393 = smul.addr %s392, 4
      %s394 = scalar_lea.vmem %s3, %s393
      // Predicated region
      $region33: #{sinet_forward.14} parent=31 // pred_check
        %p395 = pneg %p130
      $region34: #{sinet_forward.14} parent=31 // pred_check_branch
        %397 = sbr.rel (%p395) target = $region36
      $region35: #{sinet_forward.14} parent=31 // pred_region
        _
      $region36: #{sinet_forward.14} parent=31 // pred_fallthru
        _
    $region32: #{sinet_forward.14} parent=5 // pred_fallthru
      _
    %p398 = scmp.le.s32.totalorder 2, %s9
    // Predicated region
    $region37: #{sinet_forward.14} parent=5 // pred_check
      %p399 = pneg %p398
    $region38: #{sinet_forward.14} parent=5 // pred_check_branch
      %401 = sbr.rel (%p399) target = $region40
    $region39: #{sinet_forward.14} parent=5 // pred_region
      %s402 = ssub.s32 %s9, 2
      // Predicated region
      $region41: #{sinet_forward.14} parent=39 // pred_check
        %p403 = pneg %p136
      $region42: #{sinet_forward.14} parent=39 // pred_check_branch
        %405 = sbr.rel (%p403) target = $region44
      $region43: #{sinet_forward.14} parent=39 // pred_region
        %p406 = scmp.lt.s32.totalorder %s20, 1
        %s407 = scalar_select %p406, %s20, 1
        %p408 = scmp.lt.s32.totalorder %s21, 1
        %s409 = scalar_select %p408, %s21, 1
        %s410 = smul.addr %s407, 2
        %s411 = sadd.s32 %s409, %s410
        %s412 = smul.addr %s411, 4
        %s413 = scalar_lea.vmem %s3, %s412
      $region44: #{sinet_forward.14} parent=39 // pred_fallthru
        _
    $region40: #{sinet_forward.14} parent=5 // pred_fallthru
      _
  $region6: #{sinet_forward.14} parent=0 // loop_footer
    %s13 = sadd.s32 1, %s9
  $region7: #{sinet_forward.14} parent=0 // loop_footer_branch
    %8 = sbr.rel target = $region3
  $region8: #{sinet_forward.14} parent=0 // loop_exit
    _

// kernel: sinet_forward.13
$region0: #{sinet_forward.13}
  #allocation0 [shape = 'u32[]', space=smem, size = 0x4, offset = 0x4, fixed_abs, tag = 'smem constant byte address 0x4 - core index']
  #allocation1 [shape = 'u32[144,128]{1,0:T(1,128)}', space=vmem, size = 0x12000, scoped, tag = 'internal scratch']
  %s0 = inlined_call_operand.vmem [shape: f32[2,5,128], index: 0, kind: input, shape index: {}]
  %s1 = inlined_call_operand.vmem [shape: f32[1,128], index: 1, kind: input, shape index: {}]
  %s2 = inlined_call_operand.vmem [shape: f32[1,128], index: 2, kind: input, shape index: {}]
  %s3 = inlined_call_operand.vmem [shape: bf16[128,384], index: 3, kind: input, shape index: {}]
  %s4 = inlined_call_operand.vmem [shape: f32[1,384], index: 4, kind: input, shape index: {}]
  %s5 = inlined_call_operand.vmem [shape: bf16[2,2,5,64], index: 5, kind: output, shape index: {0}]
  %s6 = inlined_call_operand.vmem [shape: bf16[2,2,5,64], index: 6, kind: output, shape index: {1}]
  %s7 = inlined_call_operand.vmem [shape: bf16[2,2,5,64], index: 7, kind: output, shape index: {2}]
  %8 = xla_tuple %s5, %s6, %s7
  %s9 = sld [smem:[#allocation0]]
  $region69: #{sinet_forward.13} parent=0
    _
  %s11 = ssub.s32 1, %s9
  %s12 = scalar_select 0, %s11, %s9
  loop: start=0, step=1, limit=4
  $region2: #{sinet_forward.13} parent=0 // loop_pre_header
    _
  $region3: #{sinet_forward.13} parent=0 // loop_header
    %s14 = sphi 0, %s18
    %p15 = scmp.ge.s32.totalorder %s14, 4
    %s24 = sphi 0, %s26
    %s27 = sphi 0, %s24
    %s28 = sphi 0, %s27
    %s44 = sphi 0, %s28
    %s48 = sphi 0, %s48
    %s50 = sphi 0, %s48
    %s51 = sphi 0, %s50
    %s65 = sphi 0, %s51
    %s69 = sphi 0, %s69
    %s71 = sphi 0, %s69
    %s72 = sphi 0, %s71
    %s86 = sphi 0, %s72
    %s90 = sphi 0, %s90
    %s92 = sphi 0, %s90
    %s93 = sphi 0, %s92
    %s107 = sphi 0, %s93
    %s111 = sphi 0, %s111
    %s113 = sphi 0, %s111
    %s114 = sphi 0, %s113
    %s128 = sphi 0, %s114
    %s134 = sphi 0, %s136
    %s137 = sphi 0, %s134
    %s138 = sphi 0, %s137
    %s154 = sphi 0, %s138
    %s160 = sphi 0, %s162
    %s163 = sphi 0, %s160
    %s164 = sphi 0, %s163
    %s180 = sphi 0, %s164
    %s186 = sphi 0, %s188
    %s189 = sphi 0, %s186
    %s190 = sphi 0, %s189
    %s206 = sphi 0, %s190
  $region4: #{sinet_forward.13} parent=0 // loop_header_branch
    %17 = sbr.rel (%p15) target = $region8
  $region5: #{sinet_forward.13} parent=0 // loop_body
    %s19 = ssub.s32 %s14, 1
    %s20 = ssub.s32 %s14, 2
    %s21 = sadd.s32 %s14, 1
    %s22 = ssub.s32 %s14, %s21
    %p23 = scmp.eq.s32.totalorder %s22, 0
    %s25 = sadd.s32 %s24, 1
    %s26 = scalar_select %p23, %s24, %s25
    %p29 = pneg %p23
    %p30 = scmp.eq.s32.totalorder %s14, 1
    %p31 = por %p29, %p30
    %p32 = scmp.ne.s32.totalorder %s24, %s27
    %p33 = scmp.eq.s32.totalorder %s14, 0
    %p34 = por %p32, %p33
    %p35 = scmp.ne.s32.totalorder %s24, %s27
    %p36 = scmp.eq.s32.totalorder %s19, 1
    %p37 = por %p35, %p36
    %p38 = scmp.ne.s32.totalorder %s27, %s28
    %p39 = scmp.eq.s32.totalorder %s19, 0
    %p40 = por %p38, %p39
    %p41 = scmp.ne.s32.totalorder %s27, %s28
    %p42 = scmp.eq.s32.totalorder %s20, 1
    %p43 = por %p41, %p42
    %p45 = scmp.ne.s32.totalorder %s28, %s44
    %p46 = scmp.eq.s32.totalorder %s20, 0
    %p47 = por %p45, %p46
    %s49 = sadd.s32 %s48, 1
    %p52 = scmp.eq.s32.totalorder %s14, 1
    %p53 = scmp.ne.s32.totalorder %s48, %s50
    %p54 = scmp.eq.s32.totalorder %s14, 0
    %p55 = por %p53, %p54
    %p56 = scmp.ne.s32.totalorder %s48, %s50
    %p57 = scmp.eq.s32.totalorder %s19, 1
    %p58 = por %p56, %p57
    %p59 = scmp.ne.s32.totalorder %s50, %s51
    %p60 = scmp.eq.s32.totalorder %s19, 0
    %p61 = por %p59, %p60
    %p62 = scmp.ne.s32.totalorder %s50, %s51
    %p63 = scmp.eq.s32.totalorder %s20, 1
    %p64 = por %p62, %p63
    %p66 = scmp.ne.s32.totalorder %s51, %s65
    %p67 = scmp.eq.s32.totalorder %s20, 0
    %p68 = por %p66, %p67
    %s70 = sadd.s32 %s69, 1
    %p73 = scmp.eq.s32.totalorder %s14, 1
    %p74 = scmp.ne.s32.totalorder %s69, %s71
    %p75 = scmp.eq.s32.totalorder %s14, 0
    %p76 = por %p74, %p75
    %p77 = scmp.ne.s32.totalorder %s69, %s71
    %p78 = scmp.eq.s32.totalorder %s19, 1
    %p79 = por %p77, %p78
    %p80 = scmp.ne.s32.totalorder %s71, %s72
    %p81 = scmp.eq.s32.totalorder %s19, 0
    %p82 = por %p80, %p81
    %p83 = scmp.ne.s32.totalorder %s71, %s72
    %p84 = scmp.eq.s32.totalorder %s20, 1
    %p85 = por %p83, %p84
    %p87 = scmp.ne.s32.totalorder %s72, %s86
    %p88 = scmp.eq.s32.totalorder %s20, 0
    %p89 = por %p87, %p88
    %s91 = sadd.s32 %s90, 1
    %p94 = scmp.eq.s32.totalorder %s14, 1
    %p95 = scmp.ne.s32.totalorder %s90, %s92
    %p96 = scmp.eq.s32.totalorder %s14, 0
    %p97 = por %p95, %p96
    %p98 = scmp.ne.s32.totalorder %s90, %s92
    %p99 = scmp.eq.s32.totalorder %s19, 1
    %p100 = por %p98, %p99
    %p101 = scmp.ne.s32.totalorder %s92, %s93
    %p102 = scmp.eq.s32.totalorder %s19, 0
    %p103 = por %p101, %p102
    %p104 = scmp.ne.s32.totalorder %s92, %s93
    %p105 = scmp.eq.s32.totalorder %s20, 1
    %p106 = por %p104, %p105
    %p108 = scmp.ne.s32.totalorder %s93, %s107
    %p109 = scmp.eq.s32.totalorder %s20, 0
    %p110 = por %p108, %p109
    %s112 = sadd.s32 %s111, 1
    %p115 = scmp.eq.s32.totalorder %s14, 1
    %p116 = scmp.ne.s32.totalorder %s111, %s113
    %p117 = scmp.eq.s32.totalorder %s14, 0
    %p118 = por %p116, %p117
    %p119 = scmp.ne.s32.totalorder %s111, %s113
    %p120 = scmp.eq.s32.totalorder %s19, 1
    %p121 = por %p119, %p120
    %p122 = scmp.ne.s32.totalorder %s113, %s114
    %p123 = scmp.eq.s32.totalorder %s19, 0
    %p124 = por %p122, %p123
    %p125 = scmp.ne.s32.totalorder %s113, %s114
    %p126 = scmp.eq.s32.totalorder %s20, 1
    %p127 = por %p125, %p126
    %p129 = scmp.ne.s32.totalorder %s114, %s128
    %p130 = scmp.eq.s32.totalorder %s20, 0
    %p131 = por %p129, %p130
    %s132 = ssub.s32 %s14, %s21
    %p133 = scmp.eq.s32.totalorder %s132, 0
    %s135 = sadd.s32 %s134, 1
    %s136 = scalar_select %p133, %s134, %s135
    %p139 = pneg %p133
    %p140 = scmp.eq.s32.totalorder %s14, 1
    %p141 = por %p139, %p140
    %p142 = scmp.ne.s32.totalorder %s134, %s137
    %p143 = scmp.eq.s32.totalorder %s14, 0
    %p144 = por %p142, %p143
    %p145 = scmp.ne.s32.totalorder %s134, %s137
    %p146 = scmp.eq.s32.totalorder %s19, 1
    %p147 = por %p145, %p146
    %p148 = scmp.ne.s32.totalorder %s137, %s138
    %p149 = scmp.eq.s32.totalorder %s19, 0
    %p150 = por %p148, %p149
    %p151 = scmp.ne.s32.totalorder %s137, %s138
    %p152 = scmp.eq.s32.totalorder %s20, 1
    %p153 = por %p151, %p152
    %p155 = scmp.ne.s32.totalorder %s138, %s154
    %p156 = scmp.eq.s32.totalorder %s20, 0
    %p157 = por %p155, %p156
    %s158 = ssub.s32 %s14, %s21
    %p159 = scmp.eq.s32.totalorder %s158, 0
    %s161 = sadd.s32 %s160, 1
    %s162 = scalar_select %p159, %s160, %s161
    %p165 = pneg %p159
    %p166 = scmp.eq.s32.totalorder %s14, 1
    %p167 = por %p165, %p166
    %p168 = scmp.ne.s32.totalorder %s160, %s163
    %p169 = scmp.eq.s32.totalorder %s14, 0
    %p170 = por %p168, %p169
    %p171 = scmp.ne.s32.totalorder %s160, %s163
    %p172 = scmp.eq.s32.totalorder %s19, 1
    %p173 = por %p171, %p172
    %p174 = scmp.ne.s32.totalorder %s163, %s164
    %p175 = scmp.eq.s32.totalorder %s19, 0
    %p176 = por %p174, %p175
    %p177 = scmp.ne.s32.totalorder %s163, %s164
    %p178 = scmp.eq.s32.totalorder %s20, 1
    %p179 = por %p177, %p178
    %p181 = scmp.ne.s32.totalorder %s164, %s180
    %p182 = scmp.eq.s32.totalorder %s20, 0
    %p183 = por %p181, %p182
    %s184 = ssub.s32 %s14, %s21
    %p185 = scmp.eq.s32.totalorder %s184, 0
    %s187 = sadd.s32 %s186, 1
    %s188 = scalar_select %p185, %s186, %s187
    %p191 = pneg %p185
    %p192 = scmp.eq.s32.totalorder %s14, 1
    %p193 = por %p191, %p192
    %p194 = scmp.ne.s32.totalorder %s186, %s189
    %p195 = scmp.eq.s32.totalorder %s14, 0
    %p196 = por %p194, %p195
    %p197 = scmp.ne.s32.totalorder %s186, %s189
    %p198 = scmp.eq.s32.totalorder %s19, 1
    %p199 = por %p197, %p198
    %p200 = scmp.ne.s32.totalorder %s189, %s190
    %p201 = scmp.eq.s32.totalorder %s19, 0
    %p202 = por %p200, %p201
    %p203 = scmp.ne.s32.totalorder %s189, %s190
    %p204 = scmp.eq.s32.totalorder %s20, 1
    %p205 = por %p203, %p204
    %p207 = scmp.ne.s32.totalorder %s190, %s206
    %p208 = scmp.eq.s32.totalorder %s20, 0
    %p209 = por %p207, %p208
    %p210 = scmp.le.s32.totalorder 1, %s14
    %p211 = scmp.lt.s32.totalorder %s14, 3
    %p212 = pnand %p210, %p211
    %p213 = pneg %p212
    // Predicated region
    $region9: #{sinet_forward.13} parent=5 // pred_check
      _
    $region10: #{sinet_forward.13} parent=5 // pred_check_branch
      %215 = sbr.rel (%p212) target = $region12
    $region11: #{sinet_forward.13} parent=5 // pred_region
      %s216 = ssub.s32 %s14, 1
      // Predicated region
      $region13: #{sinet_forward.13} parent=11 // pred_check
        %p217 = pneg %p61
      $region14: #{sinet_forward.13} parent=11 // pred_check_branch
        %219 = sbr.rel (%p217) target = $region16
      $region15: #{sinet_forward.13} parent=11 // pred_region
        _
      $region16: #{sinet_forward.13} parent=11 // pred_fallthru
        _
      // Predicated region
      $region17: #{sinet_forward.13} parent=11 // pred_check
        %p220 = pneg %p82
      $region18: #{sinet_forward.13} parent=11 // pred_check_branch
        %222 = sbr.rel (%p220) target = $region20
      $region19: #{sinet_forward.13} parent=11 // pred_region
        _
      $region20: #{sinet_forward.13} parent=11 // pred_fallthru
        _
      // Predicated region
      $region21: #{sinet_forward.13} parent=11 // pred_check
        %p223 = pneg %p103
      $region22: #{sinet_forward.13} parent=11 // pred_check_branch
        %225 = sbr.rel (%p223) target = $region24
      $region23: #{sinet_forward.13} parent=11 // pred_region
        _
      $region24: #{sinet_forward.13} parent=11 // pred_fallthru
        _
      // Predicated region
      $region25: #{sinet_forward.13} parent=11 // pred_check
        %p226 = pneg %p124
      $region26: #{sinet_forward.13} parent=11 // pred_check_branch
        %228 = sbr.rel (%p226) target = $region28
      $region27: #{sinet_forward.13} parent=11 // pred_region
        _
      $region28: #{sinet_forward.13} parent=11 // pred_fallthru
        _
    $region12: #{sinet_forward.13} parent=5 // pred_fallthru
      _
    %p229 = scmp.lt.s32.totalorder %s14, 2
    // Predicated region
    $region29: #{sinet_forward.13} parent=5 // pred_check
      %p230 = pneg %p229
    $region30: #{sinet_forward.13} parent=5 // pred_check_branch
      %232 = sbr.rel (%p230) target = $region32
    $region31: #{sinet_forward.13} parent=5 // pred_region
      // Predicated region
      $region33: #{sinet_forward.13} parent=31 // pred_check
        %p233 = pneg %p34
      $region34: #{sinet_forward.13} parent=31 // pred_check_branch
        %235 = sbr.rel (%p233) target = $region36
      $region35: #{sinet_forward.13} parent=31 // pred_region
        %p236 = scmp.lt.s32.totalorder %s14, 1
        %s237 = scalar_select %p236, %s14, 1
        %s238 = smul.addr %s237, 8
        %s239 = scalar_lea.vmem %s0, %s238
      $region36: #{sinet_forward.13} parent=31 // pred_fallthru
        _
    $region32: #{sinet_forward.13} parent=5 // pred_fallthru
      _
    %p240 = scmp.le.s32.totalorder 1, %s14
    %p241 = scmp.lt.s32.totalorder %s14, 3
    %p242 = pnand %p240, %p241
    %p243 = pneg %p242
    // Predicated region
    $region37: #{sinet_forward.13} parent=5 // pred_check
      _
    $region38: #{sinet_forward.13} parent=5 // pred_check_branch
      %245 = sbr.rel (%p242) target = $region40
    $region39: #{sinet_forward.13} parent=5 // pred_region
      %s246 = ssub.s32 %s14, 1
      %p247 = scmp.lt.s32.totalorder %s19, 1
      %s248 = scalar_select %p247, %s19, 1
      %s249 = smul.addr %s248, 8
      %s250 = scalar_lea.vmem %s0, %s249
      %p251 = pneg %p40
      %p252 = pneg %p37
      %p253 = pneg %p61
      %p254 = pneg %p58
      %p255 = pneg %p82
      %p256 = pneg %p79
      %p257 = pneg %p103
      %p258 = pneg %p100
      %p259 = pneg %p124
      %p260 = pneg %p121
      %p261 = pneg %p150
      %p262 = pneg %p147
      %p263 = scmp.lt.s32.totalorder %s19, 1
      %s264 = scalar_select %p263, %s19, 1
      %s265 = smul.addr %s264, 2
      %s266 = smul.addr %s265, 4
      %s267 = scalar_lea.vmem %s5, %s266
      %p268 = pneg %p176
      %p269 = pneg %p173
      %p270 = scmp.lt.s32.totalorder %s19, 1
      %s271 = scalar_select %p270, %s19, 1
      %s272 = smul.addr %s271, 2
      %s273 = smul.addr %s272, 4
      %s274 = scalar_lea.vmem %s6, %s273
      %p275 = pneg %p202
      %p276 = pneg %p199
      %p277 = scmp.lt.s32.totalorder %s19, 1
      %s278 = scalar_select %p277, %s19, 1
      %s279 = smul.addr %s278, 2
      %s280 = smul.addr %s279, 4
      %s281 = scalar_lea.vmem %s7, %s280
      %p282 = scmp.lt.s32.totalorder %s19, 1
      %s283 = scalar_select %p282, %s19, 1
      %s284 = smul.addr %s283, 8
      %s285 = scalar_lea.vmem %s0, %s284
      %p286 = scmp.lt.s32.totalorder %s19, 1
      %s287 = scalar_select %p286, %s19, 1
      %s288 = smul.addr %s287, 2
      %s289 = smul.addr %s288, 4
      %s290 = scalar_lea.vmem %s5, %s289
      %p291 = scmp.lt.s32.totalorder %s19, 1
      %s292 = scalar_select %p291, %s19, 1
      %s293 = smul.addr %s292, 2
      %s294 = smul.addr %s293, 4
      %s295 = scalar_lea.vmem %s6, %s294
      %p296 = scmp.lt.s32.totalorder %s19, 1
      %s297 = scalar_select %p296, %s19, 1
      %s298 = smul.addr %s297, 2
      %s299 = smul.addr %s298, 4
      %s300 = scalar_lea.vmem %s7, %s299
      %v302 = vld [vmem:[%s285] sm:$0x1f]
      %v303 = vld [vmem:[%s1] sm:$0x1]
      %v304 = vld [vmem:[%s2] sm:$0x1]
      %vm305 = vcmask 1044480
      %v306 = vsel %vm305, %v302, 0.0
      %307 = vadd.xlane.f32.xlu0 %v306
      %v308 = vpop.xlane.xlu0 %307
      %v309 = vrcp.pop 128.0
      %v310 = vmul.f32 %v308, %v309
      %v311 = vsub.f32 %v302, %v310
      %v312 = vmul.f32 %v311, %v311
      %v313 = vsel %vm305, %v312, 0.0
      %314 = vadd.xlane.f32.xlu0 %v313
      %v315 = vpop.xlane.xlu0 %314
      %v316 = vmul.f32 %v315, %v309
      %v317 = vadd.f32 %v316, 1e-06
      %v318 = vrsqrt.pop %v317
      %v319 = vmul.f32 %v311, %v318
      %v321 = vlaneseq
      %v322 = vshrl.u32 %v321, 7
      %v323 = vsub.s32 0, %v322
      %v324 = vrot.slane %v303, %v323
      %v326 = vmul.f32 %v319, %v324
      %v328 = vlaneseq
      %v329 = vshrl.u32 %v328, 7
      %v330 = vsub.s32 0, %v329
      %v331 = vrot.slane %v304, %v330
      %v333 = vadd.f32 %v326, %v331
      %v334 = vpack.c.bf16 %v333, %v333
      %v335 = vld [vmem:[%s3] sm:$0xff]
      %v336 = vld [vmem:[%s3 + $0x8] sm:$0xf]
      %v337 = vld [vmem:[%s3 + $0xc] sm:$0xff]
      %v338 = vld [vmem:[%s3 + $0x14] sm:$0xf]
      %v339 = vld [vmem:[%s3 + $0x18] sm:$0xff]
      %v340 = vld [vmem:[%s3 + $0x20] sm:$0xf]
      %v341 = vld [vmem:[%s3 + $0x24] sm:$0xff]
      %v342 = vld [vmem:[%s3 + $0x2c] sm:$0xf]
      %v343 = vld [vmem:[%s3 + $0x30] sm:$0xff]
      %v344 = vld [vmem:[%s3 + $0x38] sm:$0xf]
      %v345 = vld [vmem:[%s3 + $0x3c] sm:$0xff]
      %v346 = vld [vmem:[%s3 + $0x44] sm:$0xf]
      %v347 = vld [vmem:[%s3 + $0x48] sm:$0xff]
      %v348 = vld [vmem:[%s3 + $0x50] sm:$0xf]
      %v349 = vld [vmem:[%s3 + $0x54] sm:$0xff]
      %v350 = vld [vmem:[%s3 + $0x5c] sm:$0xf]
      %v351 = vld [vmem:[%s3 + $0x60] sm:$0xff]
      %v352 = vld [vmem:[%s3 + $0x68] sm:$0xf]
      %v353 = vld [vmem:[%s3 + $0x6c] sm:$0xff]
      %v354 = vld [vmem:[%s3 + $0x74] sm:$0xf]
      %v355 = vld [vmem:[%s3 + $0x78] sm:$0xff]
      %v356 = vld [vmem:[%s3 + $0x80] sm:$0xf]
      %v357 = vld [vmem:[%s3 + $0x84] sm:$0xff]
      %v358 = vld [vmem:[%s3 + $0x8c] sm:$0xf]
      %v359 = vld [vmem:[%s3 + $0x90] sm:$0xff]
      %v360 = vld [vmem:[%s3 + $0x98] sm:$0xf]
      %v361 = vld [vmem:[%s3 + $0x9c] sm:$0xff]
      %v362 = vld [vmem:[%s3 + $0xa4] sm:$0xf]
      %v363 = vld [vmem:[%s3 + $0xa8] sm:$0xff]
      %v364 = vld [vmem:[%s3 + $0xb0] sm:$0xf]
      %v365 = vld [vmem:[%s3 + $0xb4] sm:$0xff]
      %v366 = vld [vmem:[%s3 + $0xbc] sm:$0xf]
      %v367 = vld [vmem:[%s4] sm:$0x7]
      %v369 = vlaneseq
      %v370 = vshrl.u32 %v369, 7
      %v371 = vsub.s32 0, %v370
      %v372 = vrot.slane %v367, %v371
      %v373 = vlaneseq
      %v374 = vshrl.u32 %v373, 7
      %v375 = vsub.s32 1, %v374
      %v376 = vrot.slane %v367, %v375
      %v377 = vlaneseq
      %v378 = vshrl.u32 %v377, 7
      %v379 = vsub.s32 2, %v378
      %v380 = vrot.slane %v367, %v379
      %v416 = vunpack.c.l.b16 %v335
      %v417 = vunpack.c.h.b16 %v335
      %v418 = vunpack.c.l.b16 %v336
      %v419 = vunpack.c.l.b16 %v337
      %v420 = vunpack.c.h.b16 %v337
      %v421 = vunpack.c.l.b16 %v338
      %v422 = vunpack.c.l.b16 %v339
      %v423 = vunpack.c.h.b16 %v339
      %v424 = vunpack.c.l.b16 %v340
      %v425 = vunpack.c.l.b16 %v341
      %v426 = vunpack.c.h.b16 %v341
      %v427 = vunpack.c.l.b16 %v342
      %v428 = vunpack.c.l.b16 %v343
      %v429 = vunpack.c.h.b16 %v343
      %v430 = vunpack.c.l.b16 %v344
      %v431 = vunpack.c.l.b16 %v345
      %v432 = vunpack.c.h.b16 %v345
      %v433 = vunpack.c.l.b16 %v346
      %v434 = vunpack.c.l.b16 %v347
      %v435 = vunpack.c.h.b16 %v347
      %v436 = vunpack.c.l.b16 %v348
      %v437 = vunpack.c.l.b16 %v349
      %v438 = vunpack.c.h.b16 %v349
      %v439 = vunpack.c.l.b16 %v350
      %v440 = vunpack.c.l.b16 %v351
      %v441 = vunpack.c.h.b16 %v351
      %v442 = vunpack.c.l.b16 %v352
      %v443 = vunpack.c.l.b16 %v353
      %v444 = vunpack.c.h.b16 %v353
      %v445 = vunpack.c.l.b16 %v354
      %v446 = vunpack.c.l.b16 %v355
      %v447 = vunpack.c.h.b16 %v355
      %v448 = vunpack.c.l.b16 %v356
      %v449 = vunpack.c.l.b16 %v357
      %v450 = vunpack.c.h.b16 %v357
      %v451 = vunpack.c.l.b16 %v358
      %v452 = vunpack.c.l.b16 %v359
      %v453 = vunpack.c.h.b16 %v359
      %v454 = vunpack.c.l.b16 %v360
      %v455 = vunpack.c.l.b16 %v361
      %v456 = vunpack.c.h.b16 %v361
      %v457 = vunpack.c.l.b16 %v362
      %v458 = vunpack.c.l.b16 %v363
      %v459 = vunpack.c.h.b16 %v363
      %v460 = vunpack.c.l.b16 %v364
      %v461 = vunpack.c.l.b16 %v365
      %v462 = vunpack.c.h.b16 %v365
      %v463 = vunpack.c.l.b16 %v366
      %v464 = vpack.c.b16 %v419, %v416
      %v465 = vpack.c.b16 %v420, %v417
      %v466 = vpack.c.b16 %v421, %v418
      %v467 = vpack.c.b16 %v425, %v422
      %v468 = vpack.c.b16 %v426, %v423
      %v469 = vpack.c.b16 %v427, %v424
      %v470 = vpack.c.b16 %v431, %v428
      %v471 = vpack.c.b16 %v432, %v429
      %v472 = vpack.c.b16 %v433, %v430
      %v473 = vpack.c.b16 %v437, %v434
      %v474 = vpack.c.b16 %v438, %v435
      %v475 = vpack.c.b16 %v439, %v436
      %v476 = vpack.c.b16 %v443, %v440
      %v477 = vpack.c.b16 %v444, %v441
      %v478 = vpack.c.b16 %v445, %v442
      %v479 = vpack.c.b16 %v449, %v446
      %v480 = vpack.c.b16 %v450, %v447
      %v481 = vpack.c.b16 %v451, %v448
      %v482 = vpack.c.b16 %v455, %v452
      %v483 = vpack.c.b16 %v456, %v453
      %v484 = vpack.c.b16 %v457, %v454
      %v485 = vpack.c.b16 %v461, %v458
      %v486 = vpack.c.b16 %v462, %v459
      %v487 = vpack.c.b16 %v463, %v460
      %512 = vmatprep.subr.bf16.mxu0 %v465
      %513 = vmatpush1.bf16.msra.mxu0 %v464
      %514 = vmatprep.subr.bf16.mxu0 %v468
      %515 = vmatpush1.bf16.msra.mxu0 %v467
      %516 = vmatprep.subr.bf16.mxu0 %v471
      %517 = vmatpush1.bf16.msra.mxu0 %v470
      %518 = vmatprep.subr.bf16.mxu0 %v474
      %519 = vmatpush1.bf16.msra.mxu0 %v473
      %520 = vmatprep.subr.bf16.mxu0 %v477
      %521 = vmatpush1.bf16.msra.mxu0 %v476
      %522 = vmatprep.subr.bf16.mxu0 %v480
      %523 = vmatpush1.bf16.msra.mxu0 %v479
      %524 = vmatprep.subr.bf16.mxu0 %v483
      %525 = vmatpush1.bf16.msra.mxu0 %v482
      %526 = vmatprep.subr.bf16.mxu0 %v486
      %527 = vmatpush1.bf16.msra.mxu0 %v485
      %528 = vmatprep.subr.bf16.mxu0 0
      %529 = vmatpush1.bf16.msra.mxu0 0
      %530 = vmatprep.subr.bf16.mxu0 0
      %531 = vmatpush1.bf16.msra.mxu0 0
      %532 = vmatprep.subr.bf16.mxu0 0
      %533 = vmatpush1.bf16.msra.mxu0 0
      %534 = vmatprep.subr.bf16.mxu0 0
      %535 = vmatpush1.bf16.msra.mxu0 0
      %536 = vmatprep.subr.bf16.mxu0 0
      %537 = vmatpush1.bf16.msra.mxu0 0
      %538 = vmatprep.subr.bf16.mxu0 0
      %539 = vmatpush1.bf16.msra.mxu0 0
      %540 = vmatprep.subr.bf16.mxu0 0
      %541 = vmatpush1.bf16.msra.mxu0 0
      %542 = vmatprep.subr.bf16.mxu0 0
      %543 = vmatpush1.bf16.msra.mxu0 0
      %544 = vmatprep.mubr.bf16.mxu0 0
      %545 = vmatmul.mubr.bf16.gmra.mrb[0].mxu0 %v334
      %v546 = vpop.f32.mrb[0].mxu0
      %v547 = vadd.f32 %v372, %v546
      %v548 = vpop.f32.mrb[0].mxu0
      %v549 = vadd.f32 %v376, %v548
      %v550 = vpop.f32.mrb[0].mxu0
      %v551 = vpop.f32.mrb[0].mxu0
      %552 = vdwg.mxu0
      %553 = vmatprep.subr.bf16.mxu0 0
      %554 = vmatpush1.bf16.msra.mxu0 %v466
      %555 = vmatprep.subr.bf16.mxu0 0
      %556 = vmatpush1.bf16.msra.mxu0 %v469
      %557 = vmatprep.subr.bf16.mxu0 0
      %558 = vmatpush1.bf16.msra.mxu0 %v472
      %559 = vmatprep.subr.bf16.mxu0 0
      %560 = vmatpush1.bf16.msra.mxu0 %v475
      %561 = vmatprep.subr.bf16.mxu0 0
      %562 = vmatpush1.bf16.msra.mxu0 %v478
      %563 = vmatprep.subr.bf16.mxu0 0
      %564 = vmatpush1.bf16.msra.mxu0 %v481
      %565 = vmatprep.subr.bf16.mxu0 0
      %566 = vmatpush1.bf16.msra.mxu0 %v484
      %567 = vmatprep.subr.bf16.mxu0 0
      %568 = vmatpush1.bf16.msra.mxu0 %v487
      %569 = vmatprep.subr.bf16.mxu0 0
      %570 = vmatpush1.bf16.msra.mxu0 0
      %571 = vmatprep.subr.bf16.mxu0 0
      %572 = vmatpush1.bf16.msra.mxu0 0
      %573 = vmatprep.subr.bf16.mxu0 0
      %574 = vmatpush1.bf16.msra.mxu0 0
      %575 = vmatprep.subr.bf16.mxu0 0
      %576 = vmatpush1.bf16.msra.mxu0 0
      %577 = vmatprep.subr.bf16.mxu0 0
      %578 = vmatpush1.bf16.msra.mxu0 0
      %579 = vmatprep.subr.bf16.mxu0 0
      %580 = vmatpush1.bf16.msra.mxu0 0
      %581 = vmatprep.subr.bf16.mxu0 0
      %582 = vmatpush1.bf16.msra.mxu0 0
      %583 = vmatprep.subr.bf16.mxu0 0
      %584 = vmatpush1.bf16.msra.mxu0 0
      %585 = vmatprep.mubr.bf16.mxu0 0
      %586 = vmatmul.mubr.bf16.gmra.mrb[0].mxu0 %v334
      %v587 = vpop.f32.mrb[0].mxu0
      %v588 = vadd.f32 %v380, %v587
      %v589 = vpop.f32.mrb[0].mxu0
      %v590 = vpop.f32.mrb[0].mxu0
      %v591 = vpop.f32.mrb[0].mxu0
      %592 = vdwg.mxu0
      %v593 = vpack.c.bf16 %v547, %v547
      %vm594 = vcmask 518144
      %vm595 = vsmask.f32 2304
      %vm596 = vmand %vm594, %vm595
      %v597 = vld [vmem:[%s290] sm:$0x7]
      %v598 = vsel %vm596, %v593, %v597
      %599 = vst [vmem:[%s290] sm:$0x7] %v598
      %v600 = vpack.c.bf16 %v549, %v549
      %v601 = vld [vmem:[%s295] sm:$0x7]
      %v602 = vsel %vm596, %v600, %v601
      %603 = vst [vmem:[%s295] sm:$0x7] %v602
      %v604 = vpack.c.bf16 %v588, %v588
      %v605 = vld [vmem:[%s300] sm:$0x7]
      %v606 = vsel %vm596, %v604, %v605
      %607 = vst [vmem:[%s300] sm:$0x7] %v606
      %v609 = vunpack.c.l.b16 %v593
      %v610 = vpack.c.b16 %v609, %v609
      %611 = vrot.lane.b32.xlu0 %v610, 64
      %v612 = vpop.permute.xlu0 %611
      %s614 = scalar_lea.vmem %s290, 4
      %v615 = vld [vmem:[%s614] sm:$0x7]
      %v616 = vsel %vm596, %v612, %v615
      %617 = vst [vmem:[%s614] sm:$0x7] %v616
      %v619 = vunpack.c.l.b16 %v600
      %v620 = vpack.c.b16 %v619, %v619
      %621 = vrot.lane.b32.xlu0 %v620, 64
      %v622 = vpop.permute.xlu0 %621
      %s624 = scalar_lea.vmem %s295, 4
      %v625 = vld [vmem:[%s624] sm:$0x7]
      %v626 = vsel %vm596, %v622, %v625
      %627 = vst [vmem:[%s624] sm:$0x7] %v626
      %v629 = vunpack.c.l.b16 %v604
      %v630 = vpack.c.b16 %v629, %v629
      %631 = vrot.lane.b32.xlu0 %v630, 64
      %v632 = vpop.permute.xlu0 %631
      %s634 = scalar_lea.vmem %s300, 4
      %v635 = vld [vmem:[%s634] sm:$0x7]
      %v636 = vsel %vm596, %v632, %v635
      %637 = vst [vmem:[%s634] sm:$0x7] %v636
      %p638 = scmp.lt.s32.totalorder %s19, 1
      %s639 = scalar_select %p638, %s19, 1
      %s640 = smul.addr %s639, 2
      %s641 = smul.addr %s640, 4
      %s642 = scalar_lea.vmem %s5, %s641
      %p643 = scmp.lt.s32.totalorder %s19, 1
      %s644 = scalar_select %p643, %s19, 1
      %s645 = smul.addr %s644, 2
      %s646 = smul.addr %s645, 4
      %s647 = scalar_lea.vmem %s6, %s646
      %p648 = scmp.lt.s32.totalorder %s19, 1
      %s649 = scalar_select %p648, %s19, 1
      %s650 = smul.addr %s649, 2
      %s651 = smul.addr %s650, 4
      %s652 = scalar_lea.vmem %s7, %s651
      // Predicated region
      $region41: #{sinet_forward.13} parent=39 // pred_check
        %p653 = pneg %p147
      $region42: #{sinet_forward.13} parent=39 // pred_check_branch
        %655 = sbr.rel (%p653) target = $region44
      $region43: #{sinet_forward.13} parent=39 // pred_region
        _
      $region44: #{sinet_forward.13} parent=39 // pred_fallthru
        _
      // Predicated region
      $region45: #{sinet_forward.13} parent=39 // pred_check
        %p656 = pneg %p173
      $region46: #{sinet_forward.13} parent=39 // pred_check_branch
        %658 = sbr.rel (%p656) target = $region48
      $region47: #{sinet_forward.13} parent=39 // pred_region
        _
      $region48: #{sinet_forward.13} parent=39 // pred_fallthru
        _
      // Predicated region
      $region49: #{sinet_forward.13} parent=39 // pred_check
        %p659 = pneg %p199
      $region50: #{sinet_forward.13} parent=39 // pred_check_branch
        %661 = sbr.rel (%p659) target = $region52
      $region51: #{sinet_forward.13} parent=39 // pred_region
        _
      $region52: #{sinet_forward.13} parent=39 // pred_fallthru
        _
    $region40: #{sinet_forward.13} parent=5 // pred_fallthru
      _
    %p662 = scmp.le.s32.totalorder 2, %s14
    // Predicated region
    $region53: #{sinet_forward.13} parent=5 // pred_check
      %p663 = pneg %p662
    $region54: #{sinet_forward.13} parent=5 // pred_check_branch
      %665 = sbr.rel (%p663) target = $region56
    $region55: #{sinet_forward.13} parent=5 // pred_region
      %s666 = ssub.s32 %s14, 2
      // Predicated region
      $region57: #{sinet_forward.13} parent=55 // pred_check
        %p667 = pneg %p153
      $region58: #{sinet_forward.13} parent=55 // pred_check_branch
        %669 = sbr.rel (%p667) target = $region60
      $region59: #{sinet_forward.13} parent=55 // pred_region
        %p670 = scmp.lt.s32.totalorder %s20, 1
        %s671 = scalar_select %p670, %s20, 1
        %s672 = smul.addr %s671, 2
        %s673 = smul.addr %s672, 4
        %s674 = scalar_lea.vmem %s5, %s673
      $region60: #{sinet_forward.13} parent=55 // pred_fallthru
        _
      // Predicated region
      $region61: #{sinet_forward.13} parent=55 // pred_check
        %p675 = pneg %p179
      $region62: #{sinet_forward.13} parent=55 // pred_check_branch
        %677 = sbr.rel (%p675) target = $region64
      $region63: #{sinet_forward.13} parent=55 // pred_region
        %p678 = scmp.lt.s32.totalorder %s20, 1
        %s679 = scalar_select %p678, %s20, 1
        %s680 = smul.addr %s679, 2
        %s681 = smul.addr %s680, 4
        %s682 = scalar_lea.vmem %s6, %s681
      $region64: #{sinet_forward.13} parent=55 // pred_fallthru
        _
      // Predicated region
      $region65: #{sinet_forward.13} parent=55 // pred_check
        %p683 = pneg %p205
      $region66: #{sinet_forward.13} parent=55 // pred_check_branch
        %685 = sbr.rel (%p683) target = $region68
      $region67: #{sinet_forward.13} parent=55 // pred_region
        %p686 = scmp.lt.s32.totalorder %s20, 1
        %s687 = scalar_select %p686, %s20, 1
        %s688 = smul.addr %s687, 2
        %s689 = smul.addr %s688, 4
        %s690 = scalar_lea.vmem %s7, %s689
      $region68: #{sinet_forward.13} parent=55 // pred_fallthru
        _
    $region56: #{sinet_forward.13} parent=5 // pred_fallthru
      _
  $region6: #{sinet_forward.13} parent=0 // loop_footer
    %s18 = sadd.s32 1, %s14
  $region7: #{sinet_forward.13} parent=0 // loop_footer_branch
    %13 = sbr.rel target = $region3
  $region8: #{sinet_forward.13} parent=0 // loop_exit
    _

// kernel: sinet_forward.15
$region0: #{sinet_forward.15}
  #allocation0 [shape = 'u32[]', space=smem, size = 0x4, offset = 0x4, fixed_abs, tag = 'smem constant byte address 0x4 - core index']
  #allocation1 [shape = 'u32[144,128]{1,0:T(1,128)}', space=vmem, size = 0x12000, scoped, tag = 'internal scratch']
  %s0 = inlined_call_operand.vmem [shape: bf16[2,2,5,64], index: 0, kind: input, shape index: {}]
  %s1 = inlined_call_operand.vmem [shape: bf16[128,128], index: 1, kind: input, shape index: {}]
  %s2 = inlined_call_operand.vmem [shape: f32[1,128], index: 2, kind: input, shape index: {}]
  %s3 = inlined_call_operand.vmem [shape: f32[2,5,128], index: 3, kind: input, shape index: {}]
  %s4 = inlined_call_operand.vmem [shape: f32[2,5,128], index: 4, kind: output, shape index: {}]
  %s5 = sld [smem:[#allocation0]]
  $region49: #{sinet_forward.15} parent=0
    _
  %s7 = ssub.s32 1, %s5
  %s8 = scalar_select 0, %s7, %s5
  loop: start=0, step=1, limit=4
  $region2: #{sinet_forward.15} parent=0 // loop_pre_header
    _
  $region3: #{sinet_forward.15} parent=0 // loop_header
    %s10 = sphi 0, %s14
    %p11 = scmp.ge.s32.totalorder %s10, 4
    %s20 = sphi 0, %s22
    %s23 = sphi 0, %s20
    %s24 = sphi 0, %s23
    %s40 = sphi 0, %s24
    %s44 = sphi 0, %s44
    %s46 = sphi 0, %s44
    %s47 = sphi 0, %s46
    %s61 = sphi 0, %s47
    %s65 = sphi 0, %s65
    %s67 = sphi 0, %s65
    %s68 = sphi 0, %s67
    %s82 = sphi 0, %s68
    %s88 = sphi 0, %s90
    %s91 = sphi 0, %s88
    %s92 = sphi 0, %s91
    %s108 = sphi 0, %s92
    %s114 = sphi 0, %s116
    %s117 = sphi 0, %s114
    %s118 = sphi 0, %s117
    %s134 = sphi 0, %s118
  $region4: #{sinet_forward.15} parent=0 // loop_header_branch
    %13 = sbr.rel (%p11) target = $region8
  $region5: #{sinet_forward.15} parent=0 // loop_body
    %s15 = ssub.s32 %s10, 1
    %s16 = ssub.s32 %s10, 2
    %s17 = sadd.s32 %s10, 1
    %s18 = ssub.s32 %s10, %s17
    %p19 = scmp.eq.s32.totalorder %s18, 0
    %s21 = sadd.s32 %s20, 1
    %s22 = scalar_select %p19, %s20, %s21
    %p25 = pneg %p19
    %p26 = scmp.eq.s32.totalorder %s10, 1
    %p27 = por %p25, %p26
    %p28 = scmp.ne.s32.totalorder %s20, %s23
    %p29 = scmp.eq.s32.totalorder %s10, 0
    %p30 = por %p28, %p29
    %p31 = scmp.ne.s32.totalorder %s20, %s23
    %p32 = scmp.eq.s32.totalorder %s15, 1
    %p33 = por %p31, %p32
    %p34 = scmp.ne.s32.totalorder %s23, %s24
    %p35 = scmp.eq.s32.totalorder %s15, 0
    %p36 = por %p34, %p35
    %p37 = scmp.ne.s32.totalorder %s23, %s24
    %p38 = scmp.eq.s32.totalorder %s16, 1
    %p39 = por %p37, %p38
    %p41 = scmp.ne.s32.totalorder %s24, %s40
    %p42 = scmp.eq.s32.totalorder %s16, 0
    %p43 = por %p41, %p42
    %s45 = sadd.s32 %s44, 1
    %p48 = scmp.eq.s32.totalorder %s10, 1
    %p49 = scmp.ne.s32.totalorder %s44, %s46
    %p50 = scmp.eq.s32.totalorder %s10, 0
    %p51 = por %p49, %p50
    %p52 = scmp.ne.s32.totalorder %s44, %s46
    %p53 = scmp.eq.s32.totalorder %s15, 1
    %p54 = por %p52, %p53
    %p55 = scmp.ne.s32.totalorder %s46, %s47
    %p56 = scmp.eq.s32.totalorder %s15, 0
    %p57 = por %p55, %p56
    %p58 = scmp.ne.s32.totalorder %s46, %s47
    %p59 = scmp.eq.s32.totalorder %s16, 1
    %p60 = por %p58, %p59
    %p62 = scmp.ne.s32.totalorder %s47, %s61
    %p63 = scmp.eq.s32.totalorder %s16, 0
    %p64 = por %p62, %p63
    %s66 = sadd.s32 %s65, 1
    %p69 = scmp.eq.s32.totalorder %s10, 1
    %p70 = scmp.ne.s32.totalorder %s65, %s67
    %p71 = scmp.eq.s32.totalorder %s10, 0
    %p72 = por %p70, %p71
    %p73 = scmp.ne.s32.totalorder %s65, %s67
    %p74 = scmp.eq.s32.totalorder %s15, 1
    %p75 = por %p73, %p74
    %p76 = scmp.ne.s32.totalorder %s67, %s68
    %p77 = scmp.eq.s32.totalorder %s15, 0
    %p78 = por %p76, %p77
    %p79 = scmp.ne.s32.totalorder %s67, %s68
    %p80 = scmp.eq.s32.totalorder %s16, 1
    %p81 = por %p79, %p80
    %p83 = scmp.ne.s32.totalorder %s68, %s82
    %p84 = scmp.eq.s32.totalorder %s16, 0
    %p85 = por %p83, %p84
    %s86 = ssub.s32 %s10, %s17
    %p87 = scmp.eq.s32.totalorder %s86, 0
    %s89 = sadd.s32 %s88, 1
    %s90 = scalar_select %p87, %s88, %s89
    %p93 = pneg %p87
    %p94 = scmp.eq.s32.totalorder %s10, 1
    %p95 = por %p93, %p94
    %p96 = scmp.ne.s32.totalorder %s88, %s91
    %p97 = scmp.eq.s32.totalorder %s10, 0
    %p98 = por %p96, %p97
    %p99 = scmp.ne.s32.totalorder %s88, %s91
    %p100 = scmp.eq.s32.totalorder %s15, 1
    %p101 = por %p99, %p100
    %p102 = scmp.ne.s32.totalorder %s91, %s92
    %p103 = scmp.eq.s32.totalorder %s15, 0
    %p104 = por %p102, %p103
    %p105 = scmp.ne.s32.totalorder %s91, %s92
    %p106 = scmp.eq.s32.totalorder %s16, 1
    %p107 = por %p105, %p106
    %p109 = scmp.ne.s32.totalorder %s92, %s108
    %p110 = scmp.eq.s32.totalorder %s16, 0
    %p111 = por %p109, %p110
    %s112 = ssub.s32 %s10, %s17
    %p113 = scmp.eq.s32.totalorder %s112, 0
    %s115 = sadd.s32 %s114, 1
    %s116 = scalar_select %p113, %s114, %s115
    %p119 = pneg %p113
    %p120 = scmp.eq.s32.totalorder %s10, 1
    %p121 = por %p119, %p120
    %p122 = scmp.ne.s32.totalorder %s114, %s117
    %p123 = scmp.eq.s32.totalorder %s10, 0
    %p124 = por %p122, %p123
    %p125 = scmp.ne.s32.totalorder %s114, %s117
    %p126 = scmp.eq.s32.totalorder %s15, 1
    %p127 = por %p125, %p126
    %p128 = scmp.ne.s32.totalorder %s117, %s118
    %p129 = scmp.eq.s32.totalorder %s15, 0
    %p130 = por %p128, %p129
    %p131 = scmp.ne.s32.totalorder %s117, %s118
    %p132 = scmp.eq.s32.totalorder %s16, 1
    %p133 = por %p131, %p132
    %p135 = scmp.ne.s32.totalorder %s118, %s134
    %p136 = scmp.eq.s32.totalorder %s16, 0
    %p137 = por %p135, %p136
    %p138 = scmp.le.s32.totalorder 1, %s10
    %p139 = scmp.lt.s32.totalorder %s10, 3
    %p140 = pnand %p138, %p139
    %p141 = pneg %p140
    // Predicated region
    $region9: #{sinet_forward.15} parent=5 // pred_check
      _
    $region10: #{sinet_forward.15} parent=5 // pred_check_branch
      %143 = sbr.rel (%p140) target = $region12
    $region11: #{sinet_forward.15} parent=5 // pred_region
      %s144 = ssub.s32 %s10, 1
      // Predicated region
      $region13: #{sinet_forward.15} parent=11 // pred_check
        %p145 = pneg %p57
      $region14: #{sinet_forward.15} parent=11 // pred_check_branch
        %147 = sbr.rel (%p145) target = $region16
      $region15: #{sinet_forward.15} parent=11 // pred_region
        _
      $region16: #{sinet_forward.15} parent=11 // pred_fallthru
        _
      // Predicated region
      $region17: #{sinet_forward.15} parent=11 // pred_check
        %p148 = pneg %p78
      $region18: #{sinet_forward.15} parent=11 // pred_check_branch
        %150 = sbr.rel (%p148) target = $region20
      $region19: #{sinet_forward.15} parent=11 // pred_region
        _
      $region20: #{sinet_forward.15} parent=11 // pred_fallthru
        _
    $region12: #{sinet_forward.15} parent=5 // pred_fallthru
      _
    %p151 = scmp.lt.s32.totalorder %s10, 2
    // Predicated region
    $region21: #{sinet_forward.15} parent=5 // pred_check
      %p152 = pneg %p151
    $region22: #{sinet_forward.15} parent=5 // pred_check_branch
      %154 = sbr.rel (%p152) target = $region24
    $region23: #{sinet_forward.15} parent=5 // pred_region
      // Predicated region
      $region25: #{sinet_forward.15} parent=23 // pred_check
        %p155 = pneg %p30
      $region26: #{sinet_forward.15} parent=23 // pred_check_branch
        %157 = sbr.rel (%p155) target = $region28
      $region27: #{sinet_forward.15} parent=23 // pred_region
        %p158 = scmp.lt.s32.totalorder %s10, 1
        %s159 = scalar_select %p158, %s10, 1
        %s160 = smul.addr %s159, 2
        %s161 = smul.addr %s160, 4
        %s162 = scalar_lea.vmem %s0, %s161
      $region28: #{sinet_forward.15} parent=23 // pred_fallthru
        _
      // Predicated region
      $region29: #{sinet_forward.15} parent=23 // pred_check
        %p163 = pneg %p98
      $region30: #{sinet_forward.15} parent=23 // pred_check_branch
        %165 = sbr.rel (%p163) target = $region32
      $region31: #{sinet_forward.15} parent=23 // pred_region
        %p166 = scmp.lt.s32.totalorder %s10, 1
        %s167 = scalar_select %p166, %s10, 1
        %s168 = smul.addr %s167, 8
        %s169 = scalar_lea.vmem %s3, %s168
      $region32: #{sinet_forward.15} parent=23 // pred_fallthru
        _
    $region24: #{sinet_forward.15} parent=5 // pred_fallthru
      _
    %p170 = scmp.le.s32.totalorder 1, %s10
    %p171 = scmp.lt.s32.totalorder %s10, 3
    %p172 = pnand %p170, %p171
    %p173 = pneg %p172
    // Predicated region
    $region33: #{sinet_forward.15} parent=5 // pred_check
      _
    $region34: #{sinet_forward.15} parent=5 // pred_check_branch
      %175 = sbr.rel (%p172) target = $region36
    $region35: #{sinet_forward.15} parent=5 // pred_region
      %s176 = ssub.s32 %s10, 1
      %p177 = scmp.lt.s32.totalorder %s15, 1
      %s178 = scalar_select %p177, %s15, 1
      %s179 = smul.addr %s178, 2
      %s180 = smul.addr %s179, 4
      %s181 = scalar_lea.vmem %s0, %s180
      %p182 = pneg %p36
      %p183 = pneg %p33
      %p184 = pneg %p57
      %p185 = pneg %p54
      %p186 = pneg %p78
      %p187 = pneg %p75
      %p188 = scmp.lt.s32.totalorder %s15, 1
      %s189 = scalar_select %p188, %s15, 1
      %s190 = smul.addr %s189, 8
      %s191 = scalar_lea.vmem %s3, %s190
      %p192 = pneg %p104
      %p193 = pneg %p101
      %p194 = pneg %p130
      %p195 = pneg %p127
      %p196 = scmp.lt.s32.totalorder %s15, 1
      %s197 = scalar_select %p196, %s15, 1
      %s198 = smul.addr %s197, 8
      %s199 = scalar_lea.vmem %s4, %s198
      %p200 = scmp.lt.s32.totalorder %s15, 1
      %s201 = scalar_select %p200, %s15, 1
      %s202 = smul.addr %s201, 2
      %s203 = smul.addr %s202, 4
      %s204 = scalar_lea.vmem %s0, %s203
      %p205 = scmp.lt.s32.totalorder %s15, 1
      %s206 = scalar_select %p205, %s15, 1
      %s207 = smul.addr %s206, 8
      %s208 = scalar_lea.vmem %s3, %s207
      %p209 = scmp.lt.s32.totalorder %s15, 1
      %s210 = scalar_select %p209, %s15, 1
      %s211 = smul.addr %s210, 8
      %s212 = scalar_lea.vmem %s4, %s211
      %v214 = vld [vmem:[%s204] sm:$0x7]
      %s215 = scalar_lea.vmem %s204, 4
      %v216 = vld [vmem:[%s215] sm:$0x7]
      %v218 = vunpack.c.l.b16 %v216
      %v219 = vpack.c.b16 %v218, %v218
      %220 = vrot.lane.b32.xlu0 %v219, 64
      %v221 = vpop.permute.xlu0 %220
      %vm222 = vcmask 523264
      %v225 = vsel %vm222, %v214, %v221
      %v227 = vld [vmem:[%s1] sm:$0xf]
      %v228 = vld [vmem:[%s1 + $0x4] sm:$0xf]
      %v229 = vld [vmem:[%s1 + $0x8] sm:$0xf]
      %v230 = vld [vmem:[%s1 + $0xc] sm:$0xf]
      %v231 = vld [vmem:[%s1 + $0x10] sm:$0xf]
      %v232 = vld [vmem:[%s1 + $0x14] sm:$0xf]
      %v233 = vld [vmem:[%s1 + $0x18] sm:$0xf]
      %v234 = vld [vmem:[%s1 + $0x1c] sm:$0xf]
      %v235 = vld [vmem:[%s1 + $0x20] sm:$0xf]
      %v236 = vld [vmem:[%s1 + $0x24] sm:$0xf]
      %v237 = vld [vmem:[%s1 + $0x28] sm:$0xf]
      %v238 = vld [vmem:[%s1 + $0x2c] sm:$0xf]
      %v239 = vld [vmem:[%s1 + $0x30] sm:$0xf]
      %v240 = vld [vmem:[%s1 + $0x34] sm:$0xf]
      %v241 = vld [vmem:[%s1 + $0x38] sm:$0xf]
      %v242 = vld [vmem:[%s1 + $0x3c] sm:$0xf]
      %v243 = vld [vmem:[%s2] sm:$0x1]
      %v245 = vlaneseq
      %v246 = vshrl.u32 %v245, 7
      %v247 = vsub.s32 0, %v246
      %v248 = vrot.slane %v243, %v247
      %v266 = vunpack.c.l.b16 %v227
      %v267 = vunpack.c.l.b16 %v228
      %v268 = vunpack.c.l.b16 %v229
      %v269 = vunpack.c.l.b16 %v230
      %v270 = vunpack.c.l.b16 %v231
      %v271 = vunpack.c.l.b16 %v232
      %v272 = vunpack.c.l.b16 %v233
      %v273 = vunpack.c.l.b16 %v234
      %v274 = vunpack.c.l.b16 %v235
      %v275 = vunpack.c.l.b16 %v236
      %v276 = vunpack.c.l.b16 %v237
      %v277 = vunpack.c.l.b16 %v238
      %v278 = vunpack.c.l.b16 %v239
      %v279 = vunpack.c.l.b16 %v240
      %v280 = vunpack.c.l.b16 %v241
      %v281 = vunpack.c.l.b16 %v242
      %v282 = vpack.c.b16 %v267, %v266
      %v283 = vpack.c.b16 %v269, %v268
      %v284 = vpack.c.b16 %v271, %v270
      %v285 = vpack.c.b16 %v273, %v272
      %v286 = vpack.c.b16 %v275, %v274
      %v287 = vpack.c.b16 %v277, %v276
      %v288 = vpack.c.b16 %v279, %v278
      %v289 = vpack.c.b16 %v281, %v280
      %298 = vmatprep.subr.bf16.mxu0 0
      %299 = vmatpush1.bf16.msra.mxu0 %v282
      %300 = vmatprep.subr.bf16.mxu0 0
      %301 = vmatpush1.bf16.msra.mxu0 %v283
      %302 = vmatprep.subr.bf16.mxu0 0
      %303 = vmatpush1.bf16.msra.mxu0 %v284
      %304 = vmatprep.subr.bf16.mxu0 0
      %305 = vmatpush1.bf16.msra.mxu0 %v285
      %306 = vmatprep.subr.bf16.mxu0 0
      %307 = vmatpush1.bf16.msra.mxu0 %v286
      %308 = vmatprep.subr.bf16.mxu0 0
      %309 = vmatpush1.bf16.msra.mxu0 %v287
      %310 = vmatprep.subr.bf16.mxu0 0
      %311 = vmatpush1.bf16.msra.mxu0 %v288
      %312 = vmatprep.subr.bf16.mxu0 0
      %313 = vmatpush1.bf16.msra.mxu0 %v289
      %314 = vmatprep.subr.bf16.mxu0 0
      %315 = vmatpush1.bf16.msra.mxu0 0
      %316 = vmatprep.subr.bf16.mxu0 0
      %317 = vmatpush1.bf16.msra.mxu0 0
      %318 = vmatprep.subr.bf16.mxu0 0
      %319 = vmatpush1.bf16.msra.mxu0 0
      %320 = vmatprep.subr.bf16.mxu0 0
      %321 = vmatpush1.bf16.msra.mxu0 0
      %322 = vmatprep.subr.bf16.mxu0 0
      %323 = vmatpush1.bf16.msra.mxu0 0
      %324 = vmatprep.subr.bf16.mxu0 0
      %325 = vmatpush1.bf16.msra.mxu0 0
      %326 = vmatprep.subr.bf16.mxu0 0
      %327 = vmatpush1.bf16.msra.mxu0 0
      %328 = vmatprep.subr.bf16.mxu0 0
      %329 = vmatpush1.bf16.msra.mxu0 0
      %330 = vmatprep.mubr.bf16.mxu0 0
      %331 = vmatmul.mubr.bf16.gmra.mrb[0].mxu0 %v225
      %v332 = vpop.f32.mrb[0].mxu0
      %v333 = vadd.f32 %v248, %v332
      %v334 = vpop.f32.mrb[0].mxu0
      %v335 = vpop.f32.mrb[0].mxu0
      %v336 = vpop.f32.mrb[0].mxu0
      %337 = vdwg.mxu0
      %v338 = vld [vmem:[%s208] sm:$0x1f]
      %v339 = vadd.f32 %v333, %v338
      %340 = vst [vmem:[%s212] sm:$0x1f] %v339
      %p341 = scmp.lt.s32.totalorder %s15, 1
      %s342 = scalar_select %p341, %s15, 1
      %s343 = smul.addr %s342, 8
      %s344 = scalar_lea.vmem %s4, %s343
      // Predicated region
      $region37: #{sinet_forward.15} parent=35 // pred_check
        %p345 = pneg %p127
      $region38: #{sinet_forward.15} parent=35 // pred_check_branch
        %347 = sbr.rel (%p345) target = $region40
      $region39: #{sinet_forward.15} parent=35 // pred_region
        _
      $region40: #{sinet_forward.15} parent=35 // pred_fallthru
        _
    $region36: #{sinet_forward.15} parent=5 // pred_fallthru
      _
    %p348 = scmp.le.s32.totalorder 2, %s10
    // Predicated region
    $region41: #{sinet_forward.15} parent=5 // pred_check
      %p349 = pneg %p348
    $region42: #{sinet_forward.15} parent=5 // pred_check_branch
      %351 = sbr.rel (%p349) target = $region44
    $region43: #{sinet_forward.15} parent=5 // pred_region
      %s352 = ssub.s32 %s10, 2
      // Predicated region
      $region45: #{sinet_forward.15} parent=43 // pred_check
        %p353 = pneg %p133
      $region46: #{sinet_forward.15} parent=43 // pred_check_branch
        %355 = sbr.rel (%p353) target = $region48
      $region47: #{sinet_forward.15} parent=43 // pred_region
        %p356 = scmp.lt.s32.totalorder %s16, 1
        %s357 = scalar_select %p356, %s16, 1
        %s358 = smul.addr %s357, 8
        %s359 = scalar_lea.vmem %s4, %s358
      $region48: #{sinet_forward.15} parent=43 // pred_fallthru
        _
    $region44: #{sinet_forward.15} parent=5 // pred_fallthru
      _
  $region6: #{sinet_forward.15} parent=0 // loop_footer
    %s14 = sadd.s32 1, %s10
  $region7: #{sinet_forward.15} parent=0 // loop_footer_branch
    %9 = sbr.rel target = $region3
  $region8: #{sinet_forward.15} parent=0 // loop_exit
    _

// kernel: sinet_forward.16
$region0: #{sinet_forward.16}
  #allocation0 [shape = 'u32[]', space=smem, size = 0x4, offset = 0x4, fixed_abs, tag = 'smem constant byte address 0x4 - core index']
  #allocation1 [shape = 'u32[144,128]{1,0:T(1,128)}', space=vmem, size = 0x12000, scoped, tag = 'internal scratch']
  %s0 = inlined_call_operand.vmem [shape: f32[2,5,128], index: 0, kind: input, shape index: {}]
  %s1 = inlined_call_operand.vmem [shape: f32[1,128], index: 1, kind: input, shape index: {}]
  %s2 = inlined_call_operand.vmem [shape: f32[1,128], index: 2, kind: input, shape index: {}]
  %s3 = inlined_call_operand.vmem [shape: bf16[128,512], index: 3, kind: input, shape index: {}]
  %s4 = inlined_call_operand.vmem [shape: f32[1,512], index: 4, kind: input, shape index: {}]
  %s5 = inlined_call_operand.vmem [shape: bf16[2,5,512], index: 5, kind: output, shape index: {}]
  %s6 = sld [smem:[#allocation0]]
  $region53: #{sinet_forward.16} parent=0
    _
  %s8 = ssub.s32 1, %s6
  %s9 = scalar_select 0, %s8, %s6
  loop: start=0, step=1, limit=4
  $region2: #{sinet_forward.16} parent=0 // loop_pre_header
    _
  $region3: #{sinet_forward.16} parent=0 // loop_header
    %s11 = sphi 0, %s15
    %p12 = scmp.ge.s32.totalorder %s11, 4
    %s21 = sphi 0, %s23
    %s24 = sphi 0, %s21
    %s25 = sphi 0, %s24
    %s41 = sphi 0, %s25
    %s45 = sphi 0, %s45
    %s47 = sphi 0, %s45
    %s48 = sphi 0, %s47
    %s62 = sphi 0, %s48
    %s66 = sphi 0, %s66
    %s68 = sphi 0, %s66
    %s69 = sphi 0, %s68
    %s83 = sphi 0, %s69
    %s87 = sphi 0, %s87
    %s89 = sphi 0, %s87
    %s90 = sphi 0, %s89
    %s104 = sphi 0, %s90
    %s108 = sphi 0, %s108
    %s110 = sphi 0, %s108
    %s111 = sphi 0, %s110
    %s125 = sphi 0, %s111
    %s131 = sphi 0, %s133
    %s134 = sphi 0, %s131
    %s135 = sphi 0, %s134
    %s151 = sphi 0, %s135
  $region4: #{sinet_forward.16} parent=0 // loop_header_branch
    %14 = sbr.rel (%p12) target = $region8
  $region5: #{sinet_forward.16} parent=0 // loop_body
    %s16 = ssub.s32 %s11, 1
    %s17 = ssub.s32 %s11, 2
    %s18 = sadd.s32 %s11, 1
    %s19 = ssub.s32 %s11, %s18
    %p20 = scmp.eq.s32.totalorder %s19, 0
    %s22 = sadd.s32 %s21, 1
    %s23 = scalar_select %p20, %s21, %s22
    %p26 = pneg %p20
    %p27 = scmp.eq.s32.totalorder %s11, 1
    %p28 = por %p26, %p27
    %p29 = scmp.ne.s32.totalorder %s21, %s24
    %p30 = scmp.eq.s32.totalorder %s11, 0
    %p31 = por %p29, %p30
    %p32 = scmp.ne.s32.totalorder %s21, %s24
    %p33 = scmp.eq.s32.totalorder %s16, 1
    %p34 = por %p32, %p33
    %p35 = scmp.ne.s32.totalorder %s24, %s25
    %p36 = scmp.eq.s32.totalorder %s16, 0
    %p37 = por %p35, %p36
    %p38 = scmp.ne.s32.totalorder %s24, %s25
    %p39 = scmp.eq.s32.totalorder %s17, 1
    %p40 = por %p38, %p39
    %p42 = scmp.ne.s32.totalorder %s25, %s41
    %p43 = scmp.eq.s32.totalorder %s17, 0
    %p44 = por %p42, %p43
    %s46 = sadd.s32 %s45, 1
    %p49 = scmp.eq.s32.totalorder %s11, 1
    %p50 = scmp.ne.s32.totalorder %s45, %s47
    %p51 = scmp.eq.s32.totalorder %s11, 0
    %p52 = por %p50, %p51
    %p53 = scmp.ne.s32.totalorder %s45, %s47
    %p54 = scmp.eq.s32.totalorder %s16, 1
    %p55 = por %p53, %p54
    %p56 = scmp.ne.s32.totalorder %s47, %s48
    %p57 = scmp.eq.s32.totalorder %s16, 0
    %p58 = por %p56, %p57
    %p59 = scmp.ne.s32.totalorder %s47, %s48
    %p60 = scmp.eq.s32.totalorder %s17, 1
    %p61 = por %p59, %p60
    %p63 = scmp.ne.s32.totalorder %s48, %s62
    %p64 = scmp.eq.s32.totalorder %s17, 0
    %p65 = por %p63, %p64
    %s67 = sadd.s32 %s66, 1
    %p70 = scmp.eq.s32.totalorder %s11, 1
    %p71 = scmp.ne.s32.totalorder %s66, %s68
    %p72 = scmp.eq.s32.totalorder %s11, 0
    %p73 = por %p71, %p72
    %p74 = scmp.ne.s32.totalorder %s66, %s68
    %p75 = scmp.eq.s32.totalorder %s16, 1
    %p76 = por %p74, %p75
    %p77 = scmp.ne.s32.totalorder %s68, %s69
    %p78 = scmp.eq.s32.totalorder %s16, 0
    %p79 = por %p77, %p78
    %p80 = scmp.ne.s32.totalorder %s68, %s69
    %p81 = scmp.eq.s32.totalorder %s17, 1
    %p82 = por %p80, %p81
    %p84 = scmp.ne.s32.totalorder %s69, %s83
    %p85 = scmp.eq.s32.totalorder %s17, 0
    %p86 = por %p84, %p85
    %s88 = sadd.s32 %s87, 1
    %p91 = scmp.eq.s32.totalorder %s11, 1
    %p92 = scmp.ne.s32.totalorder %s87, %s89
    %p93 = scmp.eq.s32.totalorder %s11, 0
    %p94 = por %p92, %p93
    %p95 = scmp.ne.s32.totalorder %s87, %s89
    %p96 = scmp.eq.s32.totalorder %s16, 1
    %p97 = por %p95, %p96
    %p98 = scmp.ne.s32.totalorder %s89, %s90
    %p99 = scmp.eq.s32.totalorder %s16, 0
    %p100 = por %p98, %p99
    %p101 = scmp.ne.s32.totalorder %s89, %s90
    %p102 = scmp.eq.s32.totalorder %s17, 1
    %p103 = por %p101, %p102
    %p105 = scmp.ne.s32.totalorder %s90, %s104
    %p106 = scmp.eq.s32.totalorder %s17, 0
    %p107 = por %p105, %p106
    %s109 = sadd.s32 %s108, 1
    %p112 = scmp.eq.s32.totalorder %s11, 1
    %p113 = scmp.ne.s32.totalorder %s108, %s110
    %p114 = scmp.eq.s32.totalorder %s11, 0
    %p115 = por %p113, %p114
    %p116 = scmp.ne.s32.totalorder %s108, %s110
    %p117 = scmp.eq.s32.totalorder %s16, 1
    %p118 = por %p116, %p117
    %p119 = scmp.ne.s32.totalorder %s110, %s111
    %p120 = scmp.eq.s32.totalorder %s16, 0
    %p121 = por %p119, %p120
    %p122 = scmp.ne.s32.totalorder %s110, %s111
    %p123 = scmp.eq.s32.totalorder %s17, 1
    %p124 = por %p122, %p123
    %p126 = scmp.ne.s32.totalorder %s111, %s125
    %p127 = scmp.eq.s32.totalorder %s17, 0
    %p128 = por %p126, %p127
    %s129 = ssub.s32 %s11, %s18
    %p130 = scmp.eq.s32.totalorder %s129, 0
    %s132 = sadd.s32 %s131, 1
    %s133 = scalar_select %p130, %s131, %s132
    %p136 = pneg %p130
    %p137 = scmp.eq.s32.totalorder %s11, 1
    %p138 = por %p136, %p137
    %p139 = scmp.ne.s32.totalorder %s131, %s134
    %p140 = scmp.eq.s32.totalorder %s11, 0
    %p141 = por %p139, %p140
    %p142 = scmp.ne.s32.totalorder %s131, %s134
    %p143 = scmp.eq.s32.totalorder %s16, 1
    %p144 = por %p142, %p143
    %p145 = scmp.ne.s32.totalorder %s134, %s135
    %p146 = scmp.eq.s32.totalorder %s16, 0
    %p147 = por %p145, %p146
    %p148 = scmp.ne.s32.totalorder %s134, %s135
    %p149 = scmp.eq.s32.totalorder %s17, 1
    %p150 = por %p148, %p149
    %p152 = scmp.ne.s32.totalorder %s135, %s151
    %p153 = scmp.eq.s32.totalorder %s17, 0
    %p154 = por %p152, %p153
    %p155 = scmp.le.s32.totalorder 1, %s11
    %p156 = scmp.lt.s32.totalorder %s11, 3
    %p157 = pnand %p155, %p156
    %p158 = pneg %p157
    // Predicated region
    $region9: #{sinet_forward.16} parent=5 // pred_check
      _
    $region10: #{sinet_forward.16} parent=5 // pred_check_branch
      %160 = sbr.rel (%p157) target = $region12
    $region11: #{sinet_forward.16} parent=5 // pred_region
      %s161 = ssub.s32 %s11, 1
      // Predicated region
      $region13: #{sinet_forward.16} parent=11 // pred_check
        %p162 = pneg %p58
      $region14: #{sinet_forward.16} parent=11 // pred_check_branch
        %164 = sbr.rel (%p162) target = $region16
      $region15: #{sinet_forward.16} parent=11 // pred_region
        _
      $region16: #{sinet_forward.16} parent=11 // pred_fallthru
        _
      // Predicated region
      $region17: #{sinet_forward.16} parent=11 // pred_check
        %p165 = pneg %p79
      $region18: #{sinet_forward.16} parent=11 // pred_check_branch
        %167 = sbr.rel (%p165) target = $region20
      $region19: #{sinet_forward.16} parent=11 // pred_region
        _
      $region20: #{sinet_forward.16} parent=11 // pred_fallthru
        _
      // Predicated region
      $region21: #{sinet_forward.16} parent=11 // pred_check
        %p168 = pneg %p100
      $region22: #{sinet_forward.16} parent=11 // pred_check_branch
        %170 = sbr.rel (%p168) target = $region24
      $region23: #{sinet_forward.16} parent=11 // pred_region
        _
      $region24: #{sinet_forward.16} parent=11 // pred_fallthru
        _
      // Predicated region
      $region25: #{sinet_forward.16} parent=11 // pred_check
        %p171 = pneg %p121
      $region26: #{sinet_forward.16} parent=11 // pred_check_branch
        %173 = sbr.rel (%p171) target = $region28
      $region27: #{sinet_forward.16} parent=11 // pred_region
        _
      $region28: #{sinet_forward.16} parent=11 // pred_fallthru
        _
    $region12: #{sinet_forward.16} parent=5 // pred_fallthru
      _
    %p174 = scmp.lt.s32.totalorder %s11, 2
    // Predicated region
    $region29: #{sinet_forward.16} parent=5 // pred_check
      %p175 = pneg %p174
    $region30: #{sinet_forward.16} parent=5 // pred_check_branch
      %177 = sbr.rel (%p175) target = $region32
    $region31: #{sinet_forward.16} parent=5 // pred_region
      // Predicated region
      $region33: #{sinet_forward.16} parent=31 // pred_check
        %p178 = pneg %p31
      $region34: #{sinet_forward.16} parent=31 // pred_check_branch
        %180 = sbr.rel (%p178) target = $region36
      $region35: #{sinet_forward.16} parent=31 // pred_region
        %p181 = scmp.lt.s32.totalorder %s11, 1
        %s182 = scalar_select %p181, %s11, 1
        %s183 = smul.addr %s182, 8
        %s184 = scalar_lea.vmem %s0, %s183
      $region36: #{sinet_forward.16} parent=31 // pred_fallthru
        _
    $region32: #{sinet_forward.16} parent=5 // pred_fallthru
      _
    %p185 = scmp.le.s32.totalorder 1, %s11
    %p186 = scmp.lt.s32.totalorder %s11, 3
    %p187 = pnand %p185, %p186
    %p188 = pneg %p187
    // Predicated region
    $region37: #{sinet_forward.16} parent=5 // pred_check
      _
    $region38: #{sinet_forward.16} parent=5 // pred_check_branch
      %190 = sbr.rel (%p187) target = $region40
    $region39: #{sinet_forward.16} parent=5 // pred_region
      %s191 = ssub.s32 %s11, 1
      %p192 = scmp.lt.s32.totalorder %s16, 1
      %s193 = scalar_select %p192, %s16, 1
      %s194 = smul.addr %s193, 8
      %s195 = scalar_lea.vmem %s0, %s194
      %p196 = pneg %p37
      %p197 = pneg %p34
      %p198 = pneg %p58
      %p199 = pneg %p55
      %p200 = pneg %p79
      %p201 = pneg %p76
      %p202 = pneg %p100
      %p203 = pneg %p97
      %p204 = pneg %p121
      %p205 = pneg %p118
      %p206 = pneg %p147
      %p207 = pneg %p144
      %p208 = scmp.lt.s32.totalorder %s16, 1
      %s209 = scalar_select %p208, %s16, 1
      %s210 = smul.addr %s209, 4
      %s211 = smul.addr %s210, 4
      %s212 = scalar_lea.vmem %s5, %s211
      %p213 = scmp.lt.s32.totalorder %s16, 1
      %s214 = scalar_select %p213, %s16, 1
      %s215 = smul.addr %s214, 8
      %s216 = scalar_lea.vmem %s0, %s215
      %p217 = scmp.lt.s32.totalorder %s16, 1
      %s218 = scalar_select %p217, %s16, 1
      %s219 = smul.addr %s218, 4
      %s220 = smul.addr %s219, 4
      %s221 = scalar_lea.vmem %s5, %s220
      %v223 = vld [vmem:[%s216] sm:$0x1f]
      %v224 = vld [vmem:[%s1] sm:$0x1]
      %v225 = vld [vmem:[%s2] sm:$0x1]
      %vm226 = vcmask 1044480
      %v227 = vsel %vm226, %v223, 0.0
      %228 = vadd.xlane.f32.xlu0 %v227
      %v229 = vpop.xlane.xlu0 %228
      %v230 = vrcp.pop 128.0
      %v231 = vmul.f32 %v229, %v230
      %v232 = vsub.f32 %v223, %v231
      %v233 = vmul.f32 %v232, %v232
      %v234 = vsel %vm226, %v233, 0.0
      %235 = vadd.xlane.f32.xlu0 %v234
      %v236 = vpop.xlane.xlu0 %235
      %v237 = vmul.f32 %v236, %v230
      %v238 = vadd.f32 %v237, 1e-06
      %v239 = vrsqrt.pop %v238
      %v240 = vmul.f32 %v232, %v239
      %v242 = vlaneseq
      %v243 = vshrl.u32 %v242, 7
      %v244 = vsub.s32 0, %v243
      %v245 = vrot.slane %v224, %v244
      %v247 = vmul.f32 %v240, %v245
      %v249 = vlaneseq
      %v250 = vshrl.u32 %v249, 7
      %v251 = vsub.s32 0, %v250
      %v252 = vrot.slane %v225, %v251
      %v254 = vadd.f32 %v247, %v252
      %v255 = vpack.c.bf16 %v254, %v254
      %v256 = vld [vmem:[%s3] sm:$0xff]
      %v257 = vld [vmem:[%s3 + $0x8] sm:$0xff]
      %v258 = vld [vmem:[%s3 + $0x10] sm:$0xff]
      %v259 = vld [vmem:[%s3 + $0x18] sm:$0xff]
      %v260 = vld [vmem:[%s3 + $0x20] sm:$0xff]
      %v261 = vld [vmem:[%s3 + $0x28] sm:$0xff]
      %v262 = vld [vmem:[%s3 + $0x30] sm:$0xff]
      %v263 = vld [vmem:[%s3 + $0x38] sm:$0xff]
      %v264 = vld [vmem:[%s3 + $0x40] sm:$0xff]
      %v265 = vld [vmem:[%s3 + $0x48] sm:$0xff]
      %v266 = vld [vmem:[%s3 + $0x50] sm:$0xff]
      %v267 = vld [vmem:[%s3 + $0x58] sm:$0xff]
      %v268 = vld [vmem:[%s3 + $0x60] sm:$0xff]
      %v269 = vld [vmem:[%s3 + $0x68] sm:$0xff]
      %v270 = vld [vmem:[%s3 + $0x70] sm:$0xff]
      %v271 = vld [vmem:[%s3 + $0x78] sm:$0xff]
      %v272 = vld [vmem:[%s3 + $0x80] sm:$0xff]
      %v273 = vld [vmem:[%s3 + $0x88] sm:$0xff]
      %v274 = vld [vmem:[%s3 + $0x90] sm:$0xff]
      %v275 = vld [vmem:[%s3 + $0x98] sm:$0xff]
      %v276 = vld [vmem:[%s3 + $0xa0] sm:$0xff]
      %v277 = vld [vmem:[%s3 + $0xa8] sm:$0xff]
      %v278 = vld [vmem:[%s3 + $0xb0] sm:$0xff]
      %v279 = vld [vmem:[%s3 + $0xb8] sm:$0xff]
      %v280 = vld [vmem:[%s3 + $0xc0] sm:$0xff]
      %v281 = vld [vmem:[%s3 + $0xc8] sm:$0xff]
      %v282 = vld [vmem:[%s3 + $0xd0] sm:$0xff]
      %v283 = vld [vmem:[%s3 + $0xd8] sm:$0xff]
      %v284 = vld [vmem:[%s3 + $0xe0] sm:$0xff]
      %v285 = vld [vmem:[%s3 + $0xe8] sm:$0xff]
      %v286 = vld [vmem:[%s3 + $0xf0] sm:$0xff]
      %v287 = vld [vmem:[%s3 + $0xf8] sm:$0xff]
      %v288 = vld [vmem:[%s4] sm:$0xf]
      %v290 = vlaneseq
      %v291 = vshrl.u32 %v290, 7
      %v292 = vsub.s32 0, %v291
      %v293 = vrot.slane %v288, %v292
      %v294 = vlaneseq
      %v295 = vshrl.u32 %v294, 7
      %v296 = vsub.s32 1, %v295
      %v297 = vrot.slane %v288, %v296
      %v298 = vlaneseq
      %v299 = vshrl.u32 %v298, 7
      %v300 = vsub.s32 2, %v299
      %v301 = vrot.slane %v288, %v300
      %v302 = vlaneseq
      %v303 = vshrl.u32 %v302, 7
      %v304 = vsub.s32 3, %v303
      %v305 = vrot.slane %v288, %v304
      %v342 = vunpack.c.l.b16 %v256
      %v343 = vunpack.c.h.b16 %v256
      %v344 = vunpack.c.l.b16 %v257
      %v345 = vunpack.c.h.b16 %v257
      %v346 = vunpack.c.l.b16 %v258
      %v347 = vunpack.c.h.b16 %v258
      %v348 = vunpack.c.l.b16 %v259
      %v349 = vunpack.c.h.b16 %v259
      %v350 = vunpack.c.l.b16 %v260
      %v351 = vunpack.c.h.b16 %v260
      %v352 = vunpack.c.l.b16 %v261
      %v353 = vunpack.c.h.b16 %v261
      %v354 = vunpack.c.l.b16 %v262
      %v355 = vunpack.c.h.b16 %v262
      %v356 = vunpack.c.l.b16 %v263
      %v357 = vunpack.c.h.b16 %v263
      %v358 = vunpack.c.l.b16 %v264
      %v359 = vunpack.c.h.b16 %v264
      %v360 = vunpack.c.l.b16 %v265
      %v361 = vunpack.c.h.b16 %v265
      %v362 = vunpack.c.l.b16 %v266
      %v363 = vunpack.c.h.b16 %v266
      %v364 = vunpack.c.l.b16 %v267
      %v365 = vunpack.c.h.b16 %v267
      %v366 = vunpack.c.l.b16 %v268
      %v367 = vunpack.c.h.b16 %v268
      %v368 = vunpack.c.l.b16 %v269
      %v369 = vunpack.c.h.b16 %v269
      %v370 = vunpack.c.l.b16 %v270
      %v371 = vunpack.c.h.b16 %v270
      %v372 = vunpack.c.l.b16 %v271
      %v373 = vunpack.c.h.b16 %v271
      %v374 = vunpack.c.l.b16 %v272
      %v375 = vunpack.c.h.b16 %v272
      %v376 = vunpack.c.l.b16 %v273
      %v377 = vunpack.c.h.b16 %v273
      %v378 = vunpack.c.l.b16 %v274
      %v379 = vunpack.c.h.b16 %v274
      %v380 = vunpack.c.l.b16 %v275
      %v381 = vunpack.c.h.b16 %v275
      %v382 = vunpack.c.l.b16 %v276
      %v383 = vunpack.c.h.b16 %v276
      %v384 = vunpack.c.l.b16 %v277
      %v385 = vunpack.c.h.b16 %v277
      %v386 = vunpack.c.l.b16 %v278
      %v387 = vunpack.c.h.b16 %v278
      %v388 = vunpack.c.l.b16 %v279
      %v389 = vunpack.c.h.b16 %v279
      %v390 = vunpack.c.l.b16 %v280
      %v391 = vunpack.c.h.b16 %v280
      %v392 = vunpack.c.l.b16 %v281
      %v393 = vunpack.c.h.b16 %v281
      %v394 = vunpack.c.l.b16 %v282
      %v395 = vunpack.c.h.b16 %v282
      %v396 = vunpack.c.l.b16 %v283
      %v397 = vunpack.c.h.b16 %v283
      %v398 = vunpack.c.l.b16 %v284
      %v399 = vunpack.c.h.b16 %v284
      %v400 = vunpack.c.l.b16 %v285
      %v401 = vunpack.c.h.b16 %v285
      %v402 = vunpack.c.l.b16 %v286
      %v403 = vunpack.c.h.b16 %v286
      %v404 = vunpack.c.l.b16 %v287
      %v405 = vunpack.c.h.b16 %v287
      %v406 = vpack.c.b16 %v346, %v342
      %v407 = vpack.c.b16 %v347, %v343
      %v408 = vpack.c.b16 %v348, %v344
      %v409 = vpack.c.b16 %v349, %v345
      %v410 = vpack.c.b16 %v354, %v350
      %v411 = vpack.c.b16 %v355, %v351
      %v412 = vpack.c.b16 %v356, %v352
      %v413 = vpack.c.b16 %v357, %v353
      %v414 = vpack.c.b16 %v362, %v358
      %v415 = vpack.c.b16 %v363, %v359
      %v416 = vpack.c.b16 %v364, %v360
      %v417 = vpack.c.b16 %v365, %v361
      %v418 = vpack.c.b16 %v370, %v366
      %v419 = vpack.c.b16 %v371, %v367
      %v420 = vpack.c.b16 %v372, %v368
      %v421 = vpack.c.b16 %v373, %v369
      %v422 = vpack.c.b16 %v378, %v374
      %v423 = vpack.c.b16 %v379, %v375
      %v424 = vpack.c.b16 %v380, %v376
      %v425 = vpack.c.b16 %v381, %v377
      %v426 = vpack.c.b16 %v386, %v382
      %v427 = vpack.c.b16 %v387, %v383
      %v428 = vpack.c.b16 %v388, %v384
      %v429 = vpack.c.b16 %v389, %v385
      %v430 = vpack.c.b16 %v394, %v390
      %v431 = vpack.c.b16 %v395, %v391
      %v432 = vpack.c.b16 %v396, %v392
      %v433 = vpack.c.b16 %v397, %v393
      %v434 = vpack.c.b16 %v402, %v398
      %v435 = vpack.c.b16 %v403, %v399
      %v436 = vpack.c.b16 %v404, %v400
      %v437 = vpack.c.b16 %v405, %v401
      %470 = vmatprep.subr.bf16.mxu0 %v407
      %471 = vmatpush1.bf16.msra.mxu0 %v406
      %472 = vmatprep.subr.bf16.mxu0 %v411
      %473 = vmatpush1.bf16.msra.mxu0 %v410
      %474 = vmatprep.subr.bf16.mxu0 %v415
      %475 = vmatpush1.bf16.msra.mxu0 %v414
      %476 = vmatprep.subr.bf16.mxu0 %v419
      %477 = vmatpush1.bf16.msra.mxu0 %v418
      %478 = vmatprep.subr.bf16.mxu0 %v423
      %479 = vmatpush1.bf16.msra.mxu0 %v422
      %480 = vmatprep.subr.bf16.mxu0 %v427
      %481 = vmatpush1.bf16.msra.mxu0 %v426
      %482 = vmatprep.subr.bf16.mxu0 %v431
      %483 = vmatpush1.bf16.msra.mxu0 %v430
      %484 = vmatprep.subr.bf16.mxu0 %v435
      %485 = vmatpush1.bf16.msra.mxu0 %v434
      %486 = vmatprep.subr.bf16.mxu0 0
      %487 = vmatpush1.bf16.msra.mxu0 0
      %488 = vmatprep.subr.bf16.mxu0 0
      %489 = vmatpush1.bf16.msra.mxu0 0
      %490 = vmatprep.subr.bf16.mxu0 0
      %491 = vmatpush1.bf16.msra.mxu0 0
      %492 = vmatprep.subr.bf16.mxu0 0
      %493 = vmatpush1.bf16.msra.mxu0 0
      %494 = vmatprep.subr.bf16.mxu0 0
      %495 = vmatpush1.bf16.msra.mxu0 0
      %496 = vmatprep.subr.bf16.mxu0 0
      %497 = vmatpush1.bf16.msra.mxu0 0
      %498 = vmatprep.subr.bf16.mxu0 0
      %499 = vmatpush1.bf16.msra.mxu0 0
      %500 = vmatprep.subr.bf16.mxu0 0
      %501 = vmatpush1.bf16.msra.mxu0 0
      %502 = vmatprep.mubr.bf16.mxu0 0
      %503 = vmatmul.mubr.bf16.gmra.mrb[0].mxu0 %v255
      %v504 = vpop.f32.mrb[0].mxu0
      %v505 = vadd.f32 %v293, %v504
      %v506 = vpop.f32.mrb[0].mxu0
      %v507 = vadd.f32 %v297, %v506
      %v508 = vpop.f32.mrb[0].mxu0
      %v509 = vpop.f32.mrb[0].mxu0
      %510 = vdwg.mxu0
      %511 = vmatprep.subr.bf16.mxu0 %v409
      %512 = vmatpush1.bf16.msra.mxu0 %v408
      %513 = vmatprep.subr.bf16.mxu0 %v413
      %514 = vmatpush1.bf16.msra.mxu0 %v412
      %515 = vmatprep.subr.bf16.mxu0 %v417
      %516 = vmatpush1.bf16.msra.mxu0 %v416
      %517 = vmatprep.subr.bf16.mxu0 %v421
      %518 = vmatpush1.bf16.msra.mxu0 %v420
      %519 = vmatprep.subr.bf16.mxu0 %v425
      %520 = vmatpush1.bf16.msra.mxu0 %v424
      %521 = vmatprep.subr.bf16.mxu0 %v429
      %522 = vmatpush1.bf16.msra.mxu0 %v428
      %523 = vmatprep.subr.bf16.mxu0 %v433
      %524 = vmatpush1.bf16.msra.mxu0 %v432
      %525 = vmatprep.subr.bf16.mxu0 %v437
      %526 = vmatpush1.bf16.msra.mxu0 %v436
      %527 = vmatprep.subr.bf16.mxu0 0
      %528 = vmatpush1.bf16.msra.mxu0 0
      %529 = vmatprep.subr.bf16.mxu0 0
      %530 = vmatpush1.bf16.msra.mxu0 0
      %531 = vmatprep.subr.bf16.mxu0 0
      %532 = vmatpush1.bf16.msra.mxu0 0
      %533 = vmatprep.subr.bf16.mxu0 0
      %534 = vmatpush1.bf16.msra.mxu0 0
      %535 = vmatprep.subr.bf16.mxu0 0
      %536 = vmatpush1.bf16.msra.mxu0 0
      %537 = vmatprep.subr.bf16.mxu0 0
      %538 = vmatpush1.bf16.msra.mxu0 0
      %539 = vmatprep.subr.bf16.mxu0 0
      %540 = vmatpush1.bf16.msra.mxu0 0
      %541 = vmatprep.subr.bf16.mxu0 0
      %542 = vmatpush1.bf16.msra.mxu0 0
      %543 = vmatprep.mubr.bf16.mxu0 0
      %544 = vmatmul.mubr.bf16.gmra.mrb[0].mxu0 %v255
      %v545 = vpop.f32.mrb[0].mxu0
      %v546 = vadd.f32 %v301, %v545
      %v547 = vpop.f32.mrb[0].mxu0
      %v548 = vadd.f32 %v305, %v547
      %v549 = vpop.f32.mrb[0].mxu0
      %v550 = vpop.f32.mrb[0].mxu0
      %551 = vdwg.mxu0
      %v552 = vmul.f32 %v505, %v505
      %v553 = vmul.f32 %v507, %v507
      %v554 = vmul.f32 %v546, %v546
      %v555 = vmul.f32 %v548, %v548
      %v556 = vmul.f32 %v505, %v552
      %v557 = vmul.f32 %v507, %v553
      %v558 = vmul.f32 %v546, %v554
      %v559 = vmul.f32 %v548, %v555
      %v560 = vmul.f32 %v556, 0.044715
      %v561 = vmul.f32 %v557, 0.044715
      %v562 = vmul.f32 %v558, 0.044715
      %v563 = vmul.f32 %v559, 0.044715
      %v564 = vadd.f32 %v505, %v560
      %v565 = vadd.f32 %v507, %v561
      %v566 = vadd.f32 %v546, %v562
      %v567 = vadd.f32 %v548, %v563
      %v568 = vmul.f32 %v564, 0.7978846
      %v569 = vmul.f32 %v565, 0.7978846
      %v570 = vmul.f32 %v566, 0.7978846
      %v571 = vmul.f32 %v567, 0.7978846
      %v572 = vtanh.pop %v568
      %v573 = vtanh.pop %v569
      %v574 = vtanh.pop %v570
      %v575 = vtanh.pop %v571
      %v576 = vadd.f32 %v572, 1.0
      %v577 = vadd.f32 %v573, 1.0
      %v578 = vadd.f32 %v574, 1.0
      %v579 = vadd.f32 %v575, 1.0
      %v580 = vmul.f32 %v576, 0.5
      %v581 = vmul.f32 %v577, 0.5
      %v582 = vmul.f32 %v578, 0.5
      %v583 = vmul.f32 %v579, 0.5
      %v584 = vmul.f32 %v505, %v580
      %v585 = vmul.f32 %v507, %v581
      %v586 = vmul.f32 %v546, %v582
      %v587 = vmul.f32 %v548, %v583
      %v588 = vpack.c.bf16 %v584, %v584
      %v589 = vpack.c.bf16 %v585, %v585
      %v590 = vpack.c.bf16 %v586, %v586
      %v591 = vpack.c.bf16 %v587, %v587
      %v596 = vunpack.c.l.b16 %v588
      %v597 = vunpack.c.l.b16 %v589
      %v598 = vunpack.c.l.b16 %v590
      %v599 = vunpack.c.l.b16 %v591
      %v600 = vpack.c.b16 %v597, %v596
      %v601 = vpack.c.b16 %v599, %v598
      %vm604 = vcmask 1042432
      %vm605 = vsmask.f32 2304
      %vm606 = vmand %vm604, %vm605
      %vm607 = vcmask 1046532
      %vm608 = vsmask.f32 6400
      %vm609 = vmand %vm607, %vm608
      %vm610 = vmor %vm609, %vm606
      %v611 = vld [vmem:[%s221] sm:$0x77]
      %v612 = vsel %vm610, %v600, %v611
      %613 = vst [vmem:[%s221] sm:$0x77] %v612
      %v614 = vld [vmem:[%s221 + $0x8] sm:$0x77]
      %v615 = vsel %vm610, %v601, %v614
      %616 = vst [vmem:[%s221 + $0x8] sm:$0x77] %v615
      %p617 = scmp.lt.s32.totalorder %s16, 1
      %s618 = scalar_select %p617, %s16, 1
      %s619 = smul.addr %s618, 4
      %s620 = smul.addr %s619, 4
      %s621 = scalar_lea.vmem %s5, %s620
      // Predicated region
      $region41: #{sinet_forward.16} parent=39 // pred_check
        %p622 = pneg %p144
      $region42: #{sinet_forward.16} parent=39 // pred_check_branch
        %624 = sbr.rel (%p622) target = $region44
      $region43: #{sinet_forward.16} parent=39 // pred_region
        _
      $region44: #{sinet_forward.16} parent=39 // pred_fallthru
        _
    $region40: #{sinet_forward.16} parent=5 // pred_fallthru
      _
    %p625 = scmp.le.s32.totalorder 2, %s11
    // Predicated region
    $region45: #{sinet_forward.16} parent=5 // pred_check
      %p626 = pneg %p625
    $region46: #{sinet_forward.16} parent=5 // pred_check_branch
      %628 = sbr.rel (%p626) target = $region48
    $region47: #{sinet_forward.16} parent=5 // pred_region
      %s629 = ssub.s32 %s11, 2
      // Predicated region
      $region49: #{sinet_forward.16} parent=47 // pred_check
        %p630 = pneg %p150
      $region50: #{sinet_forward.16} parent=47 // pred_check_branch
        %632 = sbr.rel (%p630) target = $region52
      $region51: #{sinet_forward.16} parent=47 // pred_region
        %p633 = scmp.lt.s32.totalorder %s17, 1
        %s634 = scalar_select %p633, %s17, 1
        %s635 = smul.addr %s634, 4
        %s636 = smul.addr %s635, 4
        %s637 = scalar_lea.vmem %s5, %s636
      $region52: #{sinet_forward.16} parent=47 // pred_fallthru
        _
    $region48: #{sinet_forward.16} parent=5 // pred_fallthru
      _
  $region6: #{sinet_forward.16} parent=0 // loop_footer
    %s15 = sadd.s32 1, %s11
  $region7: #{sinet_forward.16} parent=0 // loop_footer_branch
    %10 = sbr.rel target = $region3
  $region8: #{sinet_forward.16} parent=0 // loop_exit
    _

// kernel: sinet_forward.23
$region0: #{sinet_forward.23}
  #allocation0 [shape = 'u32[]', space=smem, size = 0x4, offset = 0x4, fixed_abs, tag = 'smem constant byte address 0x4 - core index']
  #allocation1 [shape = 'u32[144,128]{1,0:T(1,128)}', space=vmem, size = 0x12000, scoped, tag = 'internal scratch']
  %s0 = inlined_call_operand.vmem [shape: f32[2,128], index: 0, kind: input, shape index: {}]
  %s1 = inlined_call_operand.vmem [shape: f32[1,128], index: 1, kind: input, shape index: {}]
  %s2 = inlined_call_operand.vmem [shape: f32[1,128], index: 2, kind: input, shape index: {}]
  %s3 = inlined_call_operand.vmem [shape: bf16[128,10], index: 3, kind: input, shape index: {}]
  %s4 = inlined_call_operand.vmem [shape: f32[1,10], index: 4, kind: input, shape index: {}]
  %s5 = inlined_call_operand.hbm [shape: f32[2,128], index: 5, kind: output, shape index: {0}]
  %s6 = inlined_call_operand.hbm [shape: f32[2,10], index: 6, kind: output, shape index: {1}]
  %7 = xla_tuple %s5, %s6
  %s8 = sld [smem:[#allocation0]]
  $region38: #{sinet_forward.23} parent=0
    _
  %s10 = ssub.s32 1, %s8
  %s11 = scalar_select 0, %s10, %s8
  $region1: #{sinet_forward.23} parent=0
    #allocation2 [shape = 'u8[1024]{0}', space=vmem, size = 0x400, scoped, tag = 'output window, operand 0, single buffered']
    #allocation3 [shape = 's32[1]{0}', space=sflag, size = 0x4, scoped, tag = 'scoped memory for sinet_forward.23']
    #allocation4 [shape = 'u8[1024]{0}', space=vmem, size = 0x400, scoped, tag = 'output window, operand 1, single buffered']
    #allocation5 [shape = 's32[1]{0}', space=sflag, size = 0x4, scoped, tag = 'scoped memory for sinet_forward.23']
    %12 = vsyncpa [#allocation3], 0
    %13 = vsyncpa [#allocation5], 0
    // Predicated region
    $region2: #{sinet_forward.23} parent=1 // pred_check
      _
    $region3: #{sinet_forward.23} parent=1 // pred_check_branch
      %15 = sbr.rel (0) target = $region5
    $region4: #{sinet_forward.23} parent=1 // pred_region
      _
    $region5: #{sinet_forward.23} parent=1 // pred_fallthru
      _
    // Predicated region
    $region6: #{sinet_forward.23} parent=1 // pred_check
      _
    $region7: #{sinet_forward.23} parent=1 // pred_check_branch
      %17 = sbr.rel (0) target = $region9
    $region8: #{sinet_forward.23} parent=1 // pred_region
      _
    $region9: #{sinet_forward.23} parent=1 // pred_fallthru
      _
    // Predicated region
    $region10: #{sinet_forward.23} parent=1 // pred_check
      _
    $region11: #{sinet_forward.23} parent=1 // pred_check_branch
      %19 = sbr.rel (0) target = $region13
    $region12: #{sinet_forward.23} parent=1 // pred_region
      _
    $region13: #{sinet_forward.23} parent=1 // pred_fallthru
      _
    // Predicated region
    $region14: #{sinet_forward.23} parent=1 // pred_check
      _
    $region15: #{sinet_forward.23} parent=1 // pred_check_branch
      %21 = sbr.rel (0) target = $region17
    $region16: #{sinet_forward.23} parent=1 // pred_region
      _
    $region17: #{sinet_forward.23} parent=1 // pred_fallthru
      _
    // Predicated region
    $region18: #{sinet_forward.23} parent=1 // pred_check
      _
    $region19: #{sinet_forward.23} parent=1 // pred_check_branch
      %23 = sbr.rel (0) target = $region21
    $region20: #{sinet_forward.23} parent=1 // pred_region
      _
    $region21: #{sinet_forward.23} parent=1 // pred_fallthru
      _
    %v25 = vld [vmem:[%s0] sm:$0x3]
    %v26 = vld [vmem:[%s1] sm:$0x1]
    %v27 = vld [vmem:[%s2] sm:$0x1]
    %vm28 = vcmask 1041408
    %v29 = vsel %vm28, %v25, 0.0
    %30 = vadd.xlane.f32.xlu0 %v29
    %v31 = vpop.xlane.xlu0 %30
    %v32 = vrcp.pop 128.0
    %v33 = vmul.f32 %v31, %v32
    %v34 = vsub.f32 %v25, %v33
    %v35 = vmul.f32 %v34, %v34
    %v36 = vsel %vm28, %v35, 0.0
    %37 = vadd.xlane.f32.xlu0 %v36
    %v38 = vpop.xlane.xlu0 %37
    %v39 = vmul.f32 %v38, %v32
    %v40 = vadd.f32 %v39, 1e-06
    %v41 = vrsqrt.pop %v40
    %v42 = vmul.f32 %v34, %v41
    %v44 = vlaneseq
    %v45 = vshrl.u32 %v44, 7
    %v46 = vsub.s32 0, %v45
    %v47 = vrot.slane %v26, %v46
    %v49 = vmul.f32 %v42, %v47
    %v51 = vlaneseq
    %v52 = vshrl.u32 %v51, 7
    %v53 = vsub.s32 0, %v52
    %v54 = vrot.slane %v27, %v53
    %v56 = vadd.f32 %v49, %v54
    %57 = vst [vmem:[#allocation2] sm:$0x3] %v56
    %v58 = vpack.c.bf16 %v56, %v56
    %v59 = vld [vmem:[%s3] sm:$0xf]
    %v60 = vld [vmem:[%s3 + $0x4] sm:$0xf]
    %v61 = vld [vmem:[%s3 + $0x8] sm:$0xf]
    %v62 = vld [vmem:[%s3 + $0xc] sm:$0xf]
    %v63 = vld [vmem:[%s3 + $0x10] sm:$0xf]
    %v64 = vld [vmem:[%s3 + $0x14] sm:$0xf]
    %v65 = vld [vmem:[%s3 + $0x18] sm:$0xf]
    %v66 = vld [vmem:[%s3 + $0x1c] sm:$0xf]
    %v67 = vld [vmem:[%s3 + $0x20] sm:$0xf]
    %v68 = vld [vmem:[%s3 + $0x24] sm:$0xf]
    %v69 = vld [vmem:[%s3 + $0x28] sm:$0xf]
    %v70 = vld [vmem:[%s3 + $0x2c] sm:$0xf]
    %v71 = vld [vmem:[%s3 + $0x30] sm:$0xf]
    %v72 = vld [vmem:[%s3 + $0x34] sm:$0xf]
    %v73 = vld [vmem:[%s3 + $0x38] sm:$0xf]
    %v74 = vld [vmem:[%s3 + $0x3c] sm:$0xf]
    %v75 = vld [vmem:[%s4] sm:$0x1]
    %v77 = vlaneseq
    %v78 = vshrl.u32 %v77, 7
    %v79 = vsub.s32 0, %v78
    %v80 = vrot.slane %v75, %v79
    %v98 = vunpack.c.l.b16 %v59
    %v99 = vunpack.c.l.b16 %v60
    %v100 = vunpack.c.l.b16 %v61
    %v101 = vunpack.c.l.b16 %v62
    %v102 = vunpack.c.l.b16 %v63
    %v103 = vunpack.c.l.b16 %v64
    %v104 = vunpack.c.l.b16 %v65
    %v105 = vunpack.c.l.b16 %v66
    %v106 = vunpack.c.l.b16 %v67
    %v107 = vunpack.c.l.b16 %v68
    %v108 = vunpack.c.l.b16 %v69
    %v109 = vunpack.c.l.b16 %v70
    %v110 = vunpack.c.l.b16 %v71
    %v111 = vunpack.c.l.b16 %v72
    %v112 = vunpack.c.l.b16 %v73
    %v113 = vunpack.c.l.b16 %v74
    %v114 = vpack.c.b16 %v99, %v98
    %v115 = vpack.c.b16 %v101, %v100
    %v116 = vpack.c.b16 %v103, %v102
    %v117 = vpack.c.b16 %v105, %v104
    %v118 = vpack.c.b16 %v107, %v106
    %v119 = vpack.c.b16 %v109, %v108
    %v120 = vpack.c.b16 %v111, %v110
    %v121 = vpack.c.b16 %v113, %v112
    %130 = vmatprep.subr.bf16.mxu0 0
    %131 = vmatpush1.bf16.msra.mxu0 %v114
    %132 = vmatprep.subr.bf16.mxu0 0
    %133 = vmatpush1.bf16.msra.mxu0 %v115
    %134 = vmatprep.subr.bf16.mxu0 0
    %135 = vmatpush1.bf16.msra.mxu0 %v116
    %136 = vmatprep.subr.bf16.mxu0 0
    %137 = vmatpush1.bf16.msra.mxu0 %v117
    %138 = vmatprep.subr.bf16.mxu0 0
    %139 = vmatpush1.bf16.msra.mxu0 %v118
    %140 = vmatprep.subr.bf16.mxu0 0
    %141 = vmatpush1.bf16.msra.mxu0 %v119
    %142 = vmatprep.subr.bf16.mxu0 0
    %143 = vmatpush1.bf16.msra.mxu0 %v120
    %144 = vmatprep.subr.bf16.mxu0 0
    %145 = vmatpush1.bf16.msra.mxu0 %v121
    %146 = vmatprep.subr.bf16.mxu0 0
    %147 = vmatpush1.bf16.msra.mxu0 0
    %148 = vmatprep.subr.bf16.mxu0 0
    %149 = vmatpush1.bf16.msra.mxu0 0
    %150 = vmatprep.subr.bf16.mxu0 0
    %151 = vmatpush1.bf16.msra.mxu0 0
    %152 = vmatprep.subr.bf16.mxu0 0
    %153 = vmatpush1.bf16.msra.mxu0 0
    %154 = vmatprep.subr.bf16.mxu0 0
    %155 = vmatpush1.bf16.msra.mxu0 0
    %156 = vmatprep.subr.bf16.mxu0 0
    %157 = vmatpush1.bf16.msra.mxu0 0
    %158 = vmatprep.subr.bf16.mxu0 0
    %159 = vmatpush1.bf16.msra.mxu0 0
    %160 = vmatprep.subr.bf16.mxu0 0
    %161 = vmatpush1.bf16.msra.mxu0 0
    %162 = vmatprep.mubr.bf16.mxu0 0
    %163 = vmatmul.mubr.bf16.gmra.mrb[0].mxu0 %v58
    %v164 = vpop.f32.mrb[0].mxu0
    %v165 = vadd.f32 %v80, %v164
    %v166 = vpop.f32.mrb[0].mxu0
    %v167 = vpop.f32.mrb[0].mxu0
    %v168 = vpop.f32.mrb[0].mxu0
    %169 = vdwg.mxu0
    %vm170 = vcmask 74752
    %171 = vst.msk [vmem:[#allocation4] sm:$0x3] %vm170, %v165
    // Predicated region
    $region22: #{sinet_forward.23} parent=1 // pred_check
      _
    $region23: #{sinet_forward.23} parent=1 // pred_check_branch
      %173 = sbr.rel (0) target = $region25
    $region24: #{sinet_forward.23} parent=1 // pred_region
      %s175 = ssub.s32 32, 32
      %176 = vsyncadd [#allocation3], %s175
      %s178 = sshll.u32 [#allocation2], 4
      %s179 = int_to_ptr.vmem [resolvable:$true] %s178
      %181 = dma.vmem_to_hbm [thread:$0]  %s179, 32, %s5, [#allocation3]
    $region25: #{sinet_forward.23} parent=1 // pred_fallthru
      _
    // Predicated region
    $region26: #{sinet_forward.23} parent=1 // pred_check
      _
    $region27: #{sinet_forward.23} parent=1 // pred_check_branch
      %183 = sbr.rel (0) target = $region29
    $region28: #{sinet_forward.23} parent=1 // pred_region
      %s185 = ssub.s32 32, 32
      %186 = vsyncadd [#allocation5], %s185
      %s188 = sshll.u32 [#allocation4], 4
      %s189 = int_to_ptr.vmem [resolvable:$true] %s188
      %191 = dma.vmem_to_hbm [thread:$0]  %s189, 32, %s6, [#allocation5]
    $region29: #{sinet_forward.23} parent=1 // pred_fallthru
      _
    // Predicated region
    $region30: #{sinet_forward.23} parent=1 // pred_check
      _
    $region31: #{sinet_forward.23} parent=1 // pred_check_branch
      %193 = sbr.rel (0) target = $region33
    $region32: #{sinet_forward.23} parent=1 // pred_region
      %194 = dma.done [#allocation3], 32
    $region33: #{sinet_forward.23} parent=1 // pred_fallthru
      _
    // Predicated region
    $region34: #{sinet_forward.23} parent=1 // pred_check
      _
    $region35: #{sinet_forward.23} parent=1 // pred_check_branch
      %196 = sbr.rel (0) target = $region37
    $region36: #{sinet_forward.23} parent=1 // pred_region
      %197 = dma.done [#allocation5], 32
    $region37: #{sinet_forward.23} parent=1 // pred_fallthru
      _
    %198 = vsyncpa [#allocation3], 1
    %199 = vsyncpa [#allocation5], 1

// kernel: sinet_forward.17
$region0: #{sinet_forward.17}
  #allocation0 [shape = 'u32[]', space=smem, size = 0x4, offset = 0x4, fixed_abs, tag = 'smem constant byte address 0x4 - core index']
  #allocation1 [shape = 'u32[144,128]{1,0:T(1,128)}', space=vmem, size = 0x12000, scoped, tag = 'internal scratch']
  %s0 = inlined_call_operand.vmem [shape: bf16[2,5,512], index: 0, kind: input, shape index: {}]
  %s1 = inlined_call_operand.vmem [shape: bf16[512,128], index: 1, kind: input, shape index: {}]
  %s2 = inlined_call_operand.vmem [shape: f32[1,128], index: 2, kind: input, shape index: {}]
  %s3 = inlined_call_operand.vmem [shape: f32[2,5,128], index: 3, kind: input, shape index: {}]
  %s4 = inlined_call_operand.vmem [shape: f32[2,5,128], index: 4, kind: output, shape index: {}]
  %s5 = sld [smem:[#allocation0]]
  $region49: #{sinet_forward.17} parent=0
    _
  %s7 = ssub.s32 1, %s5
  %s8 = scalar_select 0, %s7, %s5
  loop: start=0, step=1, limit=4
  $region2: #{sinet_forward.17} parent=0 // loop_pre_header
    _
  $region3: #{sinet_forward.17} parent=0 // loop_header
    %s10 = sphi 0, %s14
    %p11 = scmp.ge.s32.totalorder %s10, 4
    %s20 = sphi 0, %s22
    %s23 = sphi 0, %s20
    %s24 = sphi 0, %s23
    %s40 = sphi 0, %s24
    %s44 = sphi 0, %s44
    %s46 = sphi 0, %s44
    %s47 = sphi 0, %s46
    %s61 = sphi 0, %s47
    %s65 = sphi 0, %s65
    %s67 = sphi 0, %s65
    %s68 = sphi 0, %s67
    %s82 = sphi 0, %s68
    %s88 = sphi 0, %s90
    %s91 = sphi 0, %s88
    %s92 = sphi 0, %s91
    %s108 = sphi 0, %s92
    %s114 = sphi 0, %s116
    %s117 = sphi 0, %s114
    %s118 = sphi 0, %s117
    %s134 = sphi 0, %s118
  $region4: #{sinet_forward.17} parent=0 // loop_header_branch
    %13 = sbr.rel (%p11) target = $region8
  $region5: #{sinet_forward.17} parent=0 // loop_body
    %s15 = ssub.s32 %s10, 1
    %s16 = ssub.s32 %s10, 2
    %s17 = sadd.s32 %s10, 1
    %s18 = ssub.s32 %s10, %s17
    %p19 = scmp.eq.s32.totalorder %s18, 0
    %s21 = sadd.s32 %s20, 1
    %s22 = scalar_select %p19, %s20, %s21
    %p25 = pneg %p19
    %p26 = scmp.eq.s32.totalorder %s10, 1
    %p27 = por %p25, %p26
    %p28 = scmp.ne.s32.totalorder %s20, %s23
    %p29 = scmp.eq.s32.totalorder %s10, 0
    %p30 = por %p28, %p29
    %p31 = scmp.ne.s32.totalorder %s20, %s23
    %p32 = scmp.eq.s32.totalorder %s15, 1
    %p33 = por %p31, %p32
    %p34 = scmp.ne.s32.totalorder %s23, %s24
    %p35 = scmp.eq.s32.totalorder %s15, 0
    %p36 = por %p34, %p35
    %p37 = scmp.ne.s32.totalorder %s23, %s24
    %p38 = scmp.eq.s32.totalorder %s16, 1
    %p39 = por %p37, %p38
    %p41 = scmp.ne.s32.totalorder %s24, %s40
    %p42 = scmp.eq.s32.totalorder %s16, 0
    %p43 = por %p41, %p42
    %s45 = sadd.s32 %s44, 1
    %p48 = scmp.eq.s32.totalorder %s10, 1
    %p49 = scmp.ne.s32.totalorder %s44, %s46
    %p50 = scmp.eq.s32.totalorder %s10, 0
    %p51 = por %p49, %p50
    %p52 = scmp.ne.s32.totalorder %s44, %s46
    %p53 = scmp.eq.s32.totalorder %s15, 1
    %p54 = por %p52, %p53
    %p55 = scmp.ne.s32.totalorder %s46, %s47
    %p56 = scmp.eq.s32.totalorder %s15, 0
    %p57 = por %p55, %p56
    %p58 = scmp.ne.s32.totalorder %s46, %s47
    %p59 = scmp.eq.s32.totalorder %s16, 1
    %p60 = por %p58, %p59
    %p62 = scmp.ne.s32.totalorder %s47, %s61
    %p63 = scmp.eq.s32.totalorder %s16, 0
    %p64 = por %p62, %p63
    %s66 = sadd.s32 %s65, 1
    %p69 = scmp.eq.s32.totalorder %s10, 1
    %p70 = scmp.ne.s32.totalorder %s65, %s67
    %p71 = scmp.eq.s32.totalorder %s10, 0
    %p72 = por %p70, %p71
    %p73 = scmp.ne.s32.totalorder %s65, %s67
    %p74 = scmp.eq.s32.totalorder %s15, 1
    %p75 = por %p73, %p74
    %p76 = scmp.ne.s32.totalorder %s67, %s68
    %p77 = scmp.eq.s32.totalorder %s15, 0
    %p78 = por %p76, %p77
    %p79 = scmp.ne.s32.totalorder %s67, %s68
    %p80 = scmp.eq.s32.totalorder %s16, 1
    %p81 = por %p79, %p80
    %p83 = scmp.ne.s32.totalorder %s68, %s82
    %p84 = scmp.eq.s32.totalorder %s16, 0
    %p85 = por %p83, %p84
    %s86 = ssub.s32 %s10, %s17
    %p87 = scmp.eq.s32.totalorder %s86, 0
    %s89 = sadd.s32 %s88, 1
    %s90 = scalar_select %p87, %s88, %s89
    %p93 = pneg %p87
    %p94 = scmp.eq.s32.totalorder %s10, 1
    %p95 = por %p93, %p94
    %p96 = scmp.ne.s32.totalorder %s88, %s91
    %p97 = scmp.eq.s32.totalorder %s10, 0
    %p98 = por %p96, %p97
    %p99 = scmp.ne.s32.totalorder %s88, %s91
    %p100 = scmp.eq.s32.totalorder %s15, 1
    %p101 = por %p99, %p100
    %p102 = scmp.ne.s32.totalorder %s91, %s92
    %p103 = scmp.eq.s32.totalorder %s15, 0
    %p104 = por %p102, %p103
    %p105 = scmp.ne.s32.totalorder %s91, %s92
    %p106 = scmp.eq.s32.totalorder %s16, 1
    %p107 = por %p105, %p106
    %p109 = scmp.ne.s32.totalorder %s92, %s108
    %p110 = scmp.eq.s32.totalorder %s16, 0
    %p111 = por %p109, %p110
    %s112 = ssub.s32 %s10, %s17
    %p113 = scmp.eq.s32.totalorder %s112, 0
    %s115 = sadd.s32 %s114, 1
    %s116 = scalar_select %p113, %s114, %s115
    %p119 = pneg %p113
    %p120 = scmp.eq.s32.totalorder %s10, 1
    %p121 = por %p119, %p120
    %p122 = scmp.ne.s32.totalorder %s114, %s117
    %p123 = scmp.eq.s32.totalorder %s10, 0
    %p124 = por %p122, %p123
    %p125 = scmp.ne.s32.totalorder %s114, %s117
    %p126 = scmp.eq.s32.totalorder %s15, 1
    %p127 = por %p125, %p126
    %p128 = scmp.ne.s32.totalorder %s117, %s118
    %p129 = scmp.eq.s32.totalorder %s15, 0
    %p130 = por %p128, %p129
    %p131 = scmp.ne.s32.totalorder %s117, %s118
    %p132 = scmp.eq.s32.totalorder %s16, 1
    %p133 = por %p131, %p132
    %p135 = scmp.ne.s32.totalorder %s118, %s134
    %p136 = scmp.eq.s32.totalorder %s16, 0
    %p137 = por %p135, %p136
    %p138 = scmp.le.s32.totalorder 1, %s10
    %p139 = scmp.lt.s32.totalorder %s10, 3
    %p140 = pnand %p138, %p139
    %p141 = pneg %p140
    // Predicated region
    $region9: #{sinet_forward.17} parent=5 // pred_check
      _
    $region10: #{sinet_forward.17} parent=5 // pred_check_branch
      %143 = sbr.rel (%p140) target = $region12
    $region11: #{sinet_forward.17} parent=5 // pred_region
      %s144 = ssub.s32 %s10, 1
      // Predicated region
      $region13: #{sinet_forward.17} parent=11 // pred_check
        %p145 = pneg %p57
      $region14: #{sinet_forward.17} parent=11 // pred_check_branch
        %147 = sbr.rel (%p145) target = $region16
      $region15: #{sinet_forward.17} parent=11 // pred_region
        _
      $region16: #{sinet_forward.17} parent=11 // pred_fallthru
        _
      // Predicated region
      $region17: #{sinet_forward.17} parent=11 // pred_check
        %p148 = pneg %p78
      $region18: #{sinet_forward.17} parent=11 // pred_check_branch
        %150 = sbr.rel (%p148) target = $region20
      $region19: #{sinet_forward.17} parent=11 // pred_region
        _
      $region20: #{sinet_forward.17} parent=11 // pred_fallthru
        _
    $region12: #{sinet_forward.17} parent=5 // pred_fallthru
      _
    %p151 = scmp.lt.s32.totalorder %s10, 2
    // Predicated region
    $region21: #{sinet_forward.17} parent=5 // pred_check
      %p152 = pneg %p151
    $region22: #{sinet_forward.17} parent=5 // pred_check_branch
      %154 = sbr.rel (%p152) target = $region24
    $region23: #{sinet_forward.17} parent=5 // pred_region
      // Predicated region
      $region25: #{sinet_forward.17} parent=23 // pred_check
        %p155 = pneg %p30
      $region26: #{sinet_forward.17} parent=23 // pred_check_branch
        %157 = sbr.rel (%p155) target = $region28
      $region27: #{sinet_forward.17} parent=23 // pred_region
        %p158 = scmp.lt.s32.totalorder %s10, 1
        %s159 = scalar_select %p158, %s10, 1
        %s160 = smul.addr %s159, 4
        %s161 = smul.addr %s160, 4
        %s162 = scalar_lea.vmem %s0, %s161
      $region28: #{sinet_forward.17} parent=23 // pred_fallthru
        _
      // Predicated region
      $region29: #{sinet_forward.17} parent=23 // pred_check
        %p163 = pneg %p98
      $region30: #{sinet_forward.17} parent=23 // pred_check_branch
        %165 = sbr.rel (%p163) target = $region32
      $region31: #{sinet_forward.17} parent=23 // pred_region
        %p166 = scmp.lt.s32.totalorder %s10, 1
        %s167 = scalar_select %p166, %s10, 1
        %s168 = smul.addr %s167, 8
        %s169 = scalar_lea.vmem %s3, %s168
      $region32: #{sinet_forward.17} parent=23 // pred_fallthru
        _
    $region24: #{sinet_forward.17} parent=5 // pred_fallthru
      _
    %p170 = scmp.le.s32.totalorder 1, %s10
    %p171 = scmp.lt.s32.totalorder %s10, 3
    %p172 = pnand %p170, %p171
    %p173 = pneg %p172
    // Predicated region
    $region33: #{sinet_forward.17} parent=5 // pred_check
      _
    $region34: #{sinet_forward.17} parent=5 // pred_check_branch
      %175 = sbr.rel (%p172) target = $region36
    $region35: #{sinet_forward.17} parent=5 // pred_region
      %s176 = ssub.s32 %s10, 1
      %p177 = scmp.lt.s32.totalorder %s15, 1
      %s178 = scalar_select %p177, %s15, 1
      %s179 = smul.addr %s178, 4
      %s180 = smul.addr %s179, 4
      %s181 = scalar_lea.vmem %s0, %s180
      %p182 = pneg %p36
      %p183 = pneg %p33
      %p184 = pneg %p57
      %p185 = pneg %p54
      %p186 = pneg %p78
      %p187 = pneg %p75
      %p188 = scmp.lt.s32.totalorder %s15, 1
      %s189 = scalar_select %p188, %s15, 1
      %s190 = smul.addr %s189, 8
      %s191 = scalar_lea.vmem %s3, %s190
      %p192 = pneg %p104
      %p193 = pneg %p101
      %p194 = pneg %p130
      %p195 = pneg %p127
      %p196 = scmp.lt.s32.totalorder %s15, 1
      %s197 = scalar_select %p196, %s15, 1
      %s198 = smul.addr %s197, 8
      %s199 = scalar_lea.vmem %s4, %s198
      %p200 = scmp.lt.s32.totalorder %s15, 1
      %s201 = scalar_select %p200, %s15, 1
      %s202 = smul.addr %s201, 4
      %s203 = smul.addr %s202, 4
      %s204 = scalar_lea.vmem %s0, %s203
      %p205 = scmp.lt.s32.totalorder %s15, 1
      %s206 = scalar_select %p205, %s15, 1
      %s207 = smul.addr %s206, 8
      %s208 = scalar_lea.vmem %s3, %s207
      %p209 = scmp.lt.s32.totalorder %s15, 1
      %s210 = scalar_select %p209, %s15, 1
      %s211 = smul.addr %s210, 8
      %s212 = scalar_lea.vmem %s4, %s211
      %v214 = vld [vmem:[%s204] sm:$0x77]
      %v215 = vld [vmem:[%s204 + $0x8] sm:$0x77]
      %v216 = vld [vmem:[%s1] sm:$0xf]
      %v217 = vld [vmem:[%s1 + $0x4] sm:$0xf]
      %v218 = vld [vmem:[%s1 + $0x8] sm:$0xf]
      %v219 = vld [vmem:[%s1 + $0xc] sm:$0xf]
      %v220 = vld [vmem:[%s1 + $0x10] sm:$0xf]
      %v221 = vld [vmem:[%s1 + $0x14] sm:$0xf]
      %v222 = vld [vmem:[%s1 + $0x18] sm:$0xf]
      %v223 = vld [vmem:[%s1 + $0x1c] sm:$0xf]
      %v224 = vld [vmem:[%s1 + $0x20] sm:$0xf]
      %v225 = vld [vmem:[%s1 + $0x24] sm:$0xf]
      %v226 = vld [vmem:[%s1 + $0x28] sm:$0xf]
      %v227 = vld [vmem:[%s1 + $0x2c] sm:$0xf]
      %v228 = vld [vmem:[%s1 + $0x30] sm:$0xf]
      %v229 = vld [vmem:[%s1 + $0x34] sm:$0xf]
      %v230 = vld [vmem:[%s1 + $0x38] sm:$0xf]
      %v231 = vld [vmem:[%s1 + $0x3c] sm:$0xf]
      %v232 = vld [vmem:[%s1 + $0x40] sm:$0xf]
      %v233 = vld [vmem:[%s1 + $0x44] sm:$0xf]
      %v234 = vld [vmem:[%s1 + $0x48] sm:$0xf]
      %v235 = vld [vmem:[%s1 + $0x4c] sm:$0xf]
      %v236 = vld [vmem:[%s1 + $0x50] sm:$0xf]
      %v237 = vld [vmem:[%s1 + $0x54] sm:$0xf]
      %v238 = vld [vmem:[%s1 + $0x58] sm:$0xf]
      %v239 = vld [vmem:[%s1 + $0x5c] sm:$0xf]
      %v240 = vld [vmem:[%s1 + $0x60] sm:$0xf]
      %v241 = vld [vmem:[%s1 + $0x64] sm:$0xf]
      %v242 = vld [vmem:[%s1 + $0x68] sm:$0xf]
      %v243 = vld [vmem:[%s1 + $0x6c] sm:$0xf]
      %v244 = vld [vmem:[%s1 + $0x70] sm:$0xf]
      %v245 = vld [vmem:[%s1 + $0x74] sm:$0xf]
      %v246 = vld [vmem:[%s1 + $0x78] sm:$0xf]
      %v247 = vld [vmem:[%s1 + $0x7c] sm:$0xf]
      %v248 = vld [vmem:[%s1 + $0x80] sm:$0xf]
      %v249 = vld [vmem:[%s1 + $0x84] sm:$0xf]
      %v250 = vld [vmem:[%s1 + $0x88] sm:$0xf]
      %v251 = vld [vmem:[%s1 + $0x8c] sm:$0xf]
      %v252 = vld [vmem:[%s1 + $0x90] sm:$0xf]
      %v253 = vld [vmem:[%s1 + $0x94] sm:$0xf]
      %v254 = vld [vmem:[%s1 + $0x98] sm:$0xf]
      %v255 = vld [vmem:[%s1 + $0x9c] sm:$0xf]
      %v256 = vld [vmem:[%s1 + $0xa0] sm:$0xf]
      %v257 = vld [vmem:[%s1 + $0xa4] sm:$0xf]
      %v258 = vld [vmem:[%s1 + $0xa8] sm:$0xf]
      %v259 = vld [vmem:[%s1 + $0xac] sm:$0xf]
      %v260 = vld [vmem:[%s1 + $0xb0] sm:$0xf]
      %v261 = vld [vmem:[%s1 + $0xb4] sm:$0xf]
      %v262 = vld [vmem:[%s1 + $0xb8] sm:$0xf]
      %v263 = vld [vmem:[%s1 + $0xbc] sm:$0xf]
      %v264 = vld [vmem:[%s1 + $0xc0] sm:$0xf]
      %v265 = vld [vmem:[%s1 + $0xc4] sm:$0xf]
      %v266 = vld [vmem:[%s1 + $0xc8] sm:$0xf]
      %v267 = vld [vmem:[%s1 + $0xcc] sm:$0xf]
      %v268 = vld [vmem:[%s1 + $0xd0] sm:$0xf]
      %v269 = vld [vmem:[%s1 + $0xd4] sm:$0xf]
      %v270 = vld [vmem:[%s1 + $0xd8] sm:$0xf]
      %v271 = vld [vmem:[%s1 + $0xdc] sm:$0xf]
      %v272 = vld [vmem:[%s1 + $0xe0] sm:$0xf]
      %v273 = vld [vmem:[%s1 + $0xe4] sm:$0xf]
      %v274 = vld [vmem:[%s1 + $0xe8] sm:$0xf]
      %v275 = vld [vmem:[%s1 + $0xec] sm:$0xf]
      %v276 = vld [vmem:[%s1 + $0xf0] sm:$0xf]
      %v277 = vld [vmem:[%s1 + $0xf4] sm:$0xf]
      %v278 = vld [vmem:[%s1 + $0xf8] sm:$0xf]
      %v279 = vld [vmem:[%s1 + $0xfc] sm:$0xf]
      %v280 = vld [vmem:[%s2] sm:$0x1]
      %v282 = vlaneseq
      %v283 = vshrl.u32 %v282, 7
      %v284 = vsub.s32 0, %v283
      %v285 = vrot.slane %v280, %v284
      %v289 = vunpack.c.l.b16 %v214
      %v290 = vunpack.c.h.b16 %v214
      %v291 = vunpack.c.l.b16 %v215
      %v292 = vunpack.c.h.b16 %v215
      %v293 = vpack.c.b16 %v289, %v289
      %v294 = vpack.c.b16 %v290, %v290
      %v295 = vpack.c.b16 %v291, %v291
      %v296 = vpack.c.b16 %v292, %v292
      %v365 = vunpack.c.l.b16 %v216
      %v366 = vunpack.c.l.b16 %v217
      %v367 = vunpack.c.l.b16 %v218
      %v368 = vunpack.c.l.b16 %v219
      %v369 = vunpack.c.l.b16 %v220
      %v370 = vunpack.c.l.b16 %v221
      %v371 = vunpack.c.l.b16 %v222
      %v372 = vunpack.c.l.b16 %v223
      %v373 = vunpack.c.l.b16 %v224
      %v374 = vunpack.c.l.b16 %v225
      %v375 = vunpack.c.l.b16 %v226
      %v376 = vunpack.c.l.b16 %v227
      %v377 = vunpack.c.l.b16 %v228
      %v378 = vunpack.c.l.b16 %v229
      %v379 = vunpack.c.l.b16 %v230
      %v380 = vunpack.c.l.b16 %v231
      %v381 = vunpack.c.l.b16 %v232
      %v382 = vunpack.c.l.b16 %v233
      %v383 = vunpack.c.l.b16 %v234
      %v384 = vunpack.c.l.b16 %v235
      %v385 = vunpack.c.l.b16 %v236
      %v386 = vunpack.c.l.b16 %v237
      %v387 = vunpack.c.l.b16 %v238
      %v388 = vunpack.c.l.b16 %v239
      %v389 = vunpack.c.l.b16 %v240
      %v390 = vunpack.c.l.b16 %v241
      %v391 = vunpack.c.l.b16 %v242
      %v392 = vunpack.c.l.b16 %v243
      %v393 = vunpack.c.l.b16 %v244
      %v394 = vunpack.c.l.b16 %v245
      %v395 = vunpack.c.l.b16 %v246
      %v396 = vunpack.c.l.b16 %v247
      %v397 = vunpack.c.l.b16 %v248
      %v398 = vunpack.c.l.b16 %v249
      %v399 = vunpack.c.l.b16 %v250
      %v400 = vunpack.c.l.b16 %v251
      %v401 = vunpack.c.l.b16 %v252
      %v402 = vunpack.c.l.b16 %v253
      %v403 = vunpack.c.l.b16 %v254
      %v404 = vunpack.c.l.b16 %v255
      %v405 = vunpack.c.l.b16 %v256
      %v406 = vunpack.c.l.b16 %v257
      %v407 = vunpack.c.l.b16 %v258
      %v408 = vunpack.c.l.b16 %v259
      %v409 = vunpack.c.l.b16 %v260
      %v410 = vunpack.c.l.b16 %v261
      %v411 = vunpack.c.l.b16 %v262
      %v412 = vunpack.c.l.b16 %v263
      %v413 = vunpack.c.l.b16 %v264
      %v414 = vunpack.c.l.b16 %v265
      %v415 = vunpack.c.l.b16 %v266
      %v416 = vunpack.c.l.b16 %v267
      %v417 = vunpack.c.l.b16 %v268
      %v418 = vunpack.c.l.b16 %v269
      %v419 = vunpack.c.l.b16 %v270
      %v420 = vunpack.c.l.b16 %v271
      %v421 = vunpack.c.l.b16 %v272
      %v422 = vunpack.c.l.b16 %v273
      %v423 = vunpack.c.l.b16 %v274
      %v424 = vunpack.c.l.b16 %v275
      %v425 = vunpack.c.l.b16 %v276
      %v426 = vunpack.c.l.b16 %v277
      %v427 = vunpack.c.l.b16 %v278
      %v428 = vunpack.c.l.b16 %v279
      %v429 = vpack.c.b16 %v366, %v365
      %v430 = vpack.c.b16 %v368, %v367
      %v431 = vpack.c.b16 %v370, %v369
      %v432 = vpack.c.b16 %v372, %v371
      %v433 = vpack.c.b16 %v374, %v373
      %v434 = vpack.c.b16 %v376, %v375
      %v435 = vpack.c.b16 %v378, %v377
      %v436 = vpack.c.b16 %v380, %v379
      %v437 = vpack.c.b16 %v382, %v381
      %v438 = vpack.c.b16 %v384, %v383
      %v439 = vpack.c.b16 %v386, %v385
      %v440 = vpack.c.b16 %v388, %v387
      %v441 = vpack.c.b16 %v390, %v389
      %v442 = vpack.c.b16 %v392, %v391
      %v443 = vpack.c.b16 %v394, %v393
      %v444 = vpack.c.b16 %v396, %v395
      %v445 = vpack.c.b16 %v398, %v397
      %v446 = vpack.c.b16 %v400, %v399
      %v447 = vpack.c.b16 %v402, %v401
      %v448 = vpack.c.b16 %v404, %v403
      %v449 = vpack.c.b16 %v406, %v405
      %v450 = vpack.c.b16 %v408, %v407
      %v451 = vpack.c.b16 %v410, %v409
      %v452 = vpack.c.b16 %v412, %v411
      %v453 = vpack.c.b16 %v414, %v413
      %v454 = vpack.c.b16 %v416, %v415
      %v455 = vpack.c.b16 %v418, %v417
      %v456 = vpack.c.b16 %v420, %v419
      %v457 = vpack.c.b16 %v422, %v421
      %v458 = vpack.c.b16 %v424, %v423
      %v459 = vpack.c.b16 %v426, %v425
      %v460 = vpack.c.b16 %v428, %v427
      %493 = vmatprep.subr.bf16.mxu0 0
      %494 = vmatpush1.bf16.msra.mxu0 %v429
      %495 = vmatprep.subr.bf16.mxu0 0
      %496 = vmatpush1.bf16.msra.mxu0 %v430
      %497 = vmatprep.subr.bf16.mxu0 0
      %498 = vmatpush1.bf16.msra.mxu0 %v431
      %499 = vmatprep.subr.bf16.mxu0 0
      %500 = vmatpush1.bf16.msra.mxu0 %v432
      %501 = vmatprep.subr.bf16.mxu0 0
      %502 = vmatpush1.bf16.msra.mxu0 %v433
      %503 = vmatprep.subr.bf16.mxu0 0
      %504 = vmatpush1.bf16.msra.mxu0 %v434
      %505 = vmatprep.subr.bf16.mxu0 0
      %506 = vmatpush1.bf16.msra.mxu0 %v435
      %507 = vmatprep.subr.bf16.mxu0 0
      %508 = vmatpush1.bf16.msra.mxu0 %v436
      %509 = vmatprep.subr.bf16.mxu0 0
      %510 = vmatpush1.bf16.msra.mxu0 %v437
      %511 = vmatprep.subr.bf16.mxu0 0
      %512 = vmatpush1.bf16.msra.mxu0 %v438
      %513 = vmatprep.subr.bf16.mxu0 0
      %514 = vmatpush1.bf16.msra.mxu0 %v439
      %515 = vmatprep.subr.bf16.mxu0 0
      %516 = vmatpush1.bf16.msra.mxu0 %v440
      %517 = vmatprep.subr.bf16.mxu0 0
      %518 = vmatpush1.bf16.msra.mxu0 %v441
      %519 = vmatprep.subr.bf16.mxu0 0
      %520 = vmatpush1.bf16.msra.mxu0 %v442
      %521 = vmatprep.subr.bf16.mxu0 0
      %522 = vmatpush1.bf16.msra.mxu0 %v443
      %523 = vmatprep.subr.bf16.mxu0 0
      %524 = vmatpush1.bf16.msra.mxu0 %v444
      %525 = vmatprep.mubr.bf16.mxu0 %v294
      %526 = vmatmul.mubr.bf16.gmra.mrb[0].mxu0 %v293
      %v527 = vpop.f32.mrb[0].mxu0
      %v528 = vadd.f32 %v285, %v527
      %v529 = vpop.f32.mrb[0].mxu0
      %v530 = vpop.f32.mrb[0].mxu0
      %v531 = vpop.f32.mrb[0].mxu0
      %532 = vdwg.mxu0
      %533 = vmatprep.subr.bf16.mxu0 0
      %534 = vmatpush1.bf16.msra.mxu0 %v445
      %535 = vmatprep.subr.bf16.mxu0 0
      %536 = vmatpush1.bf16.msra.mxu0 %v446
      %537 = vmatprep.subr.bf16.mxu0 0
      %538 = vmatpush1.bf16.msra.mxu0 %v447
      %539 = vmatprep.subr.bf16.mxu0 0
      %540 = vmatpush1.bf16.msra.mxu0 %v448
      %541 = vmatprep.subr.bf16.mxu0 0
      %542 = vmatpush1.bf16.msra.mxu0 %v449
      %543 = vmatprep.subr.bf16.mxu0 0
      %544 = vmatpush1.bf16.msra.mxu0 %v450
      %545 = vmatprep.subr.bf16.mxu0 0
      %546 = vmatpush1.bf16.msra.mxu0 %v451
      %547 = vmatprep.subr.bf16.mxu0 0
      %548 = vmatpush1.bf16.msra.mxu0 %v452
      %549 = vmatprep.subr.bf16.mxu0 0
      %550 = vmatpush1.bf16.msra.mxu0 %v453
      %551 = vmatprep.subr.bf16.mxu0 0
      %552 = vmatpush1.bf16.msra.mxu0 %v454
      %553 = vmatprep.subr.bf16.mxu0 0
      %554 = vmatpush1.bf16.msra.mxu0 %v455
      %555 = vmatprep.subr.bf16.mxu0 0
      %556 = vmatpush1.bf16.msra.mxu0 %v456
      %557 = vmatprep.subr.bf16.mxu0 0
      %558 = vmatpush1.bf16.msra.mxu0 %v457
      %559 = vmatprep.subr.bf16.mxu0 0
      %560 = vmatpush1.bf16.msra.mxu0 %v458
      %561 = vmatprep.subr.bf16.mxu0 0
      %562 = vmatpush1.bf16.msra.mxu0 %v459
      %563 = vmatprep.subr.bf16.mxu0 0
      %564 = vmatpush1.bf16.msra.mxu0 %v460
      %565 = vmatprep.mubr.bf16.mxu0 %v296
      %566 = vmatmul.mubr.bf16.gmra.mrb[0].mxu0 %v295
      %v567 = vpop.f32.mrb[0].mxu0
      %v568 = vadd.f32 %v528, %v567
      %v569 = vpop.f32.mrb[0].mxu0
      %v570 = vpop.f32.mrb[0].mxu0
      %v571 = vpop.f32.mrb[0].mxu0
      %572 = vdwg.mxu0
      %v573 = vld [vmem:[%s208] sm:$0x1f]
      %v574 = vadd.f32 %v568, %v573
      %575 = vst [vmem:[%s212] sm:$0x1f] %v574
      %p576 = scmp.lt.s32.totalorder %s15, 1
      %s577 = scalar_select %p576, %s15, 1
      %s578 = smul.addr %s577, 8
      %s579 = scalar_lea.vmem %s4, %s578
      // Predicated region
      $region37: #{sinet_forward.17} parent=35 // pred_check
        %p580 = pneg %p127
      $region38: #{sinet_forward.17} parent=35 // pred_check_branch
        %582 = sbr.rel (%p580) target = $region40
      $region39: #{sinet_forward.17} parent=35 // pred_region
        _
      $region40: #{sinet_forward.17} parent=35 // pred_fallthru
        _
    $region36: #{sinet_forward.17} parent=5 // pred_fallthru
      _
    %p583 = scmp.le.s32.totalorder 2, %s10
    // Predicated region
    $region41: #{sinet_forward.17} parent=5 // pred_check
      %p584 = pneg %p583
    $region42: #{sinet_forward.17} parent=5 // pred_check_branch
      %586 = sbr.rel (%p584) target = $region44
    $region43: #{sinet_forward.17} parent=5 // pred_region
      %s587 = ssub.s32 %s10, 2
      // Predicated region
      $region45: #{sinet_forward.17} parent=43 // pred_check
        %p588 = pneg %p133
      $region46: #{sinet_forward.17} parent=43 // pred_check_branch
        %590 = sbr.rel (%p588) target = $region48
      $region47: #{sinet_forward.17} parent=43 // pred_region
        %p591 = scmp.lt.s32.totalorder %s16, 1
        %s592 = scalar_select %p591, %s16, 1
        %s593 = smul.addr %s592, 8
        %s594 = scalar_lea.vmem %s4, %s593
      $region48: #{sinet_forward.17} parent=43 // pred_fallthru
        _
    $region44: #{sinet_forward.17} parent=5 // pred_fallthru
      _
  $region6: #{sinet_forward.17} parent=0 // loop_footer
    %s14 = sadd.s32 1, %s10
  $region7: #{sinet_forward.17} parent=0 // loop_footer_branch
    %9 = sbr.rel target = $region3
  $region8: #{sinet_forward.17} parent=0 // loop_exit
    _

</llo_original>
